<compile_context>
chip_gen: v6e
topology: v6e:2x2x1
jax: 0.10.0
libtpu: 0.0.40
codegen_flags: <defaults>
</compile_context>

<pallas_src>
import jax
import jax.numpy as jnp
from jax.experimental import pallas as pl
from jax.experimental.pallas import tpu as pltpu

NEG_SLOPE = 0.01  # F.leaky_relu default negative slope


def _leaky_relu(x):
    return jnp.where(x >= 0, x, NEG_SLOPE * x)


def _make_kernel(window, tile, b_chunk, out_n):
    """Kernel for one (time-tile, batch-chunk) pair, transposed (time-on-lanes) layout."""
    hp = jax.lax.Precision.HIGHEST  # MXU is idle-ish here; full-precision f32 is free.

    def kernel(xm_ref, xh_ref, w1_ref, b1_ref, w2_ref, b2_ref, w3_ref, b3_ref, o_ref):
        # Weights/biases are tiny and VMEM-resident (constant index maps); load once.
        w1 = w1_ref[...]          # (H, W*F)  f32, K index ordered w*F + f
        w2 = w2_ref[...]          # (H4, H)   f32
        w3 = w3_ref[...]          # (out, H4) f32
        b1 = b1_ref[...]          # (H, 1)
        b2 = b2_ref[...]          # (H4, 1)
        b3 = b3_ref[...]          # (out, 1)

        for b in range(b_chunk):
            # Main block (F, tile) + halo block (F, HALO): lane-aligned concat after an
            # immediate upcast to f32 (bf16 only ever touches the input DMA).
            slab = jnp.concatenate(
                [xm_ref[b].astype(jnp.float32), xh_ref[b].astype(jnp.float32)],
                axis=-1)                                         # (F, tile + HALO)

            # Stack the W lane-shifted slices along sublanes -> single K = W*F operand.
            xw = jnp.concatenate([slab[:, w:w + tile] for w in range(window)],
                                 axis=0)                         # (W*F, tile)

            h = jnp.dot(w1, xw, preferred_element_type=jnp.float32, precision=hp)
            h = _leaky_relu(h + b1)                              # (H, tile)   f32
            h = jnp.dot(w2, h, preferred_element_type=jnp.float32, precision=hp)
            h = _leaky_relu(h + b2)                              # (H4, tile)  f32
            y = jnp.dot(w3, h, preferred_element_type=jnp.float32, precision=hp) + b3

            # Pack batch elements along sublanes: rows [b*out : (b+1)*out] of the
            # (b_chunk*out, tile) block -> dense lane/sublane writeback DMA.
            o_ref[b * out_n:(b + 1) * out_n, :] = y.astype(o_ref.dtype)

    return kernel


def winfc3_forward(inputs, params, window_size, *, tile_t=2048, batch_chunk=2,
                   compute_dtype=jnp.float32):
    """inputs: (T, B, F) float32, time-major (same convention as the PyTorch module).

    params: (w1, b1, w2, b2, w3, b3); weights are (in, out) with the fc1 input index
    ordered f*W + w (PyTorch's torch.stack(frames, dim=-1).view flattening).
    Returns (T - W + 1, B, output_size) float32 (eval-mode forward).
    """
    w1, b1, w2, b2, w3, b3 = params
    T, B, F = inputs.shape
    W = window_size
    H = w1.shape[1]
    H4 = w2.shape[1]
    out_size = w3.shape[1]
    n_out = T - W + 1
    assert n_out >= 1, "need at least window_size frames"

    # ---- tiling over the window-start axis (lane axis inside the kernel) ----------
    HALO = -(-max(W - 1, 1) // 128) * 128             # halo width, multiple of 128
    tile_t = max(HALO, (tile_t // HALO) * HALO)
    TT = min(tile_t, -(-n_out // HALO) * HALO)        # tile width, multiple of HALO
    n_tiles = -(-n_out // TT)
    T_pad = n_tiles * TT + HALO                       # covers last tile's halo block
    halo_blocks = TT // HALO

    BC = max(1, batch_chunk)
    NB = -(-B // BC) * BC                             # batch padded to chunk multiple
    NBC = NB // BC

    # ---- staging: ONE transpose+pad pass over the input, no overlapping gather ----
    x = inputs.astype(compute_dtype)                  # bf16 staging halves this pass
    x = jnp.transpose(x, (1, 2, 0))                   # (B, F, T): time on lanes
    x = jnp.pad(x, ((0, NB - B), (0, 0), (0, T_pad - T)))          # (NB, F, T_pad)

    # ---- weights in transposed orientation; fc1 flattened for one K = W*F matmul --
    # w1f[h, w*F + f] = w1[f*W + w, h]; all weights stay f32 (a few KiB total).
    w1f = jnp.transpose(w1.reshape(F, W, H), (2, 1, 0)).reshape(H, W * F)
    w1f = w1f.astype(jnp.float32)
    w2t = jnp.transpose(w2, (1, 0)).astype(jnp.float32)            # (H4, H)
    w3t = jnp.transpose(w3, (1, 0)).astype(jnp.float32)            # (out, H4)
    b1t = b1.reshape(H, 1).astype(jnp.float32)
    b2t = b2.reshape(H4, 1).astype(jnp.float32)
    b3t = b3.reshape(out_size, 1).astype(jnp.float32)

    n_cols = n_tiles * TT * NB
    cost = pl.CostEstimate(
        flops=2 * n_cols * (W * F * H + H * H4 + H4 * out_size),
        transcendentals=0,
        bytes_accessed=(x.size * x.dtype.itemsize
                        + n_tiles * NB * F * HALO * x.dtype.itemsize
                        + sum(a.size * a.dtype.itemsize
                              for a in (w1f, b1t, w2t, b2t, w3t, b3t))
                        + n_tiles * NB * out_size * TT * 4))

    kernel = _make_kernel(W, TT, BC, out_size)
    y = pl.pallas_call(
        kernel,
        out_shape=jax.ShapeDtypeStruct((n_tiles, NBC, BC * out_size, TT), jnp.float32),
        grid=(n_tiles, NBC),
        in_specs=[
            # main input block: (BC, F, TT), non-overlapping time tiles
            pl.BlockSpec((BC, F, TT), lambda i, j: (j, 0, i)),
            # halo block: first HALO lanes of tile i+1 (always in bounds: T_pad)
            pl.BlockSpec((BC, F, HALO), lambda i, j: (j, 0, (i + 1) * halo_blocks)),
            # weights / biases: constant block index -> fetched once, VMEM resident
            pl.BlockSpec((H, W * F), lambda i, j: (0, 0)),
            pl.BlockSpec((H, 1), lambda i, j: (0, 0)),
            pl.BlockSpec((H4, H), lambda i, j: (0, 0)),
            pl.BlockSpec((H4, 1), lambda i, j: (0, 0)),
            pl.BlockSpec((out_size, H4), lambda i, j: (0, 0)),
            pl.BlockSpec((out_size, 1), lambda i, j: (0, 0)),
        ],
        out_specs=pl.BlockSpec((None, None, BC * out_size, TT),
                               lambda i, j: (i, j, 0, 0)),
        compiler_params=pltpu.CompilerParams(
            dimension_semantics=("parallel", "parallel")),
        cost_estimate=cost,
    )(x, x, w1f, b1t, w2t, b2t, w3t, b3t)

    # (n_tiles, NBC, BC*out, TT) -> (n_out, B, out); drop padded window starts/batch.
    y = y.reshape(n_tiles, NBC, BC, out_size, TT)
    y = jnp.transpose(y, (0, 4, 1, 2, 3)).reshape(n_tiles * TT, NB, out_size)
    return y[:n_out, :B]


def init_params(key, input_size, output_size, window_size, hidden_size=None):
    """Deterministic init matching nn.Linear fan-in bounds.  Weights stored as
    (in, out) with the fc1 input index ordered f*W + w; biases stored as (1, out)."""
    if hidden_size is None:
        hidden_size = input_size * window_size // 2
    h4 = hidden_size // 4
    dims = [
        (window_size * input_size, hidden_size),
        (hidden_size, h4),
        (h4, output_size),
    ]
    params = []
    for fan_in, fan_out in dims:
        key, kw, kb = jax.random.split(key, 3)
        bound = 1.0 / jnp.sqrt(fan_in)
        w = jax.random.uniform(kw, (fan_in, fan_out), jnp.float32, -bound, bound)
        b = jax.random.uniform(kb, (1, fan_out), jnp.float32, -bound, bound)
        params.extend([w, b])
    return tuple(params)


def _reference(inputs, params, window_size):
    """Pure-JAX replica of the eval-mode PyTorch forward (vectorized, HIGHEST prec)."""
    w1, b1, w2, b2, w3, b3 = params
    T, B, F = inputs.shape
    W = window_size
    n = T - W + 1
    hp = jax.lax.Precision.HIGHEST
    # win[t, b, f, w] = inputs[t + w, b, f]  ->  flatten gives index f*W + w
    win = jnp.stack([inputs[w:w + n] for w in range(W)], axis=-1)   # (n, B, F, W)
    x = win.reshape(n, B, F * W)
    h = _leaky_relu(jnp.einsum('nbk,kh->nbh', x, w1, precision=hp) + b1)
    h = _leaky_relu(jnp.einsum('nbk,kh->nbh', h, w2, precision=hp) + b2)
    return jnp.einsum('nbk,kh->nbh', h, w3, precision=hp) + b3


if __name__ == "__main__":
    input_size = 8
    output_size = 4
    window_size = 10
    T, B = 200, 3          # odd batch exercises batch-chunk padding

    key = jax.random.PRNGKey(0)
    key, k_in = jax.random.split(key)
    inputs = jax.random.normal(k_in, (T, B, input_size), jnp.float32)
    params = init_params(key, input_size, output_size, window_size)

    fwd = jax.jit(winfc3_forward,
                  static_argnames=("window_size", "tile_t", "batch_chunk",
                                   "compute_dtype"))

    ref = _reference(inputs, params, window_size)
    n_out = T - window_size + 1

    # f32, default (fat) tile -> single time tile, halo comes from zero padding
    out = jax.block_until_ready(fwd(inputs, params, window_size=window_size))
    assert out.shape == (n_out, B, output_size), out.shape
    assert jnp.allclose(out, ref, atol=5e-5, rtol=5e-5), "f32 mismatch vs reference"

    # f32, small tiles -> exercises the cross-tile halo path (n_tiles = 2)
    out_small = jax.block_until_ready(
        fwd(inputs, params, window_size=window_size, tile_t=128))
    assert jnp.allclose(out_small, ref, atol=5e-5, rtol=5e-5), \
        "f32 (small-tile / halo) mismatch vs reference"

    # bf16 input staging + DMA (weights f32, activations f32 in-kernel)
    out_bf16 = jax.block_until_ready(
        fwd(inputs, params, window_size=window_size, compute_dtype=jnp.bfloat16))
    assert out_bf16.shape == ref.shape, out_bf16.shape
    assert jnp.allclose(out_bf16, ref, atol=5e-2, rtol=5e-2), \
        "bf16-input mismatch vs reference"

    print("KERNEL_OK")
</pallas_src>

<mosaic_0001>
module attributes {stable_mosaic.version = 11 : i64} {
  func.func @kernel(%arg0: i32, %arg1: i32, %arg2: memref<2x8x256xf32, #tpu.memory_space<vmem>>, %arg3: memref<2x8x128xf32, #tpu.memory_space<vmem>>, %arg4: memref<40x80xf32, #tpu.memory_space<vmem>>, %arg5: memref<40x1xf32, #tpu.memory_space<vmem>>, %arg6: memref<10x40xf32, #tpu.memory_space<vmem>>, %arg7: memref<10x1xf32, #tpu.memory_space<vmem>>, %arg8: memref<4x10xf32, #tpu.memory_space<vmem>>, %arg9: memref<4x1xf32, #tpu.memory_space<vmem>>, %arg10: memref<1x1x8x256xf32, #tpu.memory_space<vmem>>) attributes {dimension_semantics = [#tpu.dimension_semantics<parallel>, #tpu.dimension_semantics<parallel>], iteration_bounds = array<i64: 1, 2>, scalar_prefetch = 0 : i64, scratch_operands = 0 : i64, tpu.core_type = #tpu.core_type<tc>, window_params = [{transform_indices = @transform_0, window_bounds = array<i64: 2, 8, 256>}, {transform_indices = @transform_1, window_bounds = array<i64: 2, 8, 128>}, {pipeline_mode = #tpu.pipeline_mode<synchronous>, transform_indices = @transform_2, window_bounds = array<i64: 40, 80>}, {pipeline_mode = #tpu.pipeline_mode<synchronous>, transform_indices = @transform_3, window_bounds = array<i64: 40, 1>}, {pipeline_mode = #tpu.pipeline_mode<synchronous>, transform_indices = @transform_4, window_bounds = array<i64: 10, 40>}, {pipeline_mode = #tpu.pipeline_mode<synchronous>, transform_indices = @transform_5, window_bounds = array<i64: 10, 1>}, {pipeline_mode = #tpu.pipeline_mode<synchronous>, transform_indices = @transform_6, window_bounds = array<i64: 4, 10>}, {pipeline_mode = #tpu.pipeline_mode<synchronous>, transform_indices = @transform_7, window_bounds = array<i64: 4, 1>}, {transform_indices = @transform_8, window_bounds = array<i64: 1, 1, 8, 256>}]} {
    %c0 = arith.constant 0 : index
    %c0_0 = arith.constant 0 : index
    %0 = vector.load %arg4[%c0, %c0_0] : memref<40x80xf32, #tpu.memory_space<vmem>>, vector<40x80xf32>
    %c0_1 = arith.constant 0 : index
    %c0_2 = arith.constant 0 : index
    %1 = vector.load %arg6[%c0_1, %c0_2] : memref<10x40xf32, #tpu.memory_space<vmem>>, vector<10x40xf32>
    %c0_3 = arith.constant 0 : index
    %c0_4 = arith.constant 0 : index
    %2 = vector.load %arg8[%c0_3, %c0_4] : memref<4x10xf32, #tpu.memory_space<vmem>>, vector<4x10xf32>
    %c0_5 = arith.constant 0 : index
    %c0_6 = arith.constant 0 : index
    %3 = vector.load %arg5[%c0_5, %c0_6] : memref<40x1xf32, #tpu.memory_space<vmem>>, vector<40x1xf32>
    %c0_7 = arith.constant 0 : index
    %c0_8 = arith.constant 0 : index
    %4 = vector.load %arg7[%c0_7, %c0_8] : memref<10x1xf32, #tpu.memory_space<vmem>>, vector<10x1xf32>
    %c0_9 = arith.constant 0 : index
    %c0_10 = arith.constant 0 : index
    %5 = vector.load %arg9[%c0_9, %c0_10] : memref<4x1xf32, #tpu.memory_space<vmem>>, vector<4x1xf32>
    %c0_11 = arith.constant 0 : index
    %c0_12 = arith.constant 0 : index
    %c0_13 = arith.constant 0 : index
    %6 = vector.load %arg2[%c0_11, %c0_12, %c0_13] : memref<2x8x256xf32, #tpu.memory_space<vmem>>, vector<1x8x256xf32>
    %7 = vector.shape_cast %6 : vector<1x8x256xf32> to vector<8x256xf32>
    %c0_14 = arith.constant 0 : index
    %c0_15 = arith.constant 0 : index
    %c0_16 = arith.constant 0 : index
    %8 = vector.load %arg3[%c0_14, %c0_15, %c0_16] : memref<2x8x128xf32, #tpu.memory_space<vmem>>, vector<1x8x128xf32>
    %9 = vector.shape_cast %8 : vector<1x8x128xf32> to vector<8x128xf32>
    %10 = tpu.concatenate %7, %9 in 1 : vector<8x256xf32>, vector<8x128xf32> -> vector<8x384xf32>
    %11 = vector.extract_strided_slice %10 {offsets = [0, 0], sizes = [8, 256], strides = [1, 1]} : vector<8x384xf32> to vector<8x256xf32>
    %12 = vector.extract_strided_slice %10 {offsets = [0, 1], sizes = [8, 256], strides = [1, 1]} : vector<8x384xf32> to vector<8x256xf32>
    %13 = vector.extract_strided_slice %10 {offsets = [0, 2], sizes = [8, 256], strides = [1, 1]} : vector<8x384xf32> to vector<8x256xf32>
    %14 = vector.extract_strided_slice %10 {offsets = [0, 3], sizes = [8, 256], strides = [1, 1]} : vector<8x384xf32> to vector<8x256xf32>
    %15 = vector.extract_strided_slice %10 {offsets = [0, 4], sizes = [8, 256], strides = [1, 1]} : vector<8x384xf32> to vector<8x256xf32>
    %16 = vector.extract_strided_slice %10 {offsets = [0, 5], sizes = [8, 256], strides = [1, 1]} : vector<8x384xf32> to vector<8x256xf32>
    %17 = vector.extract_strided_slice %10 {offsets = [0, 6], sizes = [8, 256], strides = [1, 1]} : vector<8x384xf32> to vector<8x256xf32>
    %18 = vector.extract_strided_slice %10 {offsets = [0, 7], sizes = [8, 256], strides = [1, 1]} : vector<8x384xf32> to vector<8x256xf32>
    %19 = vector.extract_strided_slice %10 {offsets = [0, 8], sizes = [8, 256], strides = [1, 1]} : vector<8x384xf32> to vector<8x256xf32>
    %20 = vector.extract_strided_slice %10 {offsets = [0, 9], sizes = [8, 256], strides = [1, 1]} : vector<8x384xf32> to vector<8x256xf32>
    %21 = tpu.concatenate %11, %12, %13, %14, %15, %16, %17, %18, %19, %20 in 0 : vector<8x256xf32>, vector<8x256xf32>, vector<8x256xf32>, vector<8x256xf32>, vector<8x256xf32>, vector<8x256xf32>, vector<8x256xf32>, vector<8x256xf32>, vector<8x256xf32>, vector<8x256xf32> -> vector<80x256xf32>
    %cst = arith.constant dense<0.000000e+00> : vector<40x256xf32>
    %22 = tpu.matmul %0, %21, %cst {dimension_numbers = #tpu.dot_dimension_numbers<[1], [0], [0], [1], [0, 0, 1, 1], [], []>, precision = #tpu.contract_precision<fp32>} : vector<40x80xf32>, vector<80x256xf32>, vector<40x256xf32> -> vector<40x256xf32>
    %23 = vector.broadcast %3 : vector<40x1xf32> to vector<40x256xf32>
    %24 = arith.addf %22, %23 : vector<40x256xf32>
    %cst_17 = arith.constant 0.000000e+00 : f32
    %25 = vector.broadcast %cst_17 : f32 to vector<40x256xf32>
    %26 = arith.cmpf oge, %24, %25 : vector<40x256xf32>
    %cst_18 = arith.constant 0.00999999977 : f32
    %27 = vector.broadcast %cst_18 : f32 to vector<40x256xf32>
    %28 = arith.mulf %27, %24 : vector<40x256xf32>
    %29 = arith.select %26, %24, %28 : vector<40x256xi1>, vector<40x256xf32>
    %cst_19 = arith.constant dense<0.000000e+00> : vector<10x256xf32>
    %30 = tpu.matmul %1, %29, %cst_19 {dimension_numbers = #tpu.dot_dimension_numbers<[1], [0], [0], [1], [0, 0, 1, 1], [], []>, precision = #tpu.contract_precision<fp32>} : vector<10x40xf32>, vector<40x256xf32>, vector<10x256xf32> -> vector<10x256xf32>
    %31 = vector.broadcast %4 : vector<10x1xf32> to vector<10x256xf32>
    %32 = arith.addf %30, %31 : vector<10x256xf32>
    %cst_20 = arith.constant 0.000000e+00 : f32
    %33 = vector.broadcast %cst_20 : f32 to vector<10x256xf32>
    %34 = arith.cmpf oge, %32, %33 : vector<10x256xf32>
    %cst_21 = arith.constant 0.00999999977 : f32
    %35 = vector.broadcast %cst_21 : f32 to vector<10x256xf32>
    %36 = arith.mulf %35, %32 : vector<10x256xf32>
    %37 = arith.select %34, %32, %36 : vector<10x256xi1>, vector<10x256xf32>
    %cst_22 = arith.constant dense<0.000000e+00> : vector<4x256xf32>
    %38 = tpu.matmul %2, %37, %cst_22 {dimension_numbers = #tpu.dot_dimension_numbers<[1], [0], [0], [1], [0, 0, 1, 1], [], []>, precision = #tpu.contract_precision<fp32>} : vector<4x10xf32>, vector<10x256xf32>, vector<4x256xf32> -> vector<4x256xf32>
    %39 = vector.broadcast %5 : vector<4x1xf32> to vector<4x256xf32>
    %40 = arith.addf %38, %39 : vector<4x256xf32>
    %c0_23 = arith.constant 0 : index
    %c0_24 = arith.constant 0 : index
    %c0_25 = arith.constant 0 : index
    %c0_26 = arith.constant 0 : index
    %41 = vector.load %arg10[%c0_23, %c0_24, %c0_25, %c0_26] : memref<1x1x8x256xf32, #tpu.memory_space<vmem>>, vector<1x1x4x256xf32>
    %42 = vector.shape_cast %41 : vector<1x1x4x256xf32> to vector<4x256xf32>
    %43 = vector.shape_cast %40 : vector<4x256xf32> to vector<1x1x4x256xf32>
    tpu.vector_store %arg10[%c0_23, %c0_24, %c0_25, %c0_26], %43 {strides = array<i32>} : memref<1x1x8x256xf32, #tpu.memory_space<vmem>>, vector<1x1x4x256xf32>,
    %c1 = arith.constant 1 : index
    %c0_27 = arith.constant 0 : index
    %c0_28 = arith.constant 0 : index
    %44 = vector.load %arg2[%c1, %c0_27, %c0_28] : memref<2x8x256xf32, #tpu.memory_space<vmem>>, vector<1x8x256xf32>
    %45 = vector.shape_cast %44 : vector<1x8x256xf32> to vector<8x256xf32>
    %c1_29 = arith.constant 1 : index
    %c0_30 = arith.constant 0 : index
    %c0_31 = arith.constant 0 : index
    %46 = vector.load %arg3[%c1_29, %c0_30, %c0_31] : memref<2x8x128xf32, #tpu.memory_space<vmem>>, vector<1x8x128xf32>
    %47 = vector.shape_cast %46 : vector<1x8x128xf32> to vector<8x128xf32>
    %48 = tpu.concatenate %45, %47 in 1 : vector<8x256xf32>, vector<8x128xf32> -> vector<8x384xf32>
    %49 = vector.extract_strided_slice %48 {offsets = [0, 0], sizes = [8, 256], strides = [1, 1]} : vector<8x384xf32> to vector<8x256xf32>
    %50 = vector.extract_strided_slice %48 {offsets = [0, 1], sizes = [8, 256], strides = [1, 1]} : vector<8x384xf32> to vector<8x256xf32>
    %51 = vector.extract_strided_slice %48 {offsets = [0, 2], sizes = [8, 256], strides = [1, 1]} : vector<8x384xf32> to vector<8x256xf32>
    %52 = vector.extract_strided_slice %48 {offsets = [0, 3], sizes = [8, 256], strides = [1, 1]} : vector<8x384xf32> to vector<8x256xf32>
    %53 = vector.extract_strided_slice %48 {offsets = [0, 4], sizes = [8, 256], strides = [1, 1]} : vector<8x384xf32> to vector<8x256xf32>
    %54 = vector.extract_strided_slice %48 {offsets = [0, 5], sizes = [8, 256], strides = [1, 1]} : vector<8x384xf32> to vector<8x256xf32>
    %55 = vector.extract_strided_slice %48 {offsets = [0, 6], sizes = [8, 256], strides = [1, 1]} : vector<8x384xf32> to vector<8x256xf32>
    %56 = vector.extract_strided_slice %48 {offsets = [0, 7], sizes = [8, 256], strides = [1, 1]} : vector<8x384xf32> to vector<8x256xf32>
    %57 = vector.extract_strided_slice %48 {offsets = [0, 8], sizes = [8, 256], strides = [1, 1]} : vector<8x384xf32> to vector<8x256xf32>
    %58 = vector.extract_strided_slice %48 {offsets = [0, 9], sizes = [8, 256], strides = [1, 1]} : vector<8x384xf32> to vector<8x256xf32>
    %59 = tpu.concatenate %49, %50, %51, %52, %53, %54, %55, %56, %57, %58 in 0 : vector<8x256xf32>, vector<8x256xf32>, vector<8x256xf32>, vector<8x256xf32>, vector<8x256xf32>, vector<8x256xf32>, vector<8x256xf32>, vector<8x256xf32>, vector<8x256xf32>, vector<8x256xf32> -> vector<80x256xf32>
    %cst_32 = arith.constant dense<0.000000e+00> : vector<40x256xf32>
    %60 = tpu.matmul %0, %59, %cst_32 {dimension_numbers = #tpu.dot_dimension_numbers<[1], [0], [0], [1], [0, 0, 1, 1], [], []>, precision = #tpu.contract_precision<fp32>} : vector<40x80xf32>, vector<80x256xf32>, vector<40x256xf32> -> vector<40x256xf32>
    %61 = vector.broadcast %3 : vector<40x1xf32> to vector<40x256xf32>
    %62 = arith.addf %60, %61 : vector<40x256xf32>
    %cst_33 = arith.constant 0.000000e+00 : f32
    %63 = vector.broadcast %cst_33 : f32 to vector<40x256xf32>
    %64 = arith.cmpf oge, %62, %63 : vector<40x256xf32>
    %cst_34 = arith.constant 0.00999999977 : f32
    %65 = vector.broadcast %cst_34 : f32 to vector<40x256xf32>
    %66 = arith.mulf %65, %62 : vector<40x256xf32>
    %67 = arith.select %64, %62, %66 : vector<40x256xi1>, vector<40x256xf32>
    %cst_35 = arith.constant dense<0.000000e+00> : vector<10x256xf32>
    %68 = tpu.matmul %1, %67, %cst_35 {dimension_numbers = #tpu.dot_dimension_numbers<[1], [0], [0], [1], [0, 0, 1, 1], [], []>, precision = #tpu.contract_precision<fp32>} : vector<10x40xf32>, vector<40x256xf32>, vector<10x256xf32> -> vector<10x256xf32>
    %69 = vector.broadcast %4 : vector<10x1xf32> to vector<10x256xf32>
    %70 = arith.addf %68, %69 : vector<10x256xf32>
    %cst_36 = arith.constant 0.000000e+00 : f32
    %71 = vector.broadcast %cst_36 : f32 to vector<10x256xf32>
    %72 = arith.cmpf oge, %70, %71 : vector<10x256xf32>
    %cst_37 = arith.constant 0.00999999977 : f32
    %73 = vector.broadcast %cst_37 : f32 to vector<10x256xf32>
    %74 = arith.mulf %73, %70 : vector<10x256xf32>
    %75 = arith.select %72, %70, %74 : vector<10x256xi1>, vector<10x256xf32>
    %cst_38 = arith.constant dense<0.000000e+00> : vector<4x256xf32>
    %76 = tpu.matmul %2, %75, %cst_38 {dimension_numbers = #tpu.dot_dimension_numbers<[1], [0], [0], [1], [0, 0, 1, 1], [], []>, precision = #tpu.contract_precision<fp32>} : vector<4x10xf32>, vector<10x256xf32>, vector<4x256xf32> -> vector<4x256xf32>
    %77 = vector.broadcast %5 : vector<4x1xf32> to vector<4x256xf32>
    %78 = arith.addf %76, %77 : vector<4x256xf32>
    %c0_39 = arith.constant 0 : index
    %c0_40 = arith.constant 0 : index
    %c4 = arith.constant 4 : index
    %c0_41 = arith.constant 0 : index
    %79 = vector.load %arg10[%c0_39, %c0_40, %c4, %c0_41] : memref<1x1x8x256xf32, #tpu.memory_space<vmem>>, vector<1x1x4x256xf32>
    %80 = vector.shape_cast %79 : vector<1x1x4x256xf32> to vector<4x256xf32>
    %81 = vector.shape_cast %78 : vector<4x256xf32> to vector<1x1x4x256xf32>
    tpu.vector_store %arg10[%c0_39, %c0_40, %c4, %c0_41], %81 {strides = array<i32>} : memref<1x1x8x256xf32, #tpu.memory_space<vmem>>, vector<1x1x4x256xf32>,
    return
  }
  func.func @transform_0(%arg0: i32, %arg1: i32) -> (i32, i32, i32) {
    %c0_i32 = arith.constant 0 : i32
    %c0_i32_0 = arith.constant 0 : i32
    return %arg1, %c0_i32, %arg0 : i32, i32, i32
  }
  func.func @transform_1(%arg0: i32, %arg1: i32) -> (i32, i32, i32) {
    %c1_i32 = arith.constant 1 : i32
    %0 = arith.addi %arg0, %c1_i32 : i32
    %c2_i32 = arith.constant 2 : i32
    %1 = arith.muli %0, %c2_i32 : i32
    %c0_i32 = arith.constant 0 : i32
    %c0_i32_0 = arith.constant 0 : i32
    return %arg1, %c0_i32, %1 : i32, i32, i32
  }
  func.func @transform_2(%arg0: i32, %arg1: i32) -> (i32, i32) {
    %c0_i32 = arith.constant 0 : i32
    %c0_i32_0 = arith.constant 0 : i32
    %c0_i32_1 = arith.constant 0 : i32
    return %c0_i32, %c0_i32_0 : i32, i32
  }
  func.func @transform_3(%arg0: i32, %arg1: i32) -> (i32, i32) {
    %c0_i32 = arith.constant 0 : i32
    %c0_i32_0 = arith.constant 0 : i32
    %c0_i32_1 = arith.constant 0 : i32
    return %c0_i32, %c0_i32_0 : i32, i32
  }
  func.func @transform_4(%arg0: i32, %arg1: i32) -> (i32, i32) {
    %c0_i32 = arith.constant 0 : i32
    %c0_i32_0 = arith.constant 0 : i32
    %c0_i32_1 = arith.constant 0 : i32
    return %c0_i32, %c0_i32_0 : i32, i32
  }
  func.func @transform_5(%arg0: i32, %arg1: i32) -> (i32, i32) {
    %c0_i32 = arith.constant 0 : i32
    %c0_i32_0 = arith.constant 0 : i32
    %c0_i32_1 = arith.constant 0 : i32
    return %c0_i32, %c0_i32_0 : i32, i32
  }
  func.func @transform_6(%arg0: i32, %arg1: i32) -> (i32, i32) {
    %c0_i32 = arith.constant 0 : i32
    %c0_i32_0 = arith.constant 0 : i32
    %c0_i32_1 = arith.constant 0 : i32
    return %c0_i32, %c0_i32_0 : i32, i32
  }
  func.func @transform_7(%arg0: i32, %arg1: i32) -> (i32, i32) {
    %c0_i32 = arith.constant 0 : i32
    %c0_i32_0 = arith.constant 0 : i32
    %c0_i32_1 = arith.constant 0 : i32
    return %c0_i32, %c0_i32_0 : i32, i32
  }
  func.func @transform_8(%arg0: i32, %arg1: i32) -> (i32, i32, i32, i32) {
    %c0_i32 = arith.constant 0 : i32
    %c0_i32_0 = arith.constant 0 : i32
    %c0_i32_1 = arith.constant 0 : i32
    return %arg0, %arg1, %c0_i32, %c0_i32_0 : i32, i32, i32, i32
  }
}

</mosaic_0001>

<llo_original>
// kernel: winfc3_forward.1
$region0: #{winfc3_forward.1}
  #allocation0 [shape = 'u32[]', space=smem, size = 0x4, offset = 0x4, fixed_abs, tag = 'smem constant byte address 0x4 - core index']
  #allocation1 [shape = 'u32[144,128]{1,0:T(1,128)}', space=vmem, size = 0x12000, scoped, tag = 'internal scratch']
  %s0 = inlined_call_operand.vmem [shape: f32[4,8,384], index: 0, kind: input, shape index: {}, may-alias: {0,1}]
  %s1 = inlined_call_operand.vmem [shape: f32[4,8,384], index: 1, kind: input, shape index: {}, may-alias: {0,1}]
  %s2 = inlined_call_operand.vmem [shape: f32[40,80], index: 2, kind: input, shape index: {}]
  %s3 = inlined_call_operand.vmem [shape: f32[40,1], index: 3, kind: input, shape index: {}]
  %s4 = inlined_call_operand.vmem [shape: f32[10,40], index: 4, kind: input, shape index: {}]
  %s5 = inlined_call_operand.vmem [shape: f32[10,1], index: 5, kind: input, shape index: {}]
  %s6 = inlined_call_operand.vmem [shape: f32[4,10], index: 6, kind: input, shape index: {}]
  %s7 = inlined_call_operand.vmem [shape: f32[4,1], index: 7, kind: input, shape index: {}]
  %s8 = inlined_call_operand.vmem [shape: f32[1,2,8,256], index: 8, kind: output, shape index: {}]
  %s9 = sld [smem:[#allocation0]]
  $region169: #{winfc3_forward.1} parent=0
    _
  %s11 = ssub.s32 1, %s9
  %s12 = scalar_select 0, %s11, %s9
  $region1: #{winfc3_forward.1} parent=0
    #allocation2 [shape = 'u8[32768]{0}', space=vmem, size = 0x8000, scoped, tag = 'input window, operand 0']
    #allocation3 [shape = 'u8[16384]{0}', space=vmem, size = 0x4000, scoped, tag = 'input window, operand 1']
    loop: start=0, step=1, limit=4
    $region2: #{winfc3_forward.1} parent=1 // loop_pre_header
      _
    $region3: #{winfc3_forward.1} parent=1 // loop_header
      %s14 = sphi 0, %s18
      %p15 = scmp.ge.s32.totalorder %s14, 4
      %s21 = sphi 0, %s33
      %s22 = sphi 0, %s29
      %s23 = sphi 0, %s21
      %s24 = sphi 0, %s22
      %s25 = sphi 0, %s23
      %s26 = sphi 0, %s24
      %s38 = sphi 0, %s40
      %s41 = sphi 0, %s38
      %s42 = sphi 0, %s41
      %s58 = sphi 0, %s42
      %s70 = sphi 0, %s72
      %s73 = sphi 0, %s70
      %s74 = sphi 0, %s73
      %s90 = sphi 0, %s74
      %s94 = sphi 0, %s94
      %s96 = sphi 0, %s94
      %s97 = sphi 0, %s96
      %s111 = sphi 0, %s97
      %s115 = sphi 0, %s115
      %s117 = sphi 0, %s115
      %s118 = sphi 0, %s117
      %s132 = sphi 0, %s118
      %s136 = sphi 0, %s136
      %s138 = sphi 0, %s136
      %s139 = sphi 0, %s138
      %s153 = sphi 0, %s139
      %s157 = sphi 0, %s157
      %s159 = sphi 0, %s157
      %s160 = sphi 0, %s159
      %s174 = sphi 0, %s160
      %s178 = sphi 0, %s178
      %s180 = sphi 0, %s178
      %s181 = sphi 0, %s180
      %s195 = sphi 0, %s181
      %s199 = sphi 0, %s199
      %s201 = sphi 0, %s199
      %s202 = sphi 0, %s201
      %s216 = sphi 0, %s202
      %s224 = sphi 0, %s226
      %s227 = sphi 0, %s224
      %s228 = sphi 0, %s227
      %s244 = sphi 0, %s228
    $region4: #{winfc3_forward.1} parent=1 // loop_header_branch
      %17 = sbr.rel (%p15) target = $region8
    $region5: #{winfc3_forward.1} parent=1 // loop_body
      %s19 = ssub.s32 %s14, 1
      %s20 = ssub.s32 %s14, 2
      %s27 = sadd.s32 1, %s22
      %p28 = scmp.ge.s32.totalorder %s27, 2
      %s29 = scalar_select %p28, 0, %s27
      %s30 = sadd.s32 1, %s21
      %s31 = scalar_select %p28, %s30, %s21
      %p32 = scmp.ge.s32.totalorder %s31, 1
      %s33 = scalar_select %p32, 0, %s31
      %s34 = ssub.s32 %s22, %s29
      %s35 = ssub.s32 %s21, %s33
      %s36 = sor.u32 %s34, %s35
      %p37 = scmp.eq.s32.totalorder %s36, 0
      %s39 = sadd.s32 %s38, 1
      %s40 = scalar_select %p37, %s38, %s39
      %p43 = pneg %p37
      %p44 = scmp.eq.s32.totalorder %s14, 1
      %p45 = por %p43, %p44
      %p46 = scmp.ne.s32.totalorder %s38, %s41
      %p47 = scmp.eq.s32.totalorder %s14, 0
      %p48 = por %p46, %p47
      %p49 = scmp.ne.s32.totalorder %s38, %s41
      %p50 = scmp.eq.s32.totalorder %s19, 1
      %p51 = por %p49, %p50
      %p52 = scmp.ne.s32.totalorder %s41, %s42
      %p53 = scmp.eq.s32.totalorder %s19, 0
      %p54 = por %p52, %p53
      %p55 = scmp.ne.s32.totalorder %s41, %s42
      %p56 = scmp.eq.s32.totalorder %s20, 1
      %p57 = por %p55, %p56
      %p59 = scmp.ne.s32.totalorder %s42, %s58
      %p60 = scmp.eq.s32.totalorder %s20, 0
      %p61 = por %p59, %p60
      %s62 = sadd.s32 %s21, 1
      %s63 = smul.u32 %s62, 2
      %s64 = sadd.s32 %s33, 1
      %s65 = smul.u32 %s64, 2
      %s66 = ssub.s32 %s22, %s29
      %s67 = ssub.s32 %s63, %s65
      %s68 = sor.u32 %s66, %s67
      %p69 = scmp.eq.s32.totalorder %s68, 0
      %s71 = sadd.s32 %s70, 1
      %s72 = scalar_select %p69, %s70, %s71
      %p75 = pneg %p69
      %p76 = scmp.eq.s32.totalorder %s14, 1
      %p77 = por %p75, %p76
      %p78 = scmp.ne.s32.totalorder %s70, %s73
      %p79 = scmp.eq.s32.totalorder %s14, 0
      %p80 = por %p78, %p79
      %p81 = scmp.ne.s32.totalorder %s70, %s73
      %p82 = scmp.eq.s32.totalorder %s19, 1
      %p83 = por %p81, %p82
      %p84 = scmp.ne.s32.totalorder %s73, %s74
      %p85 = scmp.eq.s32.totalorder %s19, 0
      %p86 = por %p84, %p85
      %p87 = scmp.ne.s32.totalorder %s73, %s74
      %p88 = scmp.eq.s32.totalorder %s20, 1
      %p89 = por %p87, %p88
      %p91 = scmp.ne.s32.totalorder %s74, %s90
      %p92 = scmp.eq.s32.totalorder %s20, 0
      %p93 = por %p91, %p92
      %s95 = sadd.s32 %s94, 1
      %p98 = scmp.eq.s32.totalorder %s14, 1
      %p99 = scmp.ne.s32.totalorder %s94, %s96
      %p100 = scmp.eq.s32.totalorder %s14, 0
      %p101 = por %p99, %p100
      %p102 = scmp.ne.s32.totalorder %s94, %s96
      %p103 = scmp.eq.s32.totalorder %s19, 1
      %p104 = por %p102, %p103
      %p105 = scmp.ne.s32.totalorder %s96, %s97
      %p106 = scmp.eq.s32.totalorder %s19, 0
      %p107 = por %p105, %p106
      %p108 = scmp.ne.s32.totalorder %s96, %s97
      %p109 = scmp.eq.s32.totalorder %s20, 1
      %p110 = por %p108, %p109
      %p112 = scmp.ne.s32.totalorder %s97, %s111
      %p113 = scmp.eq.s32.totalorder %s20, 0
      %p114 = por %p112, %p113
      %s116 = sadd.s32 %s115, 1
      %p119 = scmp.eq.s32.totalorder %s14, 1
      %p120 = scmp.ne.s32.totalorder %s115, %s117
      %p121 = scmp.eq.s32.totalorder %s14, 0
      %p122 = por %p120, %p121
      %p123 = scmp.ne.s32.totalorder %s115, %s117
      %p124 = scmp.eq.s32.totalorder %s19, 1
      %p125 = por %p123, %p124
      %p126 = scmp.ne.s32.totalorder %s117, %s118
      %p127 = scmp.eq.s32.totalorder %s19, 0
      %p128 = por %p126, %p127
      %p129 = scmp.ne.s32.totalorder %s117, %s118
      %p130 = scmp.eq.s32.totalorder %s20, 1
      %p131 = por %p129, %p130
      %p133 = scmp.ne.s32.totalorder %s118, %s132
      %p134 = scmp.eq.s32.totalorder %s20, 0
      %p135 = por %p133, %p134
      %s137 = sadd.s32 %s136, 1
      %p140 = scmp.eq.s32.totalorder %s14, 1
      %p141 = scmp.ne.s32.totalorder %s136, %s138
      %p142 = scmp.eq.s32.totalorder %s14, 0
      %p143 = por %p141, %p142
      %p144 = scmp.ne.s32.totalorder %s136, %s138
      %p145 = scmp.eq.s32.totalorder %s19, 1
      %p146 = por %p144, %p145
      %p147 = scmp.ne.s32.totalorder %s138, %s139
      %p148 = scmp.eq.s32.totalorder %s19, 0
      %p149 = por %p147, %p148
      %p150 = scmp.ne.s32.totalorder %s138, %s139
      %p151 = scmp.eq.s32.totalorder %s20, 1
      %p152 = por %p150, %p151
      %p154 = scmp.ne.s32.totalorder %s139, %s153
      %p155 = scmp.eq.s32.totalorder %s20, 0
      %p156 = por %p154, %p155
      %s158 = sadd.s32 %s157, 1
      %p161 = scmp.eq.s32.totalorder %s14, 1
      %p162 = scmp.ne.s32.totalorder %s157, %s159
      %p163 = scmp.eq.s32.totalorder %s14, 0
      %p164 = por %p162, %p163
      %p165 = scmp.ne.s32.totalorder %s157, %s159
      %p166 = scmp.eq.s32.totalorder %s19, 1
      %p167 = por %p165, %p166
      %p168 = scmp.ne.s32.totalorder %s159, %s160
      %p169 = scmp.eq.s32.totalorder %s19, 0
      %p170 = por %p168, %p169
      %p171 = scmp.ne.s32.totalorder %s159, %s160
      %p172 = scmp.eq.s32.totalorder %s20, 1
      %p173 = por %p171, %p172
      %p175 = scmp.ne.s32.totalorder %s160, %s174
      %p176 = scmp.eq.s32.totalorder %s20, 0
      %p177 = por %p175, %p176
      %s179 = sadd.s32 %s178, 1
      %p182 = scmp.eq.s32.totalorder %s14, 1
      %p183 = scmp.ne.s32.totalorder %s178, %s180
      %p184 = scmp.eq.s32.totalorder %s14, 0
      %p185 = por %p183, %p184
      %p186 = scmp.ne.s32.totalorder %s178, %s180
      %p187 = scmp.eq.s32.totalorder %s19, 1
      %p188 = por %p186, %p187
      %p189 = scmp.ne.s32.totalorder %s180, %s181
      %p190 = scmp.eq.s32.totalorder %s19, 0
      %p191 = por %p189, %p190
      %p192 = scmp.ne.s32.totalorder %s180, %s181
      %p193 = scmp.eq.s32.totalorder %s20, 1
      %p194 = por %p192, %p193
      %p196 = scmp.ne.s32.totalorder %s181, %s195
      %p197 = scmp.eq.s32.totalorder %s20, 0
      %p198 = por %p196, %p197
      %s200 = sadd.s32 %s199, 1
      %p203 = scmp.eq.s32.totalorder %s14, 1
      %p204 = scmp.ne.s32.totalorder %s199, %s201
      %p205 = scmp.eq.s32.totalorder %s14, 0
      %p206 = por %p204, %p205
      %p207 = scmp.ne.s32.totalorder %s199, %s201
      %p208 = scmp.eq.s32.totalorder %s19, 1
      %p209 = por %p207, %p208
      %p210 = scmp.ne.s32.totalorder %s201, %s202
      %p211 = scmp.eq.s32.totalorder %s19, 0
      %p212 = por %p210, %p211
      %p213 = scmp.ne.s32.totalorder %s201, %s202
      %p214 = scmp.eq.s32.totalorder %s20, 1
      %p215 = por %p213, %p214
      %p217 = scmp.ne.s32.totalorder %s202, %s216
      %p218 = scmp.eq.s32.totalorder %s20, 0
      %p219 = por %p217, %p218
      %s220 = ssub.s32 %s21, %s33
      %s221 = ssub.s32 %s22, %s29
      %s222 = sor.u32 %s220, %s221
      %p223 = scmp.eq.s32.totalorder %s222, 0
      %s225 = sadd.s32 %s224, 1
      %s226 = scalar_select %p223, %s224, %s225
      %p229 = pneg %p223
      %p230 = scmp.eq.s32.totalorder %s14, 1
      %p231 = por %p229, %p230
      %p232 = scmp.ne.s32.totalorder %s224, %s227
      %p233 = scmp.eq.s32.totalorder %s14, 0
      %p234 = por %p232, %p233
      %p235 = scmp.ne.s32.totalorder %s224, %s227
      %p236 = scmp.eq.s32.totalorder %s19, 1
      %p237 = por %p235, %p236
      %p238 = scmp.ne.s32.totalorder %s227, %s228
      %p239 = scmp.eq.s32.totalorder %s19, 0
      %p240 = por %p238, %p239
      %p241 = scmp.ne.s32.totalorder %s227, %s228
      %p242 = scmp.eq.s32.totalorder %s20, 1
      %p243 = por %p241, %p242
      %p245 = scmp.ne.s32.totalorder %s228, %s244
      %p246 = scmp.eq.s32.totalorder %s20, 0
      %p247 = por %p245, %p246
      %p248 = scmp.le.s32.totalorder 1, %s14
      %p249 = scmp.lt.s32.totalorder %s14, 3
      %p250 = pnand %p248, %p249
      %p251 = pneg %p250
      // Predicated region
      $region9: #{winfc3_forward.1} parent=5 // pred_check
        _
      $region10: #{winfc3_forward.1} parent=5 // pred_check_branch
        %253 = sbr.rel (%p250) target = $region12
      $region11: #{winfc3_forward.1} parent=5 // pred_region
        %s254 = ssub.s32 %s14, 1
        // Predicated region
        $region13: #{winfc3_forward.1} parent=11 // pred_check
          %p255 = pneg %p107
        $region14: #{winfc3_forward.1} parent=11 // pred_check_branch
          %257 = sbr.rel (%p255) target = $region16
        $region15: #{winfc3_forward.1} parent=11 // pred_region
          _
        $region16: #{winfc3_forward.1} parent=11 // pred_fallthru
          _
        // Predicated region
        $region17: #{winfc3_forward.1} parent=11 // pred_check
          %p258 = pneg %p128
        $region18: #{winfc3_forward.1} parent=11 // pred_check_branch
          %260 = sbr.rel (%p258) target = $region20
        $region19: #{winfc3_forward.1} parent=11 // pred_region
          _
        $region20: #{winfc3_forward.1} parent=11 // pred_fallthru
          _
        // Predicated region
        $region21: #{winfc3_forward.1} parent=11 // pred_check
          %p261 = pneg %p149
        $region22: #{winfc3_forward.1} parent=11 // pred_check_branch
          %263 = sbr.rel (%p261) target = $region24
        $region23: #{winfc3_forward.1} parent=11 // pred_region
          _
        $region24: #{winfc3_forward.1} parent=11 // pred_fallthru
          _
        // Predicated region
        $region25: #{winfc3_forward.1} parent=11 // pred_check
          %p264 = pneg %p170
        $region26: #{winfc3_forward.1} parent=11 // pred_check_branch
          %266 = sbr.rel (%p264) target = $region28
        $region27: #{winfc3_forward.1} parent=11 // pred_region
          _
        $region28: #{winfc3_forward.1} parent=11 // pred_fallthru
          _
        // Predicated region
        $region29: #{winfc3_forward.1} parent=11 // pred_check
          %p267 = pneg %p191
        $region30: #{winfc3_forward.1} parent=11 // pred_check_branch
          %269 = sbr.rel (%p267) target = $region32
        $region31: #{winfc3_forward.1} parent=11 // pred_region
          _
        $region32: #{winfc3_forward.1} parent=11 // pred_fallthru
          _
        // Predicated region
        $region33: #{winfc3_forward.1} parent=11 // pred_check
          %p270 = pneg %p212
        $region34: #{winfc3_forward.1} parent=11 // pred_check_branch
          %272 = sbr.rel (%p270) target = $region36
        $region35: #{winfc3_forward.1} parent=11 // pred_region
          _
        $region36: #{winfc3_forward.1} parent=11 // pred_fallthru
          _
      $region12: #{winfc3_forward.1} parent=5 // pred_fallthru
        _
      %p273 = scmp.lt.s32.totalorder %s14, 2
      // Predicated region
      $region37: #{winfc3_forward.1} parent=5 // pred_check
        %p274 = pneg %p273
      $region38: #{winfc3_forward.1} parent=5 // pred_check_branch
        %276 = sbr.rel (%p274) target = $region40
      $region39: #{winfc3_forward.1} parent=5 // pred_region
        // Predicated region
        $region41: #{winfc3_forward.1} parent=39 // pred_check
          %p277 = pneg %p48
        $region42: #{winfc3_forward.1} parent=39 // pred_check_branch
          %279 = sbr.rel (%p277) target = $region44
        $region43: #{winfc3_forward.1} parent=39 // pred_region
          %s280 = sand.u32 %s38, 1
          %s281 = sand.u32 %s38, 1
          %s282 = smul.addr %s281, 32
          %s283 = scalar_lea.vmem [#allocation2], %s282
          %s284 = smul.u32 2, %s22
          %s285 = smul.u32 2, %s21
          %s286 = ssub.s32 3, %s285
          %p287 = scmp.lt.s32.totalorder %s286, 2
          %s288 = scalar_select %p287, %s286, 2
          %s289 = smul.u32 256, %s288
          %p290 = scmp.ne.s32.totalorder 0, %s289
          %s291 = smul.addr %s284, 3
          %s292 = sadd.s32 %s285, %s291
          %s293 = smul.addr %s292, 8
          %s294 = scalar_lea.vmem %s0, %s293
          %s295 = smul.u32 %s288, 8
          // Predicated region
          $region45: #{winfc3_forward.1} parent=43 // pred_check
            %p296 = pneg %p290
          $region46: #{winfc3_forward.1} parent=43 // pred_check_branch
            %298 = sbr.rel (%p296) target = $region48
          $region47: #{winfc3_forward.1} parent=43 // pred_region
            %p299 = scmp.lt.u32.totalorder %s295, 8
            %p300 = pneg %p299
            // Predicated region
            $region49: #{winfc3_forward.1} parent=47 // pred_check
              _
            $region50: #{winfc3_forward.1} parent=47 // pred_check_branch
              %302 = sbr.rel (%p299) target = $region52
            $region51: #{winfc3_forward.1} parent=47 // pred_region
              %s320 = sand.u32 %s295, 7
              %p321 = scmp.eq.s32.totalorder %s320, 0
              // Predicated region
              $region64: #{winfc3_forward.1} parent=51 // pred_check
                %p322 = pneg %p321
              $region65: #{winfc3_forward.1} parent=51 // pred_check_branch
                %324 = sbr.rel (%p322) target = $region67
              $region66: #{winfc3_forward.1} parent=51 // pred_region
                %s325 = sshrl.u32 %s295, 3
                %s326 = sshrl.u32 %s325, 5
                // While loop
                $region68: #{winfc3_forward.1} parent=66 // loop_pre_header
                  _
                $region69: #{winfc3_forward.1} parent=66 // loop_header
                  %s330 = sphi 0, %s332
                  %p331 = scmp.ge.s32.totalorder %s330, %s326
                  %s335 = sphi 0, %s468
                  %s336 = sphi %s294, %s471
                  %s337 = sphi %s283, %s472
                $region70: #{winfc3_forward.1} parent=66 // loop_header_branch
                  %334 = sbr.rel (%p331) target = $region74
                $region71: #{winfc3_forward.1} parent=66 // loop_body
                  %v338 = vld [vmem:[%s336] sm:$0xff]
                  %339 = vst [vmem:[%s337] sm:$0xff] %v338
                  %v340 = vld [vmem:[%s336 + $0x8] sm:$0xff]
                  %341 = vst [vmem:[%s337 + $0x8] sm:$0xff] %v340
                  %v342 = vld [vmem:[%s336 + $0x10] sm:$0xff]
                  %343 = vst [vmem:[%s337 + $0x10] sm:$0xff] %v342
                  %v344 = vld [vmem:[%s336 + $0x18] sm:$0xff]
                  %345 = vst [vmem:[%s337 + $0x18] sm:$0xff] %v344
                  %v346 = vld [vmem:[%s336 + $0x20] sm:$0xff]
                  %347 = vst [vmem:[%s337 + $0x20] sm:$0xff] %v346
                  %v348 = vld [vmem:[%s336 + $0x28] sm:$0xff]
                  %349 = vst [vmem:[%s337 + $0x28] sm:$0xff] %v348
                  %v350 = vld [vmem:[%s336 + $0x30] sm:$0xff]
                  %351 = vst [vmem:[%s337 + $0x30] sm:$0xff] %v350
                  %v352 = vld [vmem:[%s336 + $0x38] sm:$0xff]
                  %353 = vst [vmem:[%s337 + $0x38] sm:$0xff] %v352
                  %v354 = vld [vmem:[%s336 + $0x40] sm:$0xff]
                  %355 = vst [vmem:[%s337 + $0x40] sm:$0xff] %v354
                  %v356 = vld [vmem:[%s336 + $0x48] sm:$0xff]
                  %357 = vst [vmem:[%s337 + $0x48] sm:$0xff] %v356
                  %v358 = vld [vmem:[%s336 + $0x50] sm:$0xff]
                  %359 = vst [vmem:[%s337 + $0x50] sm:$0xff] %v358
                  %v360 = vld [vmem:[%s336 + $0x58] sm:$0xff]
                  %361 = vst [vmem:[%s337 + $0x58] sm:$0xff] %v360
                  %v362 = vld [vmem:[%s336 + $0x60] sm:$0xff]
                  %363 = vst [vmem:[%s337 + $0x60] sm:$0xff] %v362
                  %v364 = vld [vmem:[%s336 + $0x68] sm:$0xff]
                  %365 = vst [vmem:[%s337 + $0x68] sm:$0xff] %v364
                  %v366 = vld [vmem:[%s336 + $0x70] sm:$0xff]
                  %367 = vst [vmem:[%s337 + $0x70] sm:$0xff] %v366
                  %v368 = vld [vmem:[%s336 + $0x78] sm:$0xff]
                  %369 = vst [vmem:[%s337 + $0x78] sm:$0xff] %v368
                  %v370 = vld [vmem:[%s336 + $0x80] sm:$0xff]
                  %371 = vst [vmem:[%s337 + $0x80] sm:$0xff] %v370
                  %v372 = vld [vmem:[%s336 + $0x88] sm:$0xff]
                  %373 = vst [vmem:[%s337 + $0x88] sm:$0xff] %v372
                  %v374 = vld [vmem:[%s336 + $0x90] sm:$0xff]
                  %375 = vst [vmem:[%s337 + $0x90] sm:$0xff] %v374
                  %v376 = vld [vmem:[%s336 + $0x98] sm:$0xff]
                  %377 = vst [vmem:[%s337 + $0x98] sm:$0xff] %v376
                  %v378 = vld [vmem:[%s336 + $0xa0] sm:$0xff]
                  %379 = vst [vmem:[%s337 + $0xa0] sm:$0xff] %v378
                  %v380 = vld [vmem:[%s336 + $0xa8] sm:$0xff]
                  %381 = vst [vmem:[%s337 + $0xa8] sm:$0xff] %v380
                  %v382 = vld [vmem:[%s336 + $0xb0] sm:$0xff]
                  %383 = vst [vmem:[%s337 + $0xb0] sm:$0xff] %v382
                  %v384 = vld [vmem:[%s336 + $0xb8] sm:$0xff]
                  %385 = vst [vmem:[%s337 + $0xb8] sm:$0xff] %v384
                  %v386 = vld [vmem:[%s336 + $0xc0] sm:$0xff]
                  %387 = vst [vmem:[%s337 + $0xc0] sm:$0xff] %v386
                  %v388 = vld [vmem:[%s336 + $0xc8] sm:$0xff]
                  %389 = vst [vmem:[%s337 + $0xc8] sm:$0xff] %v388
                  %v390 = vld [vmem:[%s336 + $0xd0] sm:$0xff]
                  %391 = vst [vmem:[%s337 + $0xd0] sm:$0xff] %v390
                  %v392 = vld [vmem:[%s336 + $0xd8] sm:$0xff]
                  %393 = vst [vmem:[%s337 + $0xd8] sm:$0xff] %v392
                  %v394 = vld [vmem:[%s336 + $0xe0] sm:$0xff]
                  %395 = vst [vmem:[%s337 + $0xe0] sm:$0xff] %v394
                  %v396 = vld [vmem:[%s336 + $0xe8] sm:$0xff]
                  %397 = vst [vmem:[%s337 + $0xe8] sm:$0xff] %v396
                  %v398 = vld [vmem:[%s336 + $0xf0] sm:$0xff]
                  %399 = vst [vmem:[%s337 + $0xf0] sm:$0xff] %v398
                  %v400 = vld [vmem:[%s336 + $0xf8] sm:$0xff]
                  %401 = vst [vmem:[%s337 + $0xf8] sm:$0xff] %v400
                  %v402 = vld [vmem:[%s336 + $0x18] sm:$0xff]
                  %403 = vst [vmem:[%s337 + $0x10] sm:$0xff] %v402
                  %v404 = vld [vmem:[%s336 + $0x20] sm:$0xff]
                  %405 = vst [vmem:[%s337 + $0x18] sm:$0xff] %v404
                  %v406 = vld [vmem:[%s336 + $0x28] sm:$0xff]
                  %407 = vst [vmem:[%s337 + $0x20] sm:$0xff] %v406
                  %v408 = vld [vmem:[%s336 + $0x30] sm:$0xff]
                  %409 = vst [vmem:[%s337 + $0x28] sm:$0xff] %v408
                  %v410 = vld [vmem:[%s336 + $0x38] sm:$0xff]
                  %411 = vst [vmem:[%s337 + $0x30] sm:$0xff] %v410
                  %v412 = vld [vmem:[%s336 + $0x40] sm:$0xff]
                  %413 = vst [vmem:[%s337 + $0x38] sm:$0xff] %v412
                  %v414 = vld [vmem:[%s336 + $0x48] sm:$0xff]
                  %415 = vst [vmem:[%s337 + $0x40] sm:$0xff] %v414
                  %v416 = vld [vmem:[%s336 + $0x50] sm:$0xff]
                  %417 = vst [vmem:[%s337 + $0x48] sm:$0xff] %v416
                  %v418 = vld [vmem:[%s336 + $0x58] sm:$0xff]
                  %419 = vst [vmem:[%s337 + $0x50] sm:$0xff] %v418
                  %v420 = vld [vmem:[%s336 + $0x60] sm:$0xff]
                  %421 = vst [vmem:[%s337 + $0x58] sm:$0xff] %v420
                  %v422 = vld [vmem:[%s336 + $0x68] sm:$0xff]
                  %423 = vst [vmem:[%s337 + $0x60] sm:$0xff] %v422
                  %v424 = vld [vmem:[%s336 + $0x70] sm:$0xff]
                  %425 = vst [vmem:[%s337 + $0x68] sm:$0xff] %v424
                  %v426 = vld [vmem:[%s336 + $0x78] sm:$0xff]
                  %427 = vst [vmem:[%s337 + $0x70] sm:$0xff] %v426
                  %v428 = vld [vmem:[%s336 + $0x80] sm:$0xff]
                  %429 = vst [vmem:[%s337 + $0x78] sm:$0xff] %v428
                  %v430 = vld [vmem:[%s336 + $0x88] sm:$0xff]
                  %431 = vst [vmem:[%s337 + $0x80] sm:$0xff] %v430
                  %v432 = vld [vmem:[%s336 + $0x90] sm:$0xff]
                  %433 = vst [vmem:[%s337 + $0x88] sm:$0xff] %v432
                  %v434 = vld [vmem:[%s336 + $0x98] sm:$0xff]
                  %435 = vst [vmem:[%s337 + $0x90] sm:$0xff] %v434
                  %v436 = vld [vmem:[%s336 + $0xa0] sm:$0xff]
                  %437 = vst [vmem:[%s337 + $0x98] sm:$0xff] %v436
                  %v438 = vld [vmem:[%s336 + $0xa8] sm:$0xff]
                  %439 = vst [vmem:[%s337 + $0xa0] sm:$0xff] %v438
                  %v440 = vld [vmem:[%s336 + $0xb0] sm:$0xff]
                  %441 = vst [vmem:[%s337 + $0xa8] sm:$0xff] %v440
                  %v442 = vld [vmem:[%s336 + $0xb8] sm:$0xff]
                  %443 = vst [vmem:[%s337 + $0xb0] sm:$0xff] %v442
                  %v444 = vld [vmem:[%s336 + $0xc0] sm:$0xff]
                  %445 = vst [vmem:[%s337 + $0xb8] sm:$0xff] %v444
                  %v446 = vld [vmem:[%s336 + $0xc8] sm:$0xff]
                  %447 = vst [vmem:[%s337 + $0xc0] sm:$0xff] %v446
                  %v448 = vld [vmem:[%s336 + $0xd0] sm:$0xff]
                  %449 = vst [vmem:[%s337 + $0xc8] sm:$0xff] %v448
                  %v450 = vld [vmem:[%s336 + $0xd8] sm:$0xff]
                  %451 = vst [vmem:[%s337 + $0xd0] sm:$0xff] %v450
                  %v452 = vld [vmem:[%s336 + $0xe0] sm:$0xff]
                  %453 = vst [vmem:[%s337 + $0xd8] sm:$0xff] %v452
                  %v454 = vld [vmem:[%s336 + $0xe8] sm:$0xff]
                  %455 = vst [vmem:[%s337 + $0xe0] sm:$0xff] %v454
                  %v456 = vld [vmem:[%s336 + $0xf0] sm:$0xff]
                  %457 = vst [vmem:[%s337 + $0xe8] sm:$0xff] %v456
                  %v458 = vld [vmem:[%s336 + $0xf8] sm:$0xff]
                  %459 = vst [vmem:[%s337 + $0xf0] sm:$0xff] %v458
                  %v460 = vld [vmem:[%s336 + $0x100] sm:$0xff]
                  %461 = vst [vmem:[%s337 + $0xf8] sm:$0xff] %v460
                  %v462 = vld [vmem:[%s336 + $0x108] sm:$0xff]
                  %463 = vst [vmem:[%s337 + $0x100] sm:$0xff] %v462
                  %v464 = vld [vmem:[%s336 + $0x110] sm:$0xff]
                  %465 = vst [vmem:[%s337 + $0x108] sm:$0xff] %v464
                  %s466 = sadd.s32 1, %s335
                  %p467 = scmp.ge.s32.totalorder %s466, %s326
                  %s468 = scalar_select %p467, 0, %s466
                  %s469 = smul.u32 %s468, 256
                  %s470 = smul.u32 %s468, 256
                  %s471 = scalar_lea.vmem %s294, %s469
                  %s472 = scalar_lea.vmem %s283, %s470 [#allocation2]
                $region72: #{winfc3_forward.1} parent=66 // loop_footer
                  %s332 = sadd.s32 %s330, 1
                $region73: #{winfc3_forward.1} parent=66 // loop_footer_branch
                  %329 = sbr.rel target = $region69
                $region74: #{winfc3_forward.1} parent=66 // loop_exit
                  _
                %s473 = sshrl.u32 %s325, 5
                %s474 = sand.u32 %s325, 31
                %s475 = smul.u32 %s473, 32
                %s476 = smul.u32 128, %s475
                %s477 = sshra.s32 %s476, 4
                %s478 = scalar_lea.vmem %s294, %s477
                %s479 = smul.u32 128, %s475
                %s480 = sshra.s32 %s479, 4
                %s481 = scalar_lea.vmem %s283, %s480 [#allocation2]
                // While loop
                $region75: #{winfc3_forward.1} parent=66 // loop_pre_header
                  _
                $region76: #{winfc3_forward.1} parent=66 // loop_header
                  %s485 = sphi 0, %s487
                  %p486 = scmp.ge.s32.totalorder %s485, %s474
                  %s490 = sphi 0, %s499
                  %s491 = sphi %s478, %s502
                  %s492 = sphi %s481, %s503
                $region77: #{winfc3_forward.1} parent=66 // loop_header_branch
                  %489 = sbr.rel (%p486) target = $region81
                $region78: #{winfc3_forward.1} parent=66 // loop_body
                  %v493 = vld [vmem:[%s491] sm:$0xff]
                  %494 = vst [vmem:[%s492] sm:$0xff] %v493
                  %v495 = vld [vmem:[%s491 + $0x18] sm:$0xff]
                  %496 = vst [vmem:[%s492 + $0x10] sm:$0xff] %v495
                  %s497 = sadd.s32 1, %s490
                  %p498 = scmp.ge.s32.totalorder %s497, %s474
                  %s499 = scalar_select %p498, 0, %s497
                  %s500 = smul.u32 %s499, 8
                  %s501 = smul.u32 %s499, 8
                  %s502 = scalar_lea.vmem %s478, %s500
                  %s503 = scalar_lea.vmem %s481, %s501 [#allocation2]
                $region79: #{winfc3_forward.1} parent=66 // loop_footer
                  %s487 = sadd.s32 %s485, 1
                $region80: #{winfc3_forward.1} parent=66 // loop_footer_branch
                  %484 = sbr.rel target = $region76
                $region81: #{winfc3_forward.1} parent=66 // loop_exit
                  _
              $region67: #{winfc3_forward.1} parent=51 // pred_fallthru
                _
              %p504 = pneg %p321
              // Predicated region
              $region82: #{winfc3_forward.1} parent=51 // pred_check
                _
              $region83: #{winfc3_forward.1} parent=51 // pred_check_branch
                %506 = sbr.rel (%p321) target = $region85
              $region84: #{winfc3_forward.1} parent=51 // pred_region
                %s507 = sand.u32 %s295, 7
                %s508 = ssub.s32 %s295, %s507
                %s509 = scalar_lea.vmem %s294, %s508
                %s510 = ssub.s32 %s295, %s507
                %s511 = scalar_lea.vmem %s283, %s510 [#allocation2]
                %s512 = sshrl.u32 %s295, 3
                %s513 = sshrl.u32 %s512, 5
                // While loop
                $region86: #{winfc3_forward.1} parent=84 // loop_pre_header
                  _
                $region87: #{winfc3_forward.1} parent=84 // loop_header
                  %s517 = sphi 0, %s519
                  %p518 = scmp.ge.s32.totalorder %s517, %s513
                  %s522 = sphi 0, %s655
                  %s523 = sphi %s294, %s658
                  %s524 = sphi %s283, %s659
                $region88: #{winfc3_forward.1} parent=84 // loop_header_branch
                  %521 = sbr.rel (%p518) target = $region92
                $region89: #{winfc3_forward.1} parent=84 // loop_body
                  %v525 = vld [vmem:[%s523] sm:$0xff]
                  %526 = vst [vmem:[%s524] sm:$0xff] %v525
                  %v527 = vld [vmem:[%s523 + $0x8] sm:$0xff]
                  %528 = vst [vmem:[%s524 + $0x8] sm:$0xff] %v527
                  %v529 = vld [vmem:[%s523 + $0x10] sm:$0xff]
                  %530 = vst [vmem:[%s524 + $0x10] sm:$0xff] %v529
                  %v531 = vld [vmem:[%s523 + $0x18] sm:$0xff]
                  %532 = vst [vmem:[%s524 + $0x18] sm:$0xff] %v531
                  %v533 = vld [vmem:[%s523 + $0x20] sm:$0xff]
                  %534 = vst [vmem:[%s524 + $0x20] sm:$0xff] %v533
                  %v535 = vld [vmem:[%s523 + $0x28] sm:$0xff]
                  %536 = vst [vmem:[%s524 + $0x28] sm:$0xff] %v535
                  %v537 = vld [vmem:[%s523 + $0x30] sm:$0xff]
                  %538 = vst [vmem:[%s524 + $0x30] sm:$0xff] %v537
                  %v539 = vld [vmem:[%s523 + $0x38] sm:$0xff]
                  %540 = vst [vmem:[%s524 + $0x38] sm:$0xff] %v539
                  %v541 = vld [vmem:[%s523 + $0x40] sm:$0xff]
                  %542 = vst [vmem:[%s524 + $0x40] sm:$0xff] %v541
                  %v543 = vld [vmem:[%s523 + $0x48] sm:$0xff]
                  %544 = vst [vmem:[%s524 + $0x48] sm:$0xff] %v543
                  %v545 = vld [vmem:[%s523 + $0x50] sm:$0xff]
                  %546 = vst [vmem:[%s524 + $0x50] sm:$0xff] %v545
                  %v547 = vld [vmem:[%s523 + $0x58] sm:$0xff]
                  %548 = vst [vmem:[%s524 + $0x58] sm:$0xff] %v547
                  %v549 = vld [vmem:[%s523 + $0x60] sm:$0xff]
                  %550 = vst [vmem:[%s524 + $0x60] sm:$0xff] %v549
                  %v551 = vld [vmem:[%s523 + $0x68] sm:$0xff]
                  %552 = vst [vmem:[%s524 + $0x68] sm:$0xff] %v551
                  %v553 = vld [vmem:[%s523 + $0x70] sm:$0xff]
                  %554 = vst [vmem:[%s524 + $0x70] sm:$0xff] %v553
                  %v555 = vld [vmem:[%s523 + $0x78] sm:$0xff]
                  %556 = vst [vmem:[%s524 + $0x78] sm:$0xff] %v555
                  %v557 = vld [vmem:[%s523 + $0x80] sm:$0xff]
                  %558 = vst [vmem:[%s524 + $0x80] sm:$0xff] %v557
                  %v559 = vld [vmem:[%s523 + $0x88] sm:$0xff]
                  %560 = vst [vmem:[%s524 + $0x88] sm:$0xff] %v559
                  %v561 = vld [vmem:[%s523 + $0x90] sm:$0xff]
                  %562 = vst [vmem:[%s524 + $0x90] sm:$0xff] %v561
                  %v563 = vld [vmem:[%s523 + $0x98] sm:$0xff]
                  %564 = vst [vmem:[%s524 + $0x98] sm:$0xff] %v563
                  %v565 = vld [vmem:[%s523 + $0xa0] sm:$0xff]
                  %566 = vst [vmem:[%s524 + $0xa0] sm:$0xff] %v565
                  %v567 = vld [vmem:[%s523 + $0xa8] sm:$0xff]
                  %568 = vst [vmem:[%s524 + $0xa8] sm:$0xff] %v567
                  %v569 = vld [vmem:[%s523 + $0xb0] sm:$0xff]
                  %570 = vst [vmem:[%s524 + $0xb0] sm:$0xff] %v569
                  %v571 = vld [vmem:[%s523 + $0xb8] sm:$0xff]
                  %572 = vst [vmem:[%s524 + $0xb8] sm:$0xff] %v571
                  %v573 = vld [vmem:[%s523 + $0xc0] sm:$0xff]
                  %574 = vst [vmem:[%s524 + $0xc0] sm:$0xff] %v573
                  %v575 = vld [vmem:[%s523 + $0xc8] sm:$0xff]
                  %576 = vst [vmem:[%s524 + $0xc8] sm:$0xff] %v575
                  %v577 = vld [vmem:[%s523 + $0xd0] sm:$0xff]
                  %578 = vst [vmem:[%s524 + $0xd0] sm:$0xff] %v577
                  %v579 = vld [vmem:[%s523 + $0xd8] sm:$0xff]
                  %580 = vst [vmem:[%s524 + $0xd8] sm:$0xff] %v579
                  %v581 = vld [vmem:[%s523 + $0xe0] sm:$0xff]
                  %582 = vst [vmem:[%s524 + $0xe0] sm:$0xff] %v581
                  %v583 = vld [vmem:[%s523 + $0xe8] sm:$0xff]
                  %584 = vst [vmem:[%s524 + $0xe8] sm:$0xff] %v583
                  %v585 = vld [vmem:[%s523 + $0xf0] sm:$0xff]
                  %586 = vst [vmem:[%s524 + $0xf0] sm:$0xff] %v585
                  %v587 = vld [vmem:[%s523 + $0xf8] sm:$0xff]
                  %588 = vst [vmem:[%s524 + $0xf8] sm:$0xff] %v587
                  %v589 = vld [vmem:[%s523 + $0x18] sm:$0xff]
                  %590 = vst [vmem:[%s524 + $0x10] sm:$0xff] %v589
                  %v591 = vld [vmem:[%s523 + $0x20] sm:$0xff]
                  %592 = vst [vmem:[%s524 + $0x18] sm:$0xff] %v591
                  %v593 = vld [vmem:[%s523 + $0x28] sm:$0xff]
                  %594 = vst [vmem:[%s524 + $0x20] sm:$0xff] %v593
                  %v595 = vld [vmem:[%s523 + $0x30] sm:$0xff]
                  %596 = vst [vmem:[%s524 + $0x28] sm:$0xff] %v595
                  %v597 = vld [vmem:[%s523 + $0x38] sm:$0xff]
                  %598 = vst [vmem:[%s524 + $0x30] sm:$0xff] %v597
                  %v599 = vld [vmem:[%s523 + $0x40] sm:$0xff]
                  %600 = vst [vmem:[%s524 + $0x38] sm:$0xff] %v599
                  %v601 = vld [vmem:[%s523 + $0x48] sm:$0xff]
                  %602 = vst [vmem:[%s524 + $0x40] sm:$0xff] %v601
                  %v603 = vld [vmem:[%s523 + $0x50] sm:$0xff]
                  %604 = vst [vmem:[%s524 + $0x48] sm:$0xff] %v603
                  %v605 = vld [vmem:[%s523 + $0x58] sm:$0xff]
                  %606 = vst [vmem:[%s524 + $0x50] sm:$0xff] %v605
                  %v607 = vld [vmem:[%s523 + $0x60] sm:$0xff]
                  %608 = vst [vmem:[%s524 + $0x58] sm:$0xff] %v607
                  %v609 = vld [vmem:[%s523 + $0x68] sm:$0xff]
                  %610 = vst [vmem:[%s524 + $0x60] sm:$0xff] %v609
                  %v611 = vld [vmem:[%s523 + $0x70] sm:$0xff]
                  %612 = vst [vmem:[%s524 + $0x68] sm:$0xff] %v611
                  %v613 = vld [vmem:[%s523 + $0x78] sm:$0xff]
                  %614 = vst [vmem:[%s524 + $0x70] sm:$0xff] %v613
                  %v615 = vld [vmem:[%s523 + $0x80] sm:$0xff]
                  %616 = vst [vmem:[%s524 + $0x78] sm:$0xff] %v615
                  %v617 = vld [vmem:[%s523 + $0x88] sm:$0xff]
                  %618 = vst [vmem:[%s524 + $0x80] sm:$0xff] %v617
                  %v619 = vld [vmem:[%s523 + $0x90] sm:$0xff]
                  %620 = vst [vmem:[%s524 + $0x88] sm:$0xff] %v619
                  %v621 = vld [vmem:[%s523 + $0x98] sm:$0xff]
                  %622 = vst [vmem:[%s524 + $0x90] sm:$0xff] %v621
                  %v623 = vld [vmem:[%s523 + $0xa0] sm:$0xff]
                  %624 = vst [vmem:[%s524 + $0x98] sm:$0xff] %v623
                  %v625 = vld [vmem:[%s523 + $0xa8] sm:$0xff]
                  %626 = vst [vmem:[%s524 + $0xa0] sm:$0xff] %v625
                  %v627 = vld [vmem:[%s523 + $0xb0] sm:$0xff]
                  %628 = vst [vmem:[%s524 + $0xa8] sm:$0xff] %v627
                  %v629 = vld [vmem:[%s523 + $0xb8] sm:$0xff]
                  %630 = vst [vmem:[%s524 + $0xb0] sm:$0xff] %v629
                  %v631 = vld [vmem:[%s523 + $0xc0] sm:$0xff]
                  %632 = vst [vmem:[%s524 + $0xb8] sm:$0xff] %v631
                  %v633 = vld [vmem:[%s523 + $0xc8] sm:$0xff]
                  %634 = vst [vmem:[%s524 + $0xc0] sm:$0xff] %v633
                  %v635 = vld [vmem:[%s523 + $0xd0] sm:$0xff]
                  %636 = vst [vmem:[%s524 + $0xc8] sm:$0xff] %v635
                  %v637 = vld [vmem:[%s523 + $0xd8] sm:$0xff]
                  %638 = vst [vmem:[%s524 + $0xd0] sm:$0xff] %v637
                  %v639 = vld [vmem:[%s523 + $0xe0] sm:$0xff]
                  %640 = vst [vmem:[%s524 + $0xd8] sm:$0xff] %v639
                  %v641 = vld [vmem:[%s523 + $0xe8] sm:$0xff]
                  %642 = vst [vmem:[%s524 + $0xe0] sm:$0xff] %v641
                  %v643 = vld [vmem:[%s523 + $0xf0] sm:$0xff]
                  %644 = vst [vmem:[%s524 + $0xe8] sm:$0xff] %v643
                  %v645 = vld [vmem:[%s523 + $0xf8] sm:$0xff]
                  %646 = vst [vmem:[%s524 + $0xf0] sm:$0xff] %v645
                  %v647 = vld [vmem:[%s523 + $0x100] sm:$0xff]
                  %648 = vst [vmem:[%s524 + $0xf8] sm:$0xff] %v647
                  %v649 = vld [vmem:[%s523 + $0x108] sm:$0xff]
                  %650 = vst [vmem:[%s524 + $0x100] sm:$0xff] %v649
                  %v651 = vld [vmem:[%s523 + $0x110] sm:$0xff]
                  %652 = vst [vmem:[%s524 + $0x108] sm:$0xff] %v651
                  %s653 = sadd.s32 1, %s522
                  %p654 = scmp.ge.s32.totalorder %s653, %s513
                  %s655 = scalar_select %p654, 0, %s653
                  %s656 = smul.u32 %s655, 256
                  %s657 = smul.u32 %s655, 256
                  %s658 = scalar_lea.vmem %s294, %s656
                  %s659 = scalar_lea.vmem %s283, %s657 [#allocation2]
                $region90: #{winfc3_forward.1} parent=84 // loop_footer
                  %s519 = sadd.s32 %s517, 1
                $region91: #{winfc3_forward.1} parent=84 // loop_footer_branch
                  %516 = sbr.rel target = $region87
                $region92: #{winfc3_forward.1} parent=84 // loop_exit
                  _
                %s660 = sshrl.u32 %s512, 5
                %s661 = sand.u32 %s512, 31
                %s662 = smul.u32 %s660, 32
                %s663 = smul.u32 128, %s662
                %s664 = sshra.s32 %s663, 4
                %s665 = scalar_lea.vmem %s294, %s664
                %s666 = smul.u32 128, %s662
                %s667 = sshra.s32 %s666, 4
                %s668 = scalar_lea.vmem %s283, %s667 [#allocation2]
                // While loop
                $region93: #{winfc3_forward.1} parent=84 // loop_pre_header
                  _
                $region94: #{winfc3_forward.1} parent=84 // loop_header
                  %s672 = sphi 0, %s674
                  %p673 = scmp.ge.s32.totalorder %s672, %s661
                  %s677 = sphi 0, %s686
                  %s678 = sphi %s665, %s689
                  %s679 = sphi %s668, %s690
                $region95: #{winfc3_forward.1} parent=84 // loop_header_branch
                  %676 = sbr.rel (%p673) target = $region99
                $region96: #{winfc3_forward.1} parent=84 // loop_body
                  %v680 = vld [vmem:[%s678] sm:$0xff]
                  %681 = vst [vmem:[%s679] sm:$0xff] %v680
                  %v682 = vld [vmem:[%s678 + $0x18] sm:$0xff]
                  %683 = vst [vmem:[%s679 + $0x10] sm:$0xff] %v682
                  %s684 = sadd.s32 1, %s677
                  %p685 = scmp.ge.s32.totalorder %s684, %s661
                  %s686 = scalar_select %p685, 0, %s684
                  %s687 = smul.u32 %s686, 8
                  %s688 = smul.u32 %s686, 8
                  %s689 = scalar_lea.vmem %s665, %s687
                  %s690 = scalar_lea.vmem %s668, %s688 [#allocation2]
                $region97: #{winfc3_forward.1} parent=84 // loop_footer
                  %s674 = sadd.s32 %s672, 1
                $region98: #{winfc3_forward.1} parent=84 // loop_footer_branch
                  %671 = sbr.rel target = $region94
                $region99: #{winfc3_forward.1} parent=84 // loop_exit
                  _
                %s691 = sshll.u32 1, %s507
                %s692 = ssub.s32 %s691, 1
                loop: start=0, step=1, limit=1
                $region100: #{winfc3_forward.1} parent=84 // loop_pre_header
                  _
                $region101: #{winfc3_forward.1} parent=84 // loop_header
                  %s694 = sphi 0, %s698
                  %p695 = scmp.ge.s32.totalorder %s694, 1
                  %s699 = sphi %s509, %s509
                  %s700 = sphi %s511, %s511
                $region102: #{winfc3_forward.1} parent=84 // loop_header_branch
                  %697 = sbr.rel (%p695) target = $region106
                $region103: #{winfc3_forward.1} parent=84 // loop_body
                  %v701 = vld [vmem:[%s699] sm:%s692]
                  %702 = vst [vmem:[%s700] sm:%s692] %v701
                  %v703 = vld [vmem:[%s699 + $0x18] sm:%s692]
                  %704 = vst [vmem:[%s700 + $0x10] sm:%s692] %v703
                $region104: #{winfc3_forward.1} parent=84 // loop_footer
                  %s698 = sadd.s32 1, %s694
                $region105: #{winfc3_forward.1} parent=84 // loop_footer_branch
                  %693 = sbr.rel target = $region101
                $region106: #{winfc3_forward.1} parent=84 // loop_exit
                  _
              $region85: #{winfc3_forward.1} parent=51 // pred_fallthru
                _
            $region52: #{winfc3_forward.1} parent=47 // pred_fallthru
              _
            // Predicated region
            $region53: #{winfc3_forward.1} parent=47 // pred_check
              %p303 = pneg %p299
            $region54: #{winfc3_forward.1} parent=47 // pred_check_branch
              %305 = sbr.rel (%p303) target = $region56
            $region55: #{winfc3_forward.1} parent=47 // pred_region
              %s306 = sshll.u32 1, %s295
              %s307 = ssub.s32 %s306, 1
              loop: start=0, step=1, limit=1
              $region57: #{winfc3_forward.1} parent=55 // loop_pre_header
                _
              $region58: #{winfc3_forward.1} parent=55 // loop_header
                %s309 = sphi 0, %s313
                %p310 = scmp.ge.s32.totalorder %s309, 1
                %s314 = sphi %s294, %s294
                %s315 = sphi %s283, %s283
              $region59: #{winfc3_forward.1} parent=55 // loop_header_branch
                %312 = sbr.rel (%p310) target = $region63
              $region60: #{winfc3_forward.1} parent=55 // loop_body
                %v316 = vld [vmem:[%s314] sm:%s307]
                %317 = vst [vmem:[%s315] sm:%s307] %v316
                %v318 = vld [vmem:[%s314 + $0x18] sm:%s307]
                %319 = vst [vmem:[%s315 + $0x10] sm:%s307] %v318
              $region61: #{winfc3_forward.1} parent=55 // loop_footer
                %s313 = sadd.s32 1, %s309
              $region62: #{winfc3_forward.1} parent=55 // loop_footer_branch
                %308 = sbr.rel target = $region58
              $region63: #{winfc3_forward.1} parent=55 // loop_exit
                _
            $region56: #{winfc3_forward.1} parent=47 // pred_fallthru
              _
          $region48: #{winfc3_forward.1} parent=43 // pred_fallthru
            _
          %705 = vnop
        $region44: #{winfc3_forward.1} parent=39 // pred_fallthru
          _
        // Predicated region
        $region107: #{winfc3_forward.1} parent=39 // pred_check
          %p706 = pneg %p80
        $region108: #{winfc3_forward.1} parent=39 // pred_check_branch
          %708 = sbr.rel (%p706) target = $region110
        $region109: #{winfc3_forward.1} parent=39 // pred_region
          %s709 = sand.u32 %s70, 1
          %s710 = sand.u32 %s70, 1
          %s711 = smul.addr %s710, 16
          %s712 = scalar_lea.vmem [#allocation3], %s711
          %s713 = sadd.s32 %s21, 1
          %s714 = smul.u32 %s713, 2
          %s715 = smul.u32 2, %s22
          %s716 = smul.addr %s715, 3
          %s717 = sadd.s32 %s714, %s716
          %s718 = smul.addr %s717, 8
          %s719 = scalar_lea.vmem %s1, %s718
          // Predicated region
          $region111: #{winfc3_forward.1} parent=109 // pred_check
            _
          $region112: #{winfc3_forward.1} parent=109 // pred_check_branch
            %721 = sbr.rel (0) target = $region114
          $region113: #{winfc3_forward.1} parent=109 // pred_region
            // Predicated region
            $region115: #{winfc3_forward.1} parent=113 // pred_check
              _
            $region116: #{winfc3_forward.1} parent=113 // pred_check_branch
              %723 = sbr.rel (0) target = $region118
            $region117: #{winfc3_forward.1} parent=113 // pred_region
              // Predicated region
              $region130: #{winfc3_forward.1} parent=117 // pred_check
                _
              $region131: #{winfc3_forward.1} parent=117 // pred_check_branch
                %741 = sbr.rel (0) target = $region133
              $region132: #{winfc3_forward.1} parent=117 // pred_region
                loop: start=0, step=1, limit=1
                $region134: #{winfc3_forward.1} parent=132 // loop_pre_header
                  _
                $region135: #{winfc3_forward.1} parent=132 // loop_header
                  %s743 = sphi 0, %s747
                  %p744 = scmp.ge.s32.totalorder %s743, 1
                  %s748 = sphi %s719, %s719
                  %s749 = sphi %s712, %s712
                $region136: #{winfc3_forward.1} parent=132 // loop_header_branch
                  %746 = sbr.rel (%p744) target = $region140
                $region137: #{winfc3_forward.1} parent=132 // loop_body
                  %v750 = vld [vmem:[%s748] sm:$0xff]
                  %751 = vst [vmem:[%s749] sm:$0xff] %v750
                  %v752 = vld [vmem:[%s748 + $0x18] sm:$0xff]
                  %753 = vst [vmem:[%s749 + $0x8] sm:$0xff] %v752
                $region138: #{winfc3_forward.1} parent=132 // loop_footer
                  %s747 = sadd.s32 1, %s743
                $region139: #{winfc3_forward.1} parent=132 // loop_footer_branch
                  %742 = sbr.rel target = $region135
                $region140: #{winfc3_forward.1} parent=132 // loop_exit
                  _
              $region133: #{winfc3_forward.1} parent=117 // pred_fallthru
                _
              // Predicated region
              $region141: #{winfc3_forward.1} parent=117 // pred_check
                _
              $region142: #{winfc3_forward.1} parent=117 // pred_check_branch
                %755 = sbr.rel target = $region144
              $region143: #{winfc3_forward.1} parent=117 // pred_region
                _
              $region144: #{winfc3_forward.1} parent=117 // pred_fallthru
                _
            $region118: #{winfc3_forward.1} parent=113 // pred_fallthru
              _
            // Predicated region
            $region119: #{winfc3_forward.1} parent=113 // pred_check
              _
            $region120: #{winfc3_forward.1} parent=113 // pred_check_branch
              %725 = sbr.rel target = $region122
            $region121: #{winfc3_forward.1} parent=113 // pred_region
              %s727 = ssub.s32 256, 1
              loop: start=0, step=1, limit=1
              $region123: #{winfc3_forward.1} parent=121 // loop_pre_header
                _
              $region124: #{winfc3_forward.1} parent=121 // loop_header
                %s729 = sphi 0, %s733
                %p730 = scmp.ge.s32.totalorder %s729, 1
                %s734 = sphi %s719, %s719
                %s735 = sphi %s712, %s712
              $region125: #{winfc3_forward.1} parent=121 // loop_header_branch
                %732 = sbr.rel (%p730) target = $region129
              $region126: #{winfc3_forward.1} parent=121 // loop_body
                %v736 = vld [vmem:[%s734] sm:%s727]
                %737 = vst [vmem:[%s735] sm:%s727] %v736
                %v738 = vld [vmem:[%s734 + $0x18] sm:%s727]
                %739 = vst [vmem:[%s735 + $0x8] sm:%s727] %v738
              $region127: #{winfc3_forward.1} parent=121 // loop_footer
                %s733 = sadd.s32 1, %s729
              $region128: #{winfc3_forward.1} parent=121 // loop_footer_branch
                %728 = sbr.rel target = $region124
              $region129: #{winfc3_forward.1} parent=121 // loop_exit
                _
            $region122: #{winfc3_forward.1} parent=113 // pred_fallthru
              _
          $region114: #{winfc3_forward.1} parent=109 // pred_fallthru
            _
          %756 = vnop
        $region110: #{winfc3_forward.1} parent=39 // pred_fallthru
          _
      $region40: #{winfc3_forward.1} parent=5 // pred_fallthru
        _
      %p757 = scmp.le.s32.totalorder 1, %s14
      %p758 = scmp.lt.s32.totalorder %s14, 3
      %p759 = pnand %p757, %p758
      %p760 = pneg %p759
      // Predicated region
      $region145: #{winfc3_forward.1} parent=5 // pred_check
        _
      $region146: #{winfc3_forward.1} parent=5 // pred_check_branch
        %762 = sbr.rel (%p759) target = $region148
      $region147: #{winfc3_forward.1} parent=5 // pred_region
        %s763 = ssub.s32 %s14, 1
        %s764 = sand.u32 %s41, 1
        %s765 = sand.u32 %s41, 1
        %s766 = smul.addr %s765, 32
        %s767 = scalar_lea.vmem [#allocation2], %s766
        // Predicated region
        $region149: #{winfc3_forward.1} parent=147 // pred_check
          %p768 = pneg %p54
        $region150: #{winfc3_forward.1} parent=147 // pred_check_branch
          %770 = sbr.rel (%p768) target = $region152
        $region151: #{winfc3_forward.1} parent=147 // pred_region
          _
        $region152: #{winfc3_forward.1} parent=147 // pred_fallthru
          _
        %s771 = sand.u32 %s73, 1
        %s772 = sand.u32 %s73, 1
        %s773 = smul.addr %s772, 16
        %s774 = scalar_lea.vmem [#allocation3], %s773
        // Predicated region
        $region153: #{winfc3_forward.1} parent=147 // pred_check
          %p775 = pneg %p86
        $region154: #{winfc3_forward.1} parent=147 // pred_check_branch
          %777 = sbr.rel (%p775) target = $region156
        $region155: #{winfc3_forward.1} parent=147 // pred_region
          _
        $region156: #{winfc3_forward.1} parent=147 // pred_fallthru
          _
        %s778 = sand.u32 %s41, 1
        %s779 = sand.u32 %s41, 1
        %s780 = smul.addr %s779, 32
        %s781 = scalar_lea.vmem [#allocation2], %s780
        %p782 = pneg %p54
        %p783 = pneg %p51
        %s784 = sand.u32 %s73, 1
        %s785 = sand.u32 %s73, 1
        %s786 = smul.addr %s785, 16
        %s787 = scalar_lea.vmem [#allocation3], %s786
        %p788 = pneg %p86
        %p789 = pneg %p83
        %p790 = pneg %p107
        %p791 = pneg %p104
        %p792 = pneg %p128
        %p793 = pneg %p125
        %p794 = pneg %p149
        %p795 = pneg %p146
        %p796 = pneg %p170
        %p797 = pneg %p167
        %p798 = pneg %p191
        %p799 = pneg %p188
        %p800 = pneg %p212
        %p801 = pneg %p209
        %p802 = pneg %p240
        %p803 = pneg %p237
        %p804 = scmp.lt.s32.totalorder %s23, 0
        %s805 = scalar_select %p804, %s23, 0
        %p806 = scmp.lt.s32.totalorder %s24, 1
        %s807 = scalar_select %p806, %s24, 1
        %s808 = smul.addr %s807, 2
        %s809 = smul.addr %s805, 4
        %s810 = sadd.s32 %s808, %s809
        %s811 = smul.addr %s810, 8
        %s812 = scalar_lea.vmem %s8, %s811
        %s813 = smul.u32 2, %s24
        %s814 = smul.u32 2, %s23
        %s815 = ssub.s32 3, %s814
        %p816 = scmp.lt.s32.totalorder %s815, 2
        %s817 = scalar_select %p816, %s815, 2
        %s818 = smul.u32 256, %s817
        %s819 = sadd.s32 %s23, 1
        %s820 = smul.u32 %s819, 2
        %s821 = smul.u32 2, %s24
        %p822 = scmp.lt.s32.totalorder %s23, 0
        %s823 = scalar_select %p822, %s23, 0
        %p824 = scmp.lt.s32.totalorder %s24, 1
        %s825 = scalar_select %p824, %s24, 1
        %s826 = smul.addr %s825, 2
        %s827 = smul.addr %s823, 4
        %s828 = sadd.s32 %s826, %s827
        %s829 = smul.addr %s828, 8
        %s830 = scalar_lea.vmem %s8, %s829
        %v831 = vld [vmem:[%s2] sm:$0xff]
        %v832 = vld [vmem:[%s2 + $0x8] sm:$0xff]
        %v833 = vld [vmem:[%s2 + $0x10] sm:$0xff]
        %v834 = vld [vmem:[%s2 + $0x18] sm:$0xff]
        %v835 = vld [vmem:[%s2 + $0x20] sm:$0xff]
        %v836 = vld [vmem:[%s4] sm:$0xff]
        %v837 = vld [vmem:[%s4 + $0x8] sm:$0x3]
        %v838 = vld [vmem:[%s6] sm:$0xf]
        %v839 = vld [vmem:[%s3] sm:$0xff]
        %v840 = vld [vmem:[%s3 + $0x8] sm:$0xff]
        %v841 = vld [vmem:[%s3 + $0x10] sm:$0xff]
        %v842 = vld [vmem:[%s3 + $0x18] sm:$0xff]
        %v843 = vld [vmem:[%s3 + $0x20] sm:$0xff]
        %v844 = vld [vmem:[%s5] sm:$0xff]
        %v845 = vld [vmem:[%s5 + $0x8] sm:$0x3]
        %v846 = vld [vmem:[%s7] sm:$0xf]
        %v847 = vld [vmem:[%s767] sm:$0xff]
        %v848 = vld [vmem:[%s767 + $0x8] sm:$0xff]
        %v849 = vld [vmem:[%s774] sm:$0xff]
        %853 = vrot.lane.b32.xlu0 %v847, 127
        %v854 = vpop.permute.xlu0 %853
        %855 = vrot.lane.b32.xlu0 %v848, 127
        %v856 = vpop.permute.xlu0 %855
        %857 = vrot.lane.b32.xlu0 %v849, 127
        %v858 = vpop.permute.xlu0 %857
        %vm859 = vcmask 1039360
        %v860 = vsel %vm859, %v854, %v856
        %v861 = vsel %vm859, %v856, %v858
        %864 = vrot.lane.b32.xlu0 %v847, 126
        %v865 = vpop.permute.xlu0 %864
        %866 = vrot.lane.b32.xlu0 %v848, 126
        %v867 = vpop.permute.xlu0 %866
        %868 = vrot.lane.b32.xlu0 %v849, 126
        %v869 = vpop.permute.xlu0 %868
        %vm870 = vcmask 1031168
        %v871 = vsel %vm870, %v865, %v867
        %v872 = vsel %vm870, %v867, %v869
        %875 = vrot.lane.b32.xlu0 %v847, 125
        %v876 = vpop.permute.xlu0 %875
        %877 = vrot.lane.b32.xlu0 %v848, 125
        %v878 = vpop.permute.xlu0 %877
        %879 = vrot.lane.b32.xlu0 %v849, 125
        %v880 = vpop.permute.xlu0 %879
        %vm881 = vcmask 1022976
        %v882 = vsel %vm881, %v876, %v878
        %v883 = vsel %vm881, %v878, %v880
        %886 = vrot.lane.b32.xlu0 %v847, 124
        %v887 = vpop.permute.xlu0 %886
        %888 = vrot.lane.b32.xlu0 %v848, 124
        %v889 = vpop.permute.xlu0 %888
        %890 = vrot.lane.b32.xlu0 %v849, 124
        %v891 = vpop.permute.xlu0 %890
        %vm892 = vcmask 1014784
        %v893 = vsel %vm892, %v887, %v889
        %v894 = vsel %vm892, %v889, %v891
        %897 = vrot.lane.b32.xlu0 %v847, 123
        %v898 = vpop.permute.xlu0 %897
        %899 = vrot.lane.b32.xlu0 %v848, 123
        %v900 = vpop.permute.xlu0 %899
        %901 = vrot.lane.b32.xlu0 %v849, 123
        %v902 = vpop.permute.xlu0 %901
        %vm903 = vcmask 1006592
        %v904 = vsel %vm903, %v898, %v900
        %v905 = vsel %vm903, %v900, %v902
        %908 = vrot.lane.b32.xlu0 %v847, 122
        %v909 = vpop.permute.xlu0 %908
        %910 = vrot.lane.b32.xlu0 %v848, 122
        %v911 = vpop.permute.xlu0 %910
        %912 = vrot.lane.b32.xlu0 %v849, 122
        %v913 = vpop.permute.xlu0 %912
        %vm914 = vcmask 998400
        %v915 = vsel %vm914, %v909, %v911
        %v916 = vsel %vm914, %v911, %v913
        %919 = vrot.lane.b32.xlu0 %v847, 121
        %v920 = vpop.permute.xlu0 %919
        %921 = vrot.lane.b32.xlu0 %v848, 121
        %v922 = vpop.permute.xlu0 %921
        %923 = vrot.lane.b32.xlu0 %v849, 121
        %v924 = vpop.permute.xlu0 %923
        %vm925 = vcmask 990208
        %v926 = vsel %vm925, %v920, %v922
        %v927 = vsel %vm925, %v922, %v924
        %930 = vrot.lane.b32.xlu0 %v847, 120
        %v931 = vpop.permute.xlu0 %930
        %932 = vrot.lane.b32.xlu0 %v848, 120
        %v933 = vpop.permute.xlu0 %932
        %934 = vrot.lane.b32.xlu0 %v849, 120
        %v935 = vpop.permute.xlu0 %934
        %vm936 = vcmask 982016
        %v937 = vsel %vm936, %v931, %v933
        %v938 = vsel %vm936, %v933, %v935
        %941 = vrot.lane.b32.xlu0 %v847, 119
        %v942 = vpop.permute.xlu0 %941
        %943 = vrot.lane.b32.xlu0 %v848, 119
        %v944 = vpop.permute.xlu0 %943
        %945 = vrot.lane.b32.xlu0 %v849, 119
        %v946 = vpop.permute.xlu0 %945
        %vm947 = vcmask 973824
        %v948 = vsel %vm947, %v942, %v944
        %v949 = vsel %vm947, %v944, %v946
        %953 = vset.pattern.permute.xlu0 0
        %954 = vperm.xlu0 %953, %v839
        %v955 = vpop.permute.xlu0 %954
        %958 = vset.pattern.permute.xlu0 0
        %959 = vperm.xlu0 %958, %v840
        %v960 = vpop.permute.xlu0 %959
        %963 = vset.pattern.permute.xlu0 0
        %964 = vperm.xlu0 %963, %v841
        %v965 = vpop.permute.xlu0 %964
        %968 = vset.pattern.permute.xlu0 0
        %969 = vperm.xlu0 %968, %v842
        %v970 = vpop.permute.xlu0 %969
        %973 = vset.pattern.permute.xlu0 0
        %974 = vperm.xlu0 %973, %v843
        %v975 = vpop.permute.xlu0 %974
        %vm977 = vcmask 654336
        %v979 = vsel %vm977, %v831, 0
        %v982 = vsel %vm977, %v832, 0
        %v985 = vsel %vm977, %v833, 0
        %v988 = vsel %vm977, %v834, 0
        %v991 = vsel %vm977, %v835, 0
        %993 = vmatprep.subr.mxu0 0.0
        %994 = vmatpush1.msra.mxu0 0.0
        %995 = vmatprep.subr.mxu0 0.0
        %996 = vmatpush1.msra.mxu0 0.0
        %997 = vmatprep.subr.mxu0 0.0
        %998 = vmatpush1.msra.mxu0 0.0
        %999 = vmatprep.subr.mxu0 0.0
        %1000 = vmatpush1.msra.mxu0 0.0
        %1001 = vmatprep.subr.mxu0 0.0
        %1002 = vmatpush1.msra.mxu0 0.0
        %1003 = vmatprep.subr.mxu0 0.0
        %1004 = vmatpush1.msra.mxu0 0.0
        %v1005 = vand.u32 %v949, 4294901760
        %1006 = vmatprep.subr.mxu0 %v1005
        %v1007 = vand.u32 %v948, 4294901760
        %1008 = vmatpush1.msra.mxu0 %v1007
        %v1009 = vand.u32 %v938, 4294901760
        %1010 = vmatprep.subr.mxu0 %v1009
        %v1011 = vand.u32 %v937, 4294901760
        %1012 = vmatpush1.msra.mxu0 %v1011
        %v1013 = vand.u32 %v927, 4294901760
        %1014 = vmatprep.subr.mxu0 %v1013
        %v1015 = vand.u32 %v926, 4294901760
        %1016 = vmatpush1.msra.mxu0 %v1015
        %v1017 = vand.u32 %v916, 4294901760
        %1018 = vmatprep.subr.mxu0 %v1017
        %v1019 = vand.u32 %v915, 4294901760
        %1020 = vmatpush1.msra.mxu0 %v1019
        %v1021 = vand.u32 %v905, 4294901760
        %1022 = vmatprep.subr.mxu0 %v1021
        %v1023 = vand.u32 %v904, 4294901760
        %1024 = vmatpush1.msra.mxu0 %v1023
        %v1025 = vand.u32 %v894, 4294901760
        %1026 = vmatprep.subr.mxu0 %v1025
        %v1027 = vand.u32 %v893, 4294901760
        %1028 = vmatpush1.msra.mxu0 %v1027
        %v1029 = vand.u32 %v883, 4294901760
        %1030 = vmatprep.subr.mxu0 %v1029
        %v1031 = vand.u32 %v882, 4294901760
        %1032 = vmatpush1.msra.mxu0 %v1031
        %v1033 = vand.u32 %v872, 4294901760
        %1034 = vmatprep.subr.mxu0 %v1033
        %v1035 = vand.u32 %v871, 4294901760
        %1036 = vmatpush1.msra.mxu0 %v1035
        %v1037 = vand.u32 %v861, 4294901760
        %1038 = vmatprep.subr.mxu0 %v1037
        %v1039 = vand.u32 %v860, 4294901760
        %1040 = vmatpush1.msra.mxu0 %v1039
        %v1041 = vand.u32 %v848, 4294901760
        %1042 = vmatprep.subr.mxu0 %v1041
        %v1043 = vand.u32 %v847, 4294901760
        %1044 = vmatpush1.msra.mxu0 %v1043
        %1045 = vmatprep.subr.mxu0 0.0
        %1046 = vmatpush2.msra.mxu0 0.0
        %1047 = vmatprep.subr.mxu0 0.0
        %1048 = vmatpush2.msra.mxu0 0.0
        %1049 = vmatprep.subr.mxu0 0.0
        %1050 = vmatpush2.msra.mxu0 0.0
        %1051 = vmatprep.subr.mxu0 0.0
        %1052 = vmatpush2.msra.mxu0 0.0
        %1053 = vmatprep.subr.mxu0 0.0
        %1054 = vmatpush2.msra.mxu0 0.0
        %1055 = vmatprep.subr.mxu0 0.0
        %1056 = vmatpush2.msra.mxu0 0.0
        %1057 = vmatprep.subr.mxu0 0.0
        %1058 = vmatpush2.msra.mxu0 0.0
        %1059 = vmatprep.subr.mxu0 0.0
        %1060 = vmatpush2.msra.mxu0 0.0
        %1061 = vmatprep.subr.mxu0 0.0
        %1062 = vmatpush2.msra.mxu0 0.0
        %1063 = vmatprep.subr.mxu0 0.0
        %1064 = vmatpush2.msra.mxu0 0.0
        %1065 = vmatprep.subr.mxu0 0.0
        %1066 = vmatpush2.msra.mxu0 0.0
        %1067 = vmatprep.subr.mxu0 0.0
        %1068 = vmatpush2.msra.mxu0 0.0
        %1069 = vmatprep.subr.mxu0 0.0
        %1070 = vmatpush2.msra.mxu0 0.0
        %1071 = vmatprep.subr.mxu0 0.0
        %1072 = vmatpush2.msra.mxu0 0.0
        %1073 = vmatprep.subr.mxu0 0.0
        %1074 = vmatpush2.msra.mxu0 0.0
        %1075 = vmatprep.subr.mxu0 0.0
        %1076 = vmatpush2.msra.mxu0 0.0
        %1077 = vmatprep.mubr.f32.mxu0 0.0
        %v1078 = vand.u32 %v979, 4294901760
        %v1079 = vsub.f32 %v979, %v1078
        %v1080 = vand.u32 %v1079, 4294901760
        %v1081 = vsub.f32 %v1079, %v1080
        %v1082 = vand.u32 %v1081, 4294901760
        %1083 = vmatmul.mubr.f32.gmra.mxu0 %v1082
        %v1084 = vpop.f32.mrf.mxu0
        %v1085 = vadd.f32 %v955, %v1084
        %v1086 = vpop.f32.mrf.mxu0
        %v1087 = vadd.f32 %v955, %v1086
        %1088 = vmatprep.mubr.f32.mxu0 0.0
        %v1089 = vand.u32 %v982, 4294901760
        %v1090 = vsub.f32 %v982, %v1089
        %v1091 = vand.u32 %v1090, 4294901760
        %v1092 = vsub.f32 %v1090, %v1091
        %v1093 = vand.u32 %v1092, 4294901760
        %1094 = vmatmul.mubr.f32.gmra.mxu0 %v1093
        %v1095 = vpop.f32.mrf.mxu0
        %v1096 = vadd.f32 %v960, %v1095
        %v1097 = vpop.f32.mrf.mxu0
        %v1098 = vadd.f32 %v960, %v1097
        %1099 = vmatprep.mubr.f32.mxu0 0.0
        %v1100 = vand.u32 %v985, 4294901760
        %v1101 = vsub.f32 %v985, %v1100
        %v1102 = vand.u32 %v1101, 4294901760
        %v1103 = vsub.f32 %v1101, %v1102
        %v1104 = vand.u32 %v1103, 4294901760
        %1105 = vmatmul.mubr.f32.gmra.mxu0 %v1104
        %v1106 = vpop.f32.mrf.mxu0
        %v1107 = vadd.f32 %v965, %v1106
        %v1108 = vpop.f32.mrf.mxu0
        %v1109 = vadd.f32 %v965, %v1108
        %1110 = vmatprep.mubr.f32.mxu0 0.0
        %v1111 = vand.u32 %v988, 4294901760
        %v1112 = vsub.f32 %v988, %v1111
        %v1113 = vand.u32 %v1112, 4294901760
        %v1114 = vsub.f32 %v1112, %v1113
        %v1115 = vand.u32 %v1114, 4294901760
        %1116 = vmatmul.mubr.f32.gmra.mxu0 %v1115
        %v1117 = vpop.f32.mrf.mxu0
        %v1118 = vadd.f32 %v970, %v1117
        %v1119 = vpop.f32.mrf.mxu0
        %v1120 = vadd.f32 %v970, %v1119
        %1121 = vmatprep.mubr.f32.mxu0 0.0
        %v1122 = vand.u32 %v991, 4294901760
        %v1123 = vsub.f32 %v991, %v1122
        %v1124 = vand.u32 %v1123, 4294901760
        %v1125 = vsub.f32 %v1123, %v1124
        %v1126 = vand.u32 %v1125, 4294901760
        %1127 = vmatmul.mubr.f32.gmra.mxu0 %v1126
        %v1128 = vpop.f32.mrf.mxu0
        %v1129 = vadd.f32 %v975, %v1128
        %v1130 = vpop.f32.mrf.mxu0
        %v1131 = vadd.f32 %v975, %v1130
        %1132 = vdwg.mxu0
        %1133 = vmatprep.subr.mxu0 0.0
        %1134 = vmatpush1.msra.mxu0 0.0
        %1135 = vmatprep.subr.mxu0 0.0
        %1136 = vmatpush1.msra.mxu0 0.0
        %1137 = vmatprep.subr.mxu0 0.0
        %1138 = vmatpush1.msra.mxu0 0.0
        %1139 = vmatprep.subr.mxu0 0.0
        %1140 = vmatpush1.msra.mxu0 0.0
        %1141 = vmatprep.subr.mxu0 0.0
        %1142 = vmatpush1.msra.mxu0 0.0
        %1143 = vmatprep.subr.mxu0 0.0
        %1144 = vmatpush1.msra.mxu0 0.0
        %v1145 = vand.u32 %v949, 4294901760
        %v1146 = vsub.f32 %v949, %v1145
        %v1147 = vand.u32 %v1146, 4294901760
        %v1148 = vsub.f32 %v1146, %v1147
        %v1149 = vand.u32 %v1148, 4294901760
        %1150 = vmatprep.subr.mxu0 %v1149
        %v1151 = vand.u32 %v948, 4294901760
        %v1152 = vsub.f32 %v948, %v1151
        %v1153 = vand.u32 %v1152, 4294901760
        %v1154 = vsub.f32 %v1152, %v1153
        %v1155 = vand.u32 %v1154, 4294901760
        %1156 = vmatpush1.msra.mxu0 %v1155
        %v1157 = vand.u32 %v938, 4294901760
        %v1158 = vsub.f32 %v938, %v1157
        %v1159 = vand.u32 %v1158, 4294901760
        %v1160 = vsub.f32 %v1158, %v1159
        %v1161 = vand.u32 %v1160, 4294901760
        %1162 = vmatprep.subr.mxu0 %v1161
        %v1163 = vand.u32 %v937, 4294901760
        %v1164 = vsub.f32 %v937, %v1163
        %v1165 = vand.u32 %v1164, 4294901760
        %v1166 = vsub.f32 %v1164, %v1165
        %v1167 = vand.u32 %v1166, 4294901760
        %1168 = vmatpush1.msra.mxu0 %v1167
        %v1169 = vand.u32 %v927, 4294901760
        %v1170 = vsub.f32 %v927, %v1169
        %v1171 = vand.u32 %v1170, 4294901760
        %v1172 = vsub.f32 %v1170, %v1171
        %v1173 = vand.u32 %v1172, 4294901760
        %1174 = vmatprep.subr.mxu0 %v1173
        %v1175 = vand.u32 %v926, 4294901760
        %v1176 = vsub.f32 %v926, %v1175
        %v1177 = vand.u32 %v1176, 4294901760
        %v1178 = vsub.f32 %v1176, %v1177
        %v1179 = vand.u32 %v1178, 4294901760
        %1180 = vmatpush1.msra.mxu0 %v1179
        %v1181 = vand.u32 %v916, 4294901760
        %v1182 = vsub.f32 %v916, %v1181
        %v1183 = vand.u32 %v1182, 4294901760
        %v1184 = vsub.f32 %v1182, %v1183
        %v1185 = vand.u32 %v1184, 4294901760
        %1186 = vmatprep.subr.mxu0 %v1185
        %v1187 = vand.u32 %v915, 4294901760
        %v1188 = vsub.f32 %v915, %v1187
        %v1189 = vand.u32 %v1188, 4294901760
        %v1190 = vsub.f32 %v1188, %v1189
        %v1191 = vand.u32 %v1190, 4294901760
        %1192 = vmatpush1.msra.mxu0 %v1191
        %v1193 = vand.u32 %v905, 4294901760
        %v1194 = vsub.f32 %v905, %v1193
        %v1195 = vand.u32 %v1194, 4294901760
        %v1196 = vsub.f32 %v1194, %v1195
        %v1197 = vand.u32 %v1196, 4294901760
        %1198 = vmatprep.subr.mxu0 %v1197
        %v1199 = vand.u32 %v904, 4294901760
        %v1200 = vsub.f32 %v904, %v1199
        %v1201 = vand.u32 %v1200, 4294901760
        %v1202 = vsub.f32 %v1200, %v1201
        %v1203 = vand.u32 %v1202, 4294901760
        %1204 = vmatpush1.msra.mxu0 %v1203
        %v1205 = vand.u32 %v894, 4294901760
        %v1206 = vsub.f32 %v894, %v1205
        %v1207 = vand.u32 %v1206, 4294901760
        %v1208 = vsub.f32 %v1206, %v1207
        %v1209 = vand.u32 %v1208, 4294901760
        %1210 = vmatprep.subr.mxu0 %v1209
        %v1211 = vand.u32 %v893, 4294901760
        %v1212 = vsub.f32 %v893, %v1211
        %v1213 = vand.u32 %v1212, 4294901760
        %v1214 = vsub.f32 %v1212, %v1213
        %v1215 = vand.u32 %v1214, 4294901760
        %1216 = vmatpush1.msra.mxu0 %v1215
        %v1217 = vand.u32 %v883, 4294901760
        %v1218 = vsub.f32 %v883, %v1217
        %v1219 = vand.u32 %v1218, 4294901760
        %v1220 = vsub.f32 %v1218, %v1219
        %v1221 = vand.u32 %v1220, 4294901760
        %1222 = vmatprep.subr.mxu0 %v1221
        %v1223 = vand.u32 %v882, 4294901760
        %v1224 = vsub.f32 %v882, %v1223
        %v1225 = vand.u32 %v1224, 4294901760
        %v1226 = vsub.f32 %v1224, %v1225
        %v1227 = vand.u32 %v1226, 4294901760
        %1228 = vmatpush1.msra.mxu0 %v1227
        %v1229 = vand.u32 %v872, 4294901760
        %v1230 = vsub.f32 %v872, %v1229
        %v1231 = vand.u32 %v1230, 4294901760
        %v1232 = vsub.f32 %v1230, %v1231
        %v1233 = vand.u32 %v1232, 4294901760
        %1234 = vmatprep.subr.mxu0 %v1233
        %v1235 = vand.u32 %v871, 4294901760
        %v1236 = vsub.f32 %v871, %v1235
        %v1237 = vand.u32 %v1236, 4294901760
        %v1238 = vsub.f32 %v1236, %v1237
        %v1239 = vand.u32 %v1238, 4294901760
        %1240 = vmatpush1.msra.mxu0 %v1239
        %v1241 = vand.u32 %v861, 4294901760
        %v1242 = vsub.f32 %v861, %v1241
        %v1243 = vand.u32 %v1242, 4294901760
        %v1244 = vsub.f32 %v1242, %v1243
        %v1245 = vand.u32 %v1244, 4294901760
        %1246 = vmatprep.subr.mxu0 %v1245
        %v1247 = vand.u32 %v860, 4294901760
        %v1248 = vsub.f32 %v860, %v1247
        %v1249 = vand.u32 %v1248, 4294901760
        %v1250 = vsub.f32 %v1248, %v1249
        %v1251 = vand.u32 %v1250, 4294901760
        %1252 = vmatpush1.msra.mxu0 %v1251
        %v1253 = vand.u32 %v848, 4294901760
        %v1254 = vsub.f32 %v848, %v1253
        %v1255 = vand.u32 %v1254, 4294901760
        %v1256 = vsub.f32 %v1254, %v1255
        %v1257 = vand.u32 %v1256, 4294901760
        %1258 = vmatprep.subr.mxu0 %v1257
        %v1259 = vand.u32 %v847, 4294901760
        %v1260 = vsub.f32 %v847, %v1259
        %v1261 = vand.u32 %v1260, 4294901760
        %v1262 = vsub.f32 %v1260, %v1261
        %v1263 = vand.u32 %v1262, 4294901760
        %1264 = vmatpush1.msra.mxu0 %v1263
        %1265 = vmatprep.subr.mxu0 0.0
        %1266 = vmatpush2.msra.mxu0 0.0
        %1267 = vmatprep.subr.mxu0 0.0
        %1268 = vmatpush2.msra.mxu0 0.0
        %1269 = vmatprep.subr.mxu0 0.0
        %1270 = vmatpush2.msra.mxu0 0.0
        %1271 = vmatprep.subr.mxu0 0.0
        %1272 = vmatpush2.msra.mxu0 0.0
        %1273 = vmatprep.subr.mxu0 0.0
        %1274 = vmatpush2.msra.mxu0 0.0
        %1275 = vmatprep.subr.mxu0 0.0
        %1276 = vmatpush2.msra.mxu0 0.0
        %1277 = vmatprep.subr.mxu0 0.0
        %1278 = vmatpush2.msra.mxu0 0.0
        %1279 = vmatprep.subr.mxu0 0.0
        %1280 = vmatpush2.msra.mxu0 0.0
        %1281 = vmatprep.subr.mxu0 0.0
        %1282 = vmatpush2.msra.mxu0 0.0
        %1283 = vmatprep.subr.mxu0 0.0
        %1284 = vmatpush2.msra.mxu0 0.0
        %1285 = vmatprep.subr.mxu0 0.0
        %1286 = vmatpush2.msra.mxu0 0.0
        %1287 = vmatprep.subr.mxu0 0.0
        %1288 = vmatpush2.msra.mxu0 0.0
        %1289 = vmatprep.subr.mxu0 0.0
        %1290 = vmatpush2.msra.mxu0 0.0
        %1291 = vmatprep.subr.mxu0 0.0
        %1292 = vmatpush2.msra.mxu0 0.0
        %1293 = vmatprep.subr.mxu0 0.0
        %1294 = vmatpush2.msra.mxu0 0.0
        %1295 = vmatprep.subr.mxu0 0.0
        %1296 = vmatpush2.msra.mxu0 0.0
        %1297 = vmatprep.mubr.f32.mxu0 0.0
        %v1298 = vand.u32 %v979, 4294901760
        %1299 = vmatmul.mubr.f32.gmra.mxu0 %v1298
        %v1300 = vpop.f32.mrf.mxu0
        %v1301 = vadd.f32 %v1085, %v1300
        %v1302 = vpop.f32.mrf.mxu0
        %v1303 = vadd.f32 %v1087, %v1302
        %1304 = vmatprep.mubr.f32.mxu0 0.0
        %v1305 = vand.u32 %v982, 4294901760
        %1306 = vmatmul.mubr.f32.gmra.mxu0 %v1305
        %v1307 = vpop.f32.mrf.mxu0
        %v1308 = vadd.f32 %v1096, %v1307
        %v1309 = vpop.f32.mrf.mxu0
        %v1310 = vadd.f32 %v1098, %v1309
        %1311 = vmatprep.mubr.f32.mxu0 0.0
        %v1312 = vand.u32 %v985, 4294901760
        %1313 = vmatmul.mubr.f32.gmra.mxu0 %v1312
        %v1314 = vpop.f32.mrf.mxu0
        %v1315 = vadd.f32 %v1107, %v1314
        %v1316 = vpop.f32.mrf.mxu0
        %v1317 = vadd.f32 %v1109, %v1316
        %1318 = vmatprep.mubr.f32.mxu0 0.0
        %v1319 = vand.u32 %v988, 4294901760
        %1320 = vmatmul.mubr.f32.gmra.mxu0 %v1319
        %v1321 = vpop.f32.mrf.mxu0
        %v1322 = vadd.f32 %v1118, %v1321
        %v1323 = vpop.f32.mrf.mxu0
        %v1324 = vadd.f32 %v1120, %v1323
        %1325 = vmatprep.mubr.f32.mxu0 0.0
        %v1326 = vand.u32 %v991, 4294901760
        %1327 = vmatmul.mubr.f32.gmra.mxu0 %v1326
        %v1328 = vpop.f32.mrf.mxu0
        %v1329 = vadd.f32 %v1129, %v1328
        %v1330 = vpop.f32.mrf.mxu0
        %v1331 = vadd.f32 %v1131, %v1330
        %1332 = vdwg.mxu0
        %1333 = vmatprep.subr.mxu0 0.0
        %1334 = vmatpush1.msra.mxu0 0.0
        %1335 = vmatprep.subr.mxu0 0.0
        %1336 = vmatpush1.msra.mxu0 0.0
        %1337 = vmatprep.subr.mxu0 0.0
        %1338 = vmatpush1.msra.mxu0 0.0
        %1339 = vmatprep.subr.mxu0 0.0
        %1340 = vmatpush1.msra.mxu0 0.0
        %1341 = vmatprep.subr.mxu0 0.0
        %1342 = vmatpush1.msra.mxu0 0.0
        %1343 = vmatprep.subr.mxu0 0.0
        %1344 = vmatpush1.msra.mxu0 0.0
        %v1345 = vand.u32 %v949, 4294901760
        %v1346 = vsub.f32 %v949, %v1345
        %1347 = vmatprep.subr.mxu0 %v1346
        %v1348 = vand.u32 %v948, 4294901760
        %v1349 = vsub.f32 %v948, %v1348
        %1350 = vmatpush1.msra.mxu0 %v1349
        %v1351 = vand.u32 %v938, 4294901760
        %v1352 = vsub.f32 %v938, %v1351
        %1353 = vmatprep.subr.mxu0 %v1352
        %v1354 = vand.u32 %v937, 4294901760
        %v1355 = vsub.f32 %v937, %v1354
        %1356 = vmatpush1.msra.mxu0 %v1355
        %v1357 = vand.u32 %v927, 4294901760
        %v1358 = vsub.f32 %v927, %v1357
        %1359 = vmatprep.subr.mxu0 %v1358
        %v1360 = vand.u32 %v926, 4294901760
        %v1361 = vsub.f32 %v926, %v1360
        %1362 = vmatpush1.msra.mxu0 %v1361
        %v1363 = vand.u32 %v916, 4294901760
        %v1364 = vsub.f32 %v916, %v1363
        %1365 = vmatprep.subr.mxu0 %v1364
        %v1366 = vand.u32 %v915, 4294901760
        %v1367 = vsub.f32 %v915, %v1366
        %1368 = vmatpush1.msra.mxu0 %v1367
        %v1369 = vand.u32 %v905, 4294901760
        %v1370 = vsub.f32 %v905, %v1369
        %1371 = vmatprep.subr.mxu0 %v1370
        %v1372 = vand.u32 %v904, 4294901760
        %v1373 = vsub.f32 %v904, %v1372
        %1374 = vmatpush1.msra.mxu0 %v1373
        %v1375 = vand.u32 %v894, 4294901760
        %v1376 = vsub.f32 %v894, %v1375
        %1377 = vmatprep.subr.mxu0 %v1376
        %v1378 = vand.u32 %v893, 4294901760
        %v1379 = vsub.f32 %v893, %v1378
        %1380 = vmatpush1.msra.mxu0 %v1379
        %v1381 = vand.u32 %v883, 4294901760
        %v1382 = vsub.f32 %v883, %v1381
        %1383 = vmatprep.subr.mxu0 %v1382
        %v1384 = vand.u32 %v882, 4294901760
        %v1385 = vsub.f32 %v882, %v1384
        %1386 = vmatpush1.msra.mxu0 %v1385
        %v1387 = vand.u32 %v872, 4294901760
        %v1388 = vsub.f32 %v872, %v1387
        %1389 = vmatprep.subr.mxu0 %v1388
        %v1390 = vand.u32 %v871, 4294901760
        %v1391 = vsub.f32 %v871, %v1390
        %1392 = vmatpush1.msra.mxu0 %v1391
        %v1393 = vand.u32 %v861, 4294901760
        %v1394 = vsub.f32 %v861, %v1393
        %1395 = vmatprep.subr.mxu0 %v1394
        %v1396 = vand.u32 %v860, 4294901760
        %v1397 = vsub.f32 %v860, %v1396
        %1398 = vmatpush1.msra.mxu0 %v1397
        %v1399 = vand.u32 %v848, 4294901760
        %v1400 = vsub.f32 %v848, %v1399
        %1401 = vmatprep.subr.mxu0 %v1400
        %v1402 = vand.u32 %v847, 4294901760
        %v1403 = vsub.f32 %v847, %v1402
        %1404 = vmatpush1.msra.mxu0 %v1403
        %1405 = vmatprep.subr.mxu0 0.0
        %1406 = vmatpush2.msra.mxu0 0.0
        %1407 = vmatprep.subr.mxu0 0.0
        %1408 = vmatpush2.msra.mxu0 0.0
        %1409 = vmatprep.subr.mxu0 0.0
        %1410 = vmatpush2.msra.mxu0 0.0
        %1411 = vmatprep.subr.mxu0 0.0
        %1412 = vmatpush2.msra.mxu0 0.0
        %1413 = vmatprep.subr.mxu0 0.0
        %1414 = vmatpush2.msra.mxu0 0.0
        %1415 = vmatprep.subr.mxu0 0.0
        %1416 = vmatpush2.msra.mxu0 0.0
        %1417 = vmatprep.subr.mxu0 0.0
        %1418 = vmatpush2.msra.mxu0 0.0
        %1419 = vmatprep.subr.mxu0 0.0
        %1420 = vmatpush2.msra.mxu0 0.0
        %1421 = vmatprep.subr.mxu0 0.0
        %1422 = vmatpush2.msra.mxu0 0.0
        %1423 = vmatprep.subr.mxu0 0.0
        %1424 = vmatpush2.msra.mxu0 0.0
        %1425 = vmatprep.subr.mxu0 0.0
        %1426 = vmatpush2.msra.mxu0 0.0
        %1427 = vmatprep.subr.mxu0 0.0
        %1428 = vmatpush2.msra.mxu0 0.0
        %1429 = vmatprep.subr.mxu0 0.0
        %1430 = vmatpush2.msra.mxu0 0.0
        %1431 = vmatprep.subr.mxu0 0.0
        %1432 = vmatpush2.msra.mxu0 0.0
        %1433 = vmatprep.subr.mxu0 0.0
        %1434 = vmatpush2.msra.mxu0 0.0
        %1435 = vmatprep.subr.mxu0 0.0
        %1436 = vmatpush2.msra.mxu0 0.0
        %1437 = vmatprep.mubr.f32.mxu0 0.0
        %v1438 = vand.u32 %v979, 4294901760
        %v1439 = vsub.f32 %v979, %v1438
        %1440 = vmatmul.mubr.f32.gmra.mxu0 %v1439
        %v1441 = vpop.f32.mrf.mxu0
        %v1442 = vadd.f32 %v1301, %v1441
        %v1443 = vpop.f32.mrf.mxu0
        %v1444 = vadd.f32 %v1303, %v1443
        %1445 = vmatprep.mubr.f32.mxu0 0.0
        %v1446 = vand.u32 %v982, 4294901760
        %v1447 = vsub.f32 %v982, %v1446
        %1448 = vmatmul.mubr.f32.gmra.mxu0 %v1447
        %v1449 = vpop.f32.mrf.mxu0
        %v1450 = vadd.f32 %v1308, %v1449
        %v1451 = vpop.f32.mrf.mxu0
        %v1452 = vadd.f32 %v1310, %v1451
        %1453 = vmatprep.mubr.f32.mxu0 0.0
        %v1454 = vand.u32 %v985, 4294901760
        %v1455 = vsub.f32 %v985, %v1454
        %1456 = vmatmul.mubr.f32.gmra.mxu0 %v1455
        %v1457 = vpop.f32.mrf.mxu0
        %v1458 = vadd.f32 %v1315, %v1457
        %v1459 = vpop.f32.mrf.mxu0
        %v1460 = vadd.f32 %v1317, %v1459
        %1461 = vmatprep.mubr.f32.mxu0 0.0
        %v1462 = vand.u32 %v988, 4294901760
        %v1463 = vsub.f32 %v988, %v1462
        %1464 = vmatmul.mubr.f32.gmra.mxu0 %v1463
        %v1465 = vpop.f32.mrf.mxu0
        %v1466 = vadd.f32 %v1322, %v1465
        %v1467 = vpop.f32.mrf.mxu0
        %v1468 = vadd.f32 %v1324, %v1467
        %1469 = vmatprep.mubr.f32.mxu0 0.0
        %v1470 = vand.u32 %v991, 4294901760
        %v1471 = vsub.f32 %v991, %v1470
        %1472 = vmatmul.mubr.f32.gmra.mxu0 %v1471
        %v1473 = vpop.f32.mrf.mxu0
        %v1474 = vadd.f32 %v1329, %v1473
        %v1475 = vpop.f32.mrf.mxu0
        %v1476 = vadd.f32 %v1331, %v1475
        %1477 = vdwg.mxu0
        %1478 = vmatprep.subr.mxu0 0.0
        %1479 = vmatpush1.msra.mxu0 0.0
        %1480 = vmatprep.subr.mxu0 0.0
        %1481 = vmatpush1.msra.mxu0 0.0
        %1482 = vmatprep.subr.mxu0 0.0
        %1483 = vmatpush1.msra.mxu0 0.0
        %1484 = vmatprep.subr.mxu0 0.0
        %1485 = vmatpush1.msra.mxu0 0.0
        %1486 = vmatprep.subr.mxu0 0.0
        %1487 = vmatpush1.msra.mxu0 0.0
        %1488 = vmatprep.subr.mxu0 0.0
        %1489 = vmatpush1.msra.mxu0 0.0
        %v1490 = vand.u32 %v949, 4294901760
        %1491 = vmatprep.subr.mxu0 %v1490
        %v1492 = vand.u32 %v948, 4294901760
        %1493 = vmatpush1.msra.mxu0 %v1492
        %v1494 = vand.u32 %v938, 4294901760
        %1495 = vmatprep.subr.mxu0 %v1494
        %v1496 = vand.u32 %v937, 4294901760
        %1497 = vmatpush1.msra.mxu0 %v1496
        %v1498 = vand.u32 %v927, 4294901760
        %1499 = vmatprep.subr.mxu0 %v1498
        %v1500 = vand.u32 %v926, 4294901760
        %1501 = vmatpush1.msra.mxu0 %v1500
        %v1502 = vand.u32 %v916, 4294901760
        %1503 = vmatprep.subr.mxu0 %v1502
        %v1504 = vand.u32 %v915, 4294901760
        %1505 = vmatpush1.msra.mxu0 %v1504
        %v1506 = vand.u32 %v905, 4294901760
        %1507 = vmatprep.subr.mxu0 %v1506
        %v1508 = vand.u32 %v904, 4294901760
        %1509 = vmatpush1.msra.mxu0 %v1508
        %v1510 = vand.u32 %v894, 4294901760
        %1511 = vmatprep.subr.mxu0 %v1510
        %v1512 = vand.u32 %v893, 4294901760
        %1513 = vmatpush1.msra.mxu0 %v1512
        %v1514 = vand.u32 %v883, 4294901760
        %1515 = vmatprep.subr.mxu0 %v1514
        %v1516 = vand.u32 %v882, 4294901760
        %1517 = vmatpush1.msra.mxu0 %v1516
        %v1518 = vand.u32 %v872, 4294901760
        %1519 = vmatprep.subr.mxu0 %v1518
        %v1520 = vand.u32 %v871, 4294901760
        %1521 = vmatpush1.msra.mxu0 %v1520
        %v1522 = vand.u32 %v861, 4294901760
        %1523 = vmatprep.subr.mxu0 %v1522
        %v1524 = vand.u32 %v860, 4294901760
        %1525 = vmatpush1.msra.mxu0 %v1524
        %v1526 = vand.u32 %v848, 4294901760
        %1527 = vmatprep.subr.mxu0 %v1526
        %v1528 = vand.u32 %v847, 4294901760
        %1529 = vmatpush1.msra.mxu0 %v1528
        %1530 = vmatprep.subr.mxu0 0.0
        %1531 = vmatpush2.msra.mxu0 0.0
        %1532 = vmatprep.subr.mxu0 0.0
        %1533 = vmatpush2.msra.mxu0 0.0
        %1534 = vmatprep.subr.mxu0 0.0
        %1535 = vmatpush2.msra.mxu0 0.0
        %1536 = vmatprep.subr.mxu0 0.0
        %1537 = vmatpush2.msra.mxu0 0.0
        %1538 = vmatprep.subr.mxu0 0.0
        %1539 = vmatpush2.msra.mxu0 0.0
        %1540 = vmatprep.subr.mxu0 0.0
        %1541 = vmatpush2.msra.mxu0 0.0
        %1542 = vmatprep.subr.mxu0 0.0
        %1543 = vmatpush2.msra.mxu0 0.0
        %1544 = vmatprep.subr.mxu0 0.0
        %1545 = vmatpush2.msra.mxu0 0.0
        %1546 = vmatprep.subr.mxu0 0.0
        %1547 = vmatpush2.msra.mxu0 0.0
        %1548 = vmatprep.subr.mxu0 0.0
        %1549 = vmatpush2.msra.mxu0 0.0
        %1550 = vmatprep.subr.mxu0 0.0
        %1551 = vmatpush2.msra.mxu0 0.0
        %1552 = vmatprep.subr.mxu0 0.0
        %1553 = vmatpush2.msra.mxu0 0.0
        %1554 = vmatprep.subr.mxu0 0.0
        %1555 = vmatpush2.msra.mxu0 0.0
        %1556 = vmatprep.subr.mxu0 0.0
        %1557 = vmatpush2.msra.mxu0 0.0
        %1558 = vmatprep.subr.mxu0 0.0
        %1559 = vmatpush2.msra.mxu0 0.0
        %1560 = vmatprep.subr.mxu0 0.0
        %1561 = vmatpush2.msra.mxu0 0.0
        %1562 = vmatprep.mubr.f32.mxu0 0.0
        %v1563 = vand.u32 %v979, 4294901760
        %v1564 = vsub.f32 %v979, %v1563
        %v1565 = vand.u32 %v1564, 4294901760
        %1566 = vmatmul.mubr.f32.gmra.mxu0 %v1565
        %v1567 = vpop.f32.mrf.mxu0
        %v1568 = vadd.f32 %v1442, %v1567
        %v1569 = vpop.f32.mrf.mxu0
        %v1570 = vadd.f32 %v1444, %v1569
        %1571 = vmatprep.mubr.f32.mxu0 0.0
        %v1572 = vand.u32 %v982, 4294901760
        %v1573 = vsub.f32 %v982, %v1572
        %v1574 = vand.u32 %v1573, 4294901760
        %1575 = vmatmul.mubr.f32.gmra.mxu0 %v1574
        %v1576 = vpop.f32.mrf.mxu0
        %v1577 = vadd.f32 %v1450, %v1576
        %v1578 = vpop.f32.mrf.mxu0
        %v1579 = vadd.f32 %v1452, %v1578
        %1580 = vmatprep.mubr.f32.mxu0 0.0
        %v1581 = vand.u32 %v985, 4294901760
        %v1582 = vsub.f32 %v985, %v1581
        %v1583 = vand.u32 %v1582, 4294901760
        %1584 = vmatmul.mubr.f32.gmra.mxu0 %v1583
        %v1585 = vpop.f32.mrf.mxu0
        %v1586 = vadd.f32 %v1458, %v1585
        %v1587 = vpop.f32.mrf.mxu0
        %v1588 = vadd.f32 %v1460, %v1587
        %1589 = vmatprep.mubr.f32.mxu0 0.0
        %v1590 = vand.u32 %v988, 4294901760
        %v1591 = vsub.f32 %v988, %v1590
        %v1592 = vand.u32 %v1591, 4294901760
        %1593 = vmatmul.mubr.f32.gmra.mxu0 %v1592
        %v1594 = vpop.f32.mrf.mxu0
        %v1595 = vadd.f32 %v1466, %v1594
        %v1596 = vpop.f32.mrf.mxu0
        %v1597 = vadd.f32 %v1468, %v1596
        %1598 = vmatprep.mubr.f32.mxu0 0.0
        %v1599 = vand.u32 %v991, 4294901760
        %v1600 = vsub.f32 %v991, %v1599
        %v1601 = vand.u32 %v1600, 4294901760
        %1602 = vmatmul.mubr.f32.gmra.mxu0 %v1601
        %v1603 = vpop.f32.mrf.mxu0
        %v1604 = vadd.f32 %v1474, %v1603
        %v1605 = vpop.f32.mrf.mxu0
        %v1606 = vadd.f32 %v1476, %v1605
        %1607 = vdwg.mxu0
        %1608 = vmatprep.subr.mxu0 0.0
        %1609 = vmatpush1.msra.mxu0 0.0
        %1610 = vmatprep.subr.mxu0 0.0
        %1611 = vmatpush1.msra.mxu0 0.0
        %1612 = vmatprep.subr.mxu0 0.0
        %1613 = vmatpush1.msra.mxu0 0.0
        %1614 = vmatprep.subr.mxu0 0.0
        %1615 = vmatpush1.msra.mxu0 0.0
        %1616 = vmatprep.subr.mxu0 0.0
        %1617 = vmatpush1.msra.mxu0 0.0
        %1618 = vmatprep.subr.mxu0 0.0
        %1619 = vmatpush1.msra.mxu0 0.0
        %v1620 = vand.u32 %v949, 4294901760
        %v1621 = vsub.f32 %v949, %v1620
        %v1622 = vand.u32 %v1621, 4294901760
        %1623 = vmatprep.subr.mxu0 %v1622
        %v1624 = vand.u32 %v948, 4294901760
        %v1625 = vsub.f32 %v948, %v1624
        %v1626 = vand.u32 %v1625, 4294901760
        %1627 = vmatpush1.msra.mxu0 %v1626
        %v1628 = vand.u32 %v938, 4294901760
        %v1629 = vsub.f32 %v938, %v1628
        %v1630 = vand.u32 %v1629, 4294901760
        %1631 = vmatprep.subr.mxu0 %v1630
        %v1632 = vand.u32 %v937, 4294901760
        %v1633 = vsub.f32 %v937, %v1632
        %v1634 = vand.u32 %v1633, 4294901760
        %1635 = vmatpush1.msra.mxu0 %v1634
        %v1636 = vand.u32 %v927, 4294901760
        %v1637 = vsub.f32 %v927, %v1636
        %v1638 = vand.u32 %v1637, 4294901760
        %1639 = vmatprep.subr.mxu0 %v1638
        %v1640 = vand.u32 %v926, 4294901760
        %v1641 = vsub.f32 %v926, %v1640
        %v1642 = vand.u32 %v1641, 4294901760
        %1643 = vmatpush1.msra.mxu0 %v1642
        %v1644 = vand.u32 %v916, 4294901760
        %v1645 = vsub.f32 %v916, %v1644
        %v1646 = vand.u32 %v1645, 4294901760
        %1647 = vmatprep.subr.mxu0 %v1646
        %v1648 = vand.u32 %v915, 4294901760
        %v1649 = vsub.f32 %v915, %v1648
        %v1650 = vand.u32 %v1649, 4294901760
        %1651 = vmatpush1.msra.mxu0 %v1650
        %v1652 = vand.u32 %v905, 4294901760
        %v1653 = vsub.f32 %v905, %v1652
        %v1654 = vand.u32 %v1653, 4294901760
        %1655 = vmatprep.subr.mxu0 %v1654
        %v1656 = vand.u32 %v904, 4294901760
        %v1657 = vsub.f32 %v904, %v1656
        %v1658 = vand.u32 %v1657, 4294901760
        %1659 = vmatpush1.msra.mxu0 %v1658
        %v1660 = vand.u32 %v894, 4294901760
        %v1661 = vsub.f32 %v894, %v1660
        %v1662 = vand.u32 %v1661, 4294901760
        %1663 = vmatprep.subr.mxu0 %v1662
        %v1664 = vand.u32 %v893, 4294901760
        %v1665 = vsub.f32 %v893, %v1664
        %v1666 = vand.u32 %v1665, 4294901760
        %1667 = vmatpush1.msra.mxu0 %v1666
        %v1668 = vand.u32 %v883, 4294901760
        %v1669 = vsub.f32 %v883, %v1668
        %v1670 = vand.u32 %v1669, 4294901760
        %1671 = vmatprep.subr.mxu0 %v1670
        %v1672 = vand.u32 %v882, 4294901760
        %v1673 = vsub.f32 %v882, %v1672
        %v1674 = vand.u32 %v1673, 4294901760
        %1675 = vmatpush1.msra.mxu0 %v1674
        %v1676 = vand.u32 %v872, 4294901760
        %v1677 = vsub.f32 %v872, %v1676
        %v1678 = vand.u32 %v1677, 4294901760
        %1679 = vmatprep.subr.mxu0 %v1678
        %v1680 = vand.u32 %v871, 4294901760
        %v1681 = vsub.f32 %v871, %v1680
        %v1682 = vand.u32 %v1681, 4294901760
        %1683 = vmatpush1.msra.mxu0 %v1682
        %v1684 = vand.u32 %v861, 4294901760
        %v1685 = vsub.f32 %v861, %v1684
        %v1686 = vand.u32 %v1685, 4294901760
        %1687 = vmatprep.subr.mxu0 %v1686
        %v1688 = vand.u32 %v860, 4294901760
        %v1689 = vsub.f32 %v860, %v1688
        %v1690 = vand.u32 %v1689, 4294901760
        %1691 = vmatpush1.msra.mxu0 %v1690
        %v1692 = vand.u32 %v848, 4294901760
        %v1693 = vsub.f32 %v848, %v1692
        %v1694 = vand.u32 %v1693, 4294901760
        %1695 = vmatprep.subr.mxu0 %v1694
        %v1696 = vand.u32 %v847, 4294901760
        %v1697 = vsub.f32 %v847, %v1696
        %v1698 = vand.u32 %v1697, 4294901760
        %1699 = vmatpush1.msra.mxu0 %v1698
        %1700 = vmatprep.subr.mxu0 0.0
        %1701 = vmatpush2.msra.mxu0 0.0
        %1702 = vmatprep.subr.mxu0 0.0
        %1703 = vmatpush2.msra.mxu0 0.0
        %1704 = vmatprep.subr.mxu0 0.0
        %1705 = vmatpush2.msra.mxu0 0.0
        %1706 = vmatprep.subr.mxu0 0.0
        %1707 = vmatpush2.msra.mxu0 0.0
        %1708 = vmatprep.subr.mxu0 0.0
        %1709 = vmatpush2.msra.mxu0 0.0
        %1710 = vmatprep.subr.mxu0 0.0
        %1711 = vmatpush2.msra.mxu0 0.0
        %1712 = vmatprep.subr.mxu0 0.0
        %1713 = vmatpush2.msra.mxu0 0.0
        %1714 = vmatprep.subr.mxu0 0.0
        %1715 = vmatpush2.msra.mxu0 0.0
        %1716 = vmatprep.subr.mxu0 0.0
        %1717 = vmatpush2.msra.mxu0 0.0
        %1718 = vmatprep.subr.mxu0 0.0
        %1719 = vmatpush2.msra.mxu0 0.0
        %1720 = vmatprep.subr.mxu0 0.0
        %1721 = vmatpush2.msra.mxu0 0.0
        %1722 = vmatprep.subr.mxu0 0.0
        %1723 = vmatpush2.msra.mxu0 0.0
        %1724 = vmatprep.subr.mxu0 0.0
        %1725 = vmatpush2.msra.mxu0 0.0
        %1726 = vmatprep.subr.mxu0 0.0
        %1727 = vmatpush2.msra.mxu0 0.0
        %1728 = vmatprep.subr.mxu0 0.0
        %1729 = vmatpush2.msra.mxu0 0.0
        %1730 = vmatprep.subr.mxu0 0.0
        %1731 = vmatpush2.msra.mxu0 0.0
        %1732 = vmatprep.mubr.f32.mxu0 0.0
        %v1733 = vand.u32 %v979, 4294901760
        %1734 = vmatmul.mubr.f32.gmra.mxu0 %v1733
        %v1735 = vpop.f32.mrf.mxu0
        %v1736 = vadd.f32 %v1568, %v1735
        %v1737 = vpop.f32.mrf.mxu0
        %v1738 = vadd.f32 %v1570, %v1737
        %1739 = vmatprep.mubr.f32.mxu0 0.0
        %v1740 = vand.u32 %v982, 4294901760
        %1741 = vmatmul.mubr.f32.gmra.mxu0 %v1740
        %v1742 = vpop.f32.mrf.mxu0
        %v1743 = vadd.f32 %v1577, %v1742
        %v1744 = vpop.f32.mrf.mxu0
        %v1745 = vadd.f32 %v1579, %v1744
        %1746 = vmatprep.mubr.f32.mxu0 0.0
        %v1747 = vand.u32 %v985, 4294901760
        %1748 = vmatmul.mubr.f32.gmra.mxu0 %v1747
        %v1749 = vpop.f32.mrf.mxu0
        %v1750 = vadd.f32 %v1586, %v1749
        %v1751 = vpop.f32.mrf.mxu0
        %v1752 = vadd.f32 %v1588, %v1751
        %1753 = vmatprep.mubr.f32.mxu0 0.0
        %v1754 = vand.u32 %v988, 4294901760
        %1755 = vmatmul.mubr.f32.gmra.mxu0 %v1754
        %v1756 = vpop.f32.mrf.mxu0
        %v1757 = vadd.f32 %v1595, %v1756
        %v1758 = vpop.f32.mrf.mxu0
        %v1759 = vadd.f32 %v1597, %v1758
        %1760 = vmatprep.mubr.f32.mxu0 0.0
        %v1761 = vand.u32 %v991, 4294901760
        %1762 = vmatmul.mubr.f32.gmra.mxu0 %v1761
        %v1763 = vpop.f32.mrf.mxu0
        %v1764 = vadd.f32 %v1604, %v1763
        %v1765 = vpop.f32.mrf.mxu0
        %v1766 = vadd.f32 %v1606, %v1765
        %1767 = vdwg.mxu0
        %1768 = vmatprep.subr.mxu0 0.0
        %1769 = vmatpush1.msra.mxu0 0.0
        %1770 = vmatprep.subr.mxu0 0.0
        %1771 = vmatpush1.msra.mxu0 0.0
        %1772 = vmatprep.subr.mxu0 0.0
        %1773 = vmatpush1.msra.mxu0 0.0
        %1774 = vmatprep.subr.mxu0 0.0
        %1775 = vmatpush1.msra.mxu0 0.0
        %1776 = vmatprep.subr.mxu0 0.0
        %1777 = vmatpush1.msra.mxu0 0.0
        %1778 = vmatprep.subr.mxu0 0.0
        %1779 = vmatpush1.msra.mxu0 0.0
        %v1780 = vand.u32 %v949, 4294901760
        %1781 = vmatprep.subr.mxu0 %v1780
        %v1782 = vand.u32 %v948, 4294901760
        %1783 = vmatpush1.msra.mxu0 %v1782
        %v1784 = vand.u32 %v938, 4294901760
        %1785 = vmatprep.subr.mxu0 %v1784
        %v1786 = vand.u32 %v937, 4294901760
        %1787 = vmatpush1.msra.mxu0 %v1786
        %v1788 = vand.u32 %v927, 4294901760
        %1789 = vmatprep.subr.mxu0 %v1788
        %v1790 = vand.u32 %v926, 4294901760
        %1791 = vmatpush1.msra.mxu0 %v1790
        %v1792 = vand.u32 %v916, 4294901760
        %1793 = vmatprep.subr.mxu0 %v1792
        %v1794 = vand.u32 %v915, 4294901760
        %1795 = vmatpush1.msra.mxu0 %v1794
        %v1796 = vand.u32 %v905, 4294901760
        %1797 = vmatprep.subr.mxu0 %v1796
        %v1798 = vand.u32 %v904, 4294901760
        %1799 = vmatpush1.msra.mxu0 %v1798
        %v1800 = vand.u32 %v894, 4294901760
        %1801 = vmatprep.subr.mxu0 %v1800
        %v1802 = vand.u32 %v893, 4294901760
        %1803 = vmatpush1.msra.mxu0 %v1802
        %v1804 = vand.u32 %v883, 4294901760
        %1805 = vmatprep.subr.mxu0 %v1804
        %v1806 = vand.u32 %v882, 4294901760
        %1807 = vmatpush1.msra.mxu0 %v1806
        %v1808 = vand.u32 %v872, 4294901760
        %1809 = vmatprep.subr.mxu0 %v1808
        %v1810 = vand.u32 %v871, 4294901760
        %1811 = vmatpush1.msra.mxu0 %v1810
        %v1812 = vand.u32 %v861, 4294901760
        %1813 = vmatprep.subr.mxu0 %v1812
        %v1814 = vand.u32 %v860, 4294901760
        %1815 = vmatpush1.msra.mxu0 %v1814
        %v1816 = vand.u32 %v848, 4294901760
        %1817 = vmatprep.subr.mxu0 %v1816
        %v1818 = vand.u32 %v847, 4294901760
        %1819 = vmatpush1.msra.mxu0 %v1818
        %1820 = vmatprep.subr.mxu0 0.0
        %1821 = vmatpush2.msra.mxu0 0.0
        %1822 = vmatprep.subr.mxu0 0.0
        %1823 = vmatpush2.msra.mxu0 0.0
        %1824 = vmatprep.subr.mxu0 0.0
        %1825 = vmatpush2.msra.mxu0 0.0
        %1826 = vmatprep.subr.mxu0 0.0
        %1827 = vmatpush2.msra.mxu0 0.0
        %1828 = vmatprep.subr.mxu0 0.0
        %1829 = vmatpush2.msra.mxu0 0.0
        %1830 = vmatprep.subr.mxu0 0.0
        %1831 = vmatpush2.msra.mxu0 0.0
        %1832 = vmatprep.subr.mxu0 0.0
        %1833 = vmatpush2.msra.mxu0 0.0
        %1834 = vmatprep.subr.mxu0 0.0
        %1835 = vmatpush2.msra.mxu0 0.0
        %1836 = vmatprep.subr.mxu0 0.0
        %1837 = vmatpush2.msra.mxu0 0.0
        %1838 = vmatprep.subr.mxu0 0.0
        %1839 = vmatpush2.msra.mxu0 0.0
        %1840 = vmatprep.subr.mxu0 0.0
        %1841 = vmatpush2.msra.mxu0 0.0
        %1842 = vmatprep.subr.mxu0 0.0
        %1843 = vmatpush2.msra.mxu0 0.0
        %1844 = vmatprep.subr.mxu0 0.0
        %1845 = vmatpush2.msra.mxu0 0.0
        %1846 = vmatprep.subr.mxu0 0.0
        %1847 = vmatpush2.msra.mxu0 0.0
        %1848 = vmatprep.subr.mxu0 0.0
        %1849 = vmatpush2.msra.mxu0 0.0
        %1850 = vmatprep.subr.mxu0 0.0
        %1851 = vmatpush2.msra.mxu0 0.0
        %1852 = vmatprep.mubr.f32.mxu0 0.0
        %v1853 = vand.u32 %v979, 4294901760
        %1854 = vmatmul.mubr.f32.gmra.mxu0 %v1853
        %v1855 = vpop.f32.mrf.mxu0
        %v1856 = vadd.f32 %v1736, %v1855
        %v1857 = vpop.f32.mrf.mxu0
        %v1858 = vadd.f32 %v1738, %v1857
        %1859 = vmatprep.mubr.f32.mxu0 0.0
        %v1860 = vand.u32 %v982, 4294901760
        %1861 = vmatmul.mubr.f32.gmra.mxu0 %v1860
        %v1862 = vpop.f32.mrf.mxu0
        %v1863 = vadd.f32 %v1743, %v1862
        %v1864 = vpop.f32.mrf.mxu0
        %v1865 = vadd.f32 %v1745, %v1864
        %1866 = vmatprep.mubr.f32.mxu0 0.0
        %v1867 = vand.u32 %v985, 4294901760
        %1868 = vmatmul.mubr.f32.gmra.mxu0 %v1867
        %v1869 = vpop.f32.mrf.mxu0
        %v1870 = vadd.f32 %v1750, %v1869
        %v1871 = vpop.f32.mrf.mxu0
        %v1872 = vadd.f32 %v1752, %v1871
        %1873 = vmatprep.mubr.f32.mxu0 0.0
        %v1874 = vand.u32 %v988, 4294901760
        %1875 = vmatmul.mubr.f32.gmra.mxu0 %v1874
        %v1876 = vpop.f32.mrf.mxu0
        %v1877 = vadd.f32 %v1757, %v1876
        %v1878 = vpop.f32.mrf.mxu0
        %v1879 = vadd.f32 %v1759, %v1878
        %1880 = vmatprep.mubr.f32.mxu0 0.0
        %v1881 = vand.u32 %v991, 4294901760
        %1882 = vmatmul.mubr.f32.gmra.mxu0 %v1881
        %v1883 = vpop.f32.mrf.mxu0
        %v1884 = vadd.f32 %v1764, %v1883
        %v1885 = vpop.f32.mrf.mxu0
        %v1886 = vadd.f32 %v1766, %v1885
        %1887 = vdwg.mxu0
        %vm1888 = vcmp.ge.f32.partialorder %v1856, 0.0
        %vm1889 = vcmp.ge.f32.partialorder %v1858, 0.0
        %vm1890 = vcmp.ge.f32.partialorder %v1863, 0.0
        %vm1891 = vcmp.ge.f32.partialorder %v1865, 0.0
        %vm1892 = vcmp.ge.f32.partialorder %v1870, 0.0
        %vm1893 = vcmp.ge.f32.partialorder %v1872, 0.0
        %vm1894 = vcmp.ge.f32.partialorder %v1877, 0.0
        %vm1895 = vcmp.ge.f32.partialorder %v1879, 0.0
        %vm1896 = vcmp.ge.f32.partialorder %v1884, 0.0
        %vm1897 = vcmp.ge.f32.partialorder %v1886, 0.0
        %v1898 = vmul.f32 %v1856, 0.01
        %v1899 = vmul.f32 %v1858, 0.01
        %v1900 = vmul.f32 %v1863, 0.01
        %v1901 = vmul.f32 %v1865, 0.01
        %v1902 = vmul.f32 %v1870, 0.01
        %v1903 = vmul.f32 %v1872, 0.01
        %v1904 = vmul.f32 %v1877, 0.01
        %v1905 = vmul.f32 %v1879, 0.01
        %v1906 = vmul.f32 %v1884, 0.01
        %v1907 = vmul.f32 %v1886, 0.01
        %v1908 = vsel %vm1888, %v1856, %v1898
        %v1909 = vsel %vm1889, %v1858, %v1899
        %v1910 = vsel %vm1890, %v1863, %v1900
        %v1911 = vsel %vm1891, %v1865, %v1901
        %v1912 = vsel %vm1892, %v1870, %v1902
        %v1913 = vsel %vm1893, %v1872, %v1903
        %v1914 = vsel %vm1894, %v1877, %v1904
        %v1915 = vsel %vm1895, %v1879, %v1905
        %v1916 = vsel %vm1896, %v1884, %v1906
        %v1917 = vsel %vm1897, %v1886, %v1907
        %1919 = vset.pattern.permute.xlu0 0
        %1920 = vperm.xlu0 %1919, %v844
        %v1921 = vpop.permute.xlu0 %1920
        %1924 = vset.pattern.permute.xlu0 0
        %1925 = vperm.xlu0 %1924, %v845
        %v1926 = vpop.permute.xlu0 %1925
        %vm1928 = vcmask 326656
        %v1930 = vsel %vm1928, %v836, 0
        %v1933 = vsel %vm1928, %v837, 0
        %1935 = vmatprep.subr.mxu0 0.0
        %1936 = vmatpush1.msra.mxu0 0.0
        %1937 = vmatprep.subr.mxu0 0.0
        %1938 = vmatpush1.msra.mxu0 0.0
        %1939 = vmatprep.subr.mxu0 0.0
        %1940 = vmatpush1.msra.mxu0 0.0
        %1941 = vmatprep.subr.mxu0 0.0
        %1942 = vmatpush1.msra.mxu0 0.0
        %1943 = vmatprep.subr.mxu0 0.0
        %1944 = vmatpush1.msra.mxu0 0.0
        %1945 = vmatprep.subr.mxu0 0.0
        %1946 = vmatpush1.msra.mxu0 0.0
        %1947 = vmatprep.subr.mxu0 0.0
        %1948 = vmatpush1.msra.mxu0 0.0
        %1949 = vmatprep.subr.mxu0 0.0
        %1950 = vmatpush1.msra.mxu0 0.0
        %1951 = vmatprep.subr.mxu0 0.0
        %1952 = vmatpush1.msra.mxu0 0.0
        %1953 = vmatprep.subr.mxu0 0.0
        %1954 = vmatpush1.msra.mxu0 0.0
        %1955 = vmatprep.subr.mxu0 0.0
        %1956 = vmatpush1.msra.mxu0 0.0
        %v1957 = vand.u32 %v1917, 4294901760
        %1958 = vmatprep.subr.mxu0 %v1957
        %v1959 = vand.u32 %v1916, 4294901760
        %1960 = vmatpush1.msra.mxu0 %v1959
        %v1961 = vand.u32 %v1915, 4294901760
        %1962 = vmatprep.subr.mxu0 %v1961
        %v1963 = vand.u32 %v1914, 4294901760
        %1964 = vmatpush1.msra.mxu0 %v1963
        %v1965 = vand.u32 %v1913, 4294901760
        %1966 = vmatprep.subr.mxu0 %v1965
        %v1967 = vand.u32 %v1912, 4294901760
        %1968 = vmatpush1.msra.mxu0 %v1967
        %v1969 = vand.u32 %v1911, 4294901760
        %1970 = vmatprep.subr.mxu0 %v1969
        %v1971 = vand.u32 %v1910, 4294901760
        %1972 = vmatpush1.msra.mxu0 %v1971
        %v1973 = vand.u32 %v1909, 4294901760
        %1974 = vmatprep.subr.mxu0 %v1973
        %v1975 = vand.u32 %v1908, 4294901760
        %1976 = vmatpush1.msra.mxu0 %v1975
        %1977 = vmatprep.subr.mxu0 0.0
        %1978 = vmatpush2.msra.mxu0 0.0
        %1979 = vmatprep.subr.mxu0 0.0
        %1980 = vmatpush2.msra.mxu0 0.0
        %1981 = vmatprep.subr.mxu0 0.0
        %1982 = vmatpush2.msra.mxu0 0.0
        %1983 = vmatprep.subr.mxu0 0.0
        %1984 = vmatpush2.msra.mxu0 0.0
        %1985 = vmatprep.subr.mxu0 0.0
        %1986 = vmatpush2.msra.mxu0 0.0
        %1987 = vmatprep.subr.mxu0 0.0
        %1988 = vmatpush2.msra.mxu0 0.0
        %1989 = vmatprep.subr.mxu0 0.0
        %1990 = vmatpush2.msra.mxu0 0.0
        %1991 = vmatprep.subr.mxu0 0.0
        %1992 = vmatpush2.msra.mxu0 0.0
        %1993 = vmatprep.subr.mxu0 0.0
        %1994 = vmatpush2.msra.mxu0 0.0
        %1995 = vmatprep.subr.mxu0 0.0
        %1996 = vmatpush2.msra.mxu0 0.0
        %1997 = vmatprep.subr.mxu0 0.0
        %1998 = vmatpush2.msra.mxu0 0.0
        %1999 = vmatprep.subr.mxu0 0.0
        %2000 = vmatpush2.msra.mxu0 0.0
        %2001 = vmatprep.subr.mxu0 0.0
        %2002 = vmatpush2.msra.mxu0 0.0
        %2003 = vmatprep.subr.mxu0 0.0
        %2004 = vmatpush2.msra.mxu0 0.0
        %2005 = vmatprep.subr.mxu0 0.0
        %2006 = vmatpush2.msra.mxu0 0.0
        %2007 = vmatprep.subr.mxu0 0.0
        %2008 = vmatpush2.msra.mxu0 0.0
        %2009 = vmatprep.mubr.f32.mxu0 0.0
        %v2010 = vand.u32 %v1930, 4294901760
        %v2011 = vsub.f32 %v1930, %v2010
        %v2012 = vand.u32 %v2011, 4294901760
        %v2013 = vsub.f32 %v2011, %v2012
        %v2014 = vand.u32 %v2013, 4294901760
        %2015 = vmatmul.mubr.f32.gmra.mxu0 %v2014
        %v2016 = vpop.f32.mrf.mxu0
        %v2017 = vadd.f32 %v1921, %v2016
        %v2018 = vpop.f32.mrf.mxu0
        %v2019 = vadd.f32 %v1921, %v2018
        %2020 = vmatprep.mubr.f32.mxu0 0.0
        %v2021 = vand.u32 %v1933, 4294901760
        %v2022 = vsub.f32 %v1933, %v2021
        %v2023 = vand.u32 %v2022, 4294901760
        %v2024 = vsub.f32 %v2022, %v2023
        %v2025 = vand.u32 %v2024, 4294901760
        %2026 = vmatmul.mubr.f32.gmra.mxu0 %v2025
        %v2027 = vpop.f32.mrf.mxu0
        %v2028 = vadd.f32 %v1926, %v2027
        %v2029 = vpop.f32.mrf.mxu0
        %v2030 = vadd.f32 %v1926, %v2029
        %2031 = vdwg.mxu0
        %2032 = vmatprep.subr.mxu0 0.0
        %2033 = vmatpush1.msra.mxu0 0.0
        %2034 = vmatprep.subr.mxu0 0.0
        %2035 = vmatpush1.msra.mxu0 0.0
        %2036 = vmatprep.subr.mxu0 0.0
        %2037 = vmatpush1.msra.mxu0 0.0
        %2038 = vmatprep.subr.mxu0 0.0
        %2039 = vmatpush1.msra.mxu0 0.0
        %2040 = vmatprep.subr.mxu0 0.0
        %2041 = vmatpush1.msra.mxu0 0.0
        %2042 = vmatprep.subr.mxu0 0.0
        %2043 = vmatpush1.msra.mxu0 0.0
        %2044 = vmatprep.subr.mxu0 0.0
        %2045 = vmatpush1.msra.mxu0 0.0
        %2046 = vmatprep.subr.mxu0 0.0
        %2047 = vmatpush1.msra.mxu0 0.0
        %2048 = vmatprep.subr.mxu0 0.0
        %2049 = vmatpush1.msra.mxu0 0.0
        %2050 = vmatprep.subr.mxu0 0.0
        %2051 = vmatpush1.msra.mxu0 0.0
        %2052 = vmatprep.subr.mxu0 0.0
        %2053 = vmatpush1.msra.mxu0 0.0
        %v2054 = vand.u32 %v1917, 4294901760
        %v2055 = vsub.f32 %v1917, %v2054
        %v2056 = vand.u32 %v2055, 4294901760
        %v2057 = vsub.f32 %v2055, %v2056
        %v2058 = vand.u32 %v2057, 4294901760
        %2059 = vmatprep.subr.mxu0 %v2058
        %v2060 = vand.u32 %v1916, 4294901760
        %v2061 = vsub.f32 %v1916, %v2060
        %v2062 = vand.u32 %v2061, 4294901760
        %v2063 = vsub.f32 %v2061, %v2062
        %v2064 = vand.u32 %v2063, 4294901760
        %2065 = vmatpush1.msra.mxu0 %v2064
        %v2066 = vand.u32 %v1915, 4294901760
        %v2067 = vsub.f32 %v1915, %v2066
        %v2068 = vand.u32 %v2067, 4294901760
        %v2069 = vsub.f32 %v2067, %v2068
        %v2070 = vand.u32 %v2069, 4294901760
        %2071 = vmatprep.subr.mxu0 %v2070
        %v2072 = vand.u32 %v1914, 4294901760
        %v2073 = vsub.f32 %v1914, %v2072
        %v2074 = vand.u32 %v2073, 4294901760
        %v2075 = vsub.f32 %v2073, %v2074
        %v2076 = vand.u32 %v2075, 4294901760
        %2077 = vmatpush1.msra.mxu0 %v2076
        %v2078 = vand.u32 %v1913, 4294901760
        %v2079 = vsub.f32 %v1913, %v2078
        %v2080 = vand.u32 %v2079, 4294901760
        %v2081 = vsub.f32 %v2079, %v2080
        %v2082 = vand.u32 %v2081, 4294901760
        %2083 = vmatprep.subr.mxu0 %v2082
        %v2084 = vand.u32 %v1912, 4294901760
        %v2085 = vsub.f32 %v1912, %v2084
        %v2086 = vand.u32 %v2085, 4294901760
        %v2087 = vsub.f32 %v2085, %v2086
        %v2088 = vand.u32 %v2087, 4294901760
        %2089 = vmatpush1.msra.mxu0 %v2088
        %v2090 = vand.u32 %v1911, 4294901760
        %v2091 = vsub.f32 %v1911, %v2090
        %v2092 = vand.u32 %v2091, 4294901760
        %v2093 = vsub.f32 %v2091, %v2092
        %v2094 = vand.u32 %v2093, 4294901760
        %2095 = vmatprep.subr.mxu0 %v2094
        %v2096 = vand.u32 %v1910, 4294901760
        %v2097 = vsub.f32 %v1910, %v2096
        %v2098 = vand.u32 %v2097, 4294901760
        %v2099 = vsub.f32 %v2097, %v2098
        %v2100 = vand.u32 %v2099, 4294901760
        %2101 = vmatpush1.msra.mxu0 %v2100
        %v2102 = vand.u32 %v1909, 4294901760
        %v2103 = vsub.f32 %v1909, %v2102
        %v2104 = vand.u32 %v2103, 4294901760
        %v2105 = vsub.f32 %v2103, %v2104
        %v2106 = vand.u32 %v2105, 4294901760
        %2107 = vmatprep.subr.mxu0 %v2106
        %v2108 = vand.u32 %v1908, 4294901760
        %v2109 = vsub.f32 %v1908, %v2108
        %v2110 = vand.u32 %v2109, 4294901760
        %v2111 = vsub.f32 %v2109, %v2110
        %v2112 = vand.u32 %v2111, 4294901760
        %2113 = vmatpush1.msra.mxu0 %v2112
        %2114 = vmatprep.subr.mxu0 0.0
        %2115 = vmatpush2.msra.mxu0 0.0
        %2116 = vmatprep.subr.mxu0 0.0
        %2117 = vmatpush2.msra.mxu0 0.0
        %2118 = vmatprep.subr.mxu0 0.0
        %2119 = vmatpush2.msra.mxu0 0.0
        %2120 = vmatprep.subr.mxu0 0.0
        %2121 = vmatpush2.msra.mxu0 0.0
        %2122 = vmatprep.subr.mxu0 0.0
        %2123 = vmatpush2.msra.mxu0 0.0
        %2124 = vmatprep.subr.mxu0 0.0
        %2125 = vmatpush2.msra.mxu0 0.0
        %2126 = vmatprep.subr.mxu0 0.0
        %2127 = vmatpush2.msra.mxu0 0.0
        %2128 = vmatprep.subr.mxu0 0.0
        %2129 = vmatpush2.msra.mxu0 0.0
        %2130 = vmatprep.subr.mxu0 0.0
        %2131 = vmatpush2.msra.mxu0 0.0
        %2132 = vmatprep.subr.mxu0 0.0
        %2133 = vmatpush2.msra.mxu0 0.0
        %2134 = vmatprep.subr.mxu0 0.0
        %2135 = vmatpush2.msra.mxu0 0.0
        %2136 = vmatprep.subr.mxu0 0.0
        %2137 = vmatpush2.msra.mxu0 0.0
        %2138 = vmatprep.subr.mxu0 0.0
        %2139 = vmatpush2.msra.mxu0 0.0
        %2140 = vmatprep.subr.mxu0 0.0
        %2141 = vmatpush2.msra.mxu0 0.0
        %2142 = vmatprep.subr.mxu0 0.0
        %2143 = vmatpush2.msra.mxu0 0.0
        %2144 = vmatprep.subr.mxu0 0.0
        %2145 = vmatpush2.msra.mxu0 0.0
        %2146 = vmatprep.mubr.f32.mxu0 0.0
        %v2147 = vand.u32 %v1930, 4294901760
        %2148 = vmatmul.mubr.f32.gmra.mxu0 %v2147
        %v2149 = vpop.f32.mrf.mxu0
        %v2150 = vadd.f32 %v2017, %v2149
        %v2151 = vpop.f32.mrf.mxu0
        %v2152 = vadd.f32 %v2019, %v2151
        %2153 = vmatprep.mubr.f32.mxu0 0.0
        %v2154 = vand.u32 %v1933, 4294901760
        %2155 = vmatmul.mubr.f32.gmra.mxu0 %v2154
        %v2156 = vpop.f32.mrf.mxu0
        %v2157 = vadd.f32 %v2028, %v2156
        %v2158 = vpop.f32.mrf.mxu0
        %v2159 = vadd.f32 %v2030, %v2158
        %2160 = vdwg.mxu0
        %2161 = vmatprep.subr.mxu0 0.0
        %2162 = vmatpush1.msra.mxu0 0.0
        %2163 = vmatprep.subr.mxu0 0.0
        %2164 = vmatpush1.msra.mxu0 0.0
        %2165 = vmatprep.subr.mxu0 0.0
        %2166 = vmatpush1.msra.mxu0 0.0
        %2167 = vmatprep.subr.mxu0 0.0
        %2168 = vmatpush1.msra.mxu0 0.0
        %2169 = vmatprep.subr.mxu0 0.0
        %2170 = vmatpush1.msra.mxu0 0.0
        %2171 = vmatprep.subr.mxu0 0.0
        %2172 = vmatpush1.msra.mxu0 0.0
        %2173 = vmatprep.subr.mxu0 0.0
        %2174 = vmatpush1.msra.mxu0 0.0
        %2175 = vmatprep.subr.mxu0 0.0
        %2176 = vmatpush1.msra.mxu0 0.0
        %2177 = vmatprep.subr.mxu0 0.0
        %2178 = vmatpush1.msra.mxu0 0.0
        %2179 = vmatprep.subr.mxu0 0.0
        %2180 = vmatpush1.msra.mxu0 0.0
        %2181 = vmatprep.subr.mxu0 0.0
        %2182 = vmatpush1.msra.mxu0 0.0
        %v2183 = vand.u32 %v1917, 4294901760
        %v2184 = vsub.f32 %v1917, %v2183
        %2185 = vmatprep.subr.mxu0 %v2184
        %v2186 = vand.u32 %v1916, 4294901760
        %v2187 = vsub.f32 %v1916, %v2186
        %2188 = vmatpush1.msra.mxu0 %v2187
        %v2189 = vand.u32 %v1915, 4294901760
        %v2190 = vsub.f32 %v1915, %v2189
        %2191 = vmatprep.subr.mxu0 %v2190
        %v2192 = vand.u32 %v1914, 4294901760
        %v2193 = vsub.f32 %v1914, %v2192
        %2194 = vmatpush1.msra.mxu0 %v2193
        %v2195 = vand.u32 %v1913, 4294901760
        %v2196 = vsub.f32 %v1913, %v2195
        %2197 = vmatprep.subr.mxu0 %v2196
        %v2198 = vand.u32 %v1912, 4294901760
        %v2199 = vsub.f32 %v1912, %v2198
        %2200 = vmatpush1.msra.mxu0 %v2199
        %v2201 = vand.u32 %v1911, 4294901760
        %v2202 = vsub.f32 %v1911, %v2201
        %2203 = vmatprep.subr.mxu0 %v2202
        %v2204 = vand.u32 %v1910, 4294901760
        %v2205 = vsub.f32 %v1910, %v2204
        %2206 = vmatpush1.msra.mxu0 %v2205
        %v2207 = vand.u32 %v1909, 4294901760
        %v2208 = vsub.f32 %v1909, %v2207
        %2209 = vmatprep.subr.mxu0 %v2208
        %v2210 = vand.u32 %v1908, 4294901760
        %v2211 = vsub.f32 %v1908, %v2210
        %2212 = vmatpush1.msra.mxu0 %v2211
        %2213 = vmatprep.subr.mxu0 0.0
        %2214 = vmatpush2.msra.mxu0 0.0
        %2215 = vmatprep.subr.mxu0 0.0
        %2216 = vmatpush2.msra.mxu0 0.0
        %2217 = vmatprep.subr.mxu0 0.0
        %2218 = vmatpush2.msra.mxu0 0.0
        %2219 = vmatprep.subr.mxu0 0.0
        %2220 = vmatpush2.msra.mxu0 0.0
        %2221 = vmatprep.subr.mxu0 0.0
        %2222 = vmatpush2.msra.mxu0 0.0
        %2223 = vmatprep.subr.mxu0 0.0
        %2224 = vmatpush2.msra.mxu0 0.0
        %2225 = vmatprep.subr.mxu0 0.0
        %2226 = vmatpush2.msra.mxu0 0.0
        %2227 = vmatprep.subr.mxu0 0.0
        %2228 = vmatpush2.msra.mxu0 0.0
        %2229 = vmatprep.subr.mxu0 0.0
        %2230 = vmatpush2.msra.mxu0 0.0
        %2231 = vmatprep.subr.mxu0 0.0
        %2232 = vmatpush2.msra.mxu0 0.0
        %2233 = vmatprep.subr.mxu0 0.0
        %2234 = vmatpush2.msra.mxu0 0.0
        %2235 = vmatprep.subr.mxu0 0.0
        %2236 = vmatpush2.msra.mxu0 0.0
        %2237 = vmatprep.subr.mxu0 0.0
        %2238 = vmatpush2.msra.mxu0 0.0
        %2239 = vmatprep.subr.mxu0 0.0
        %2240 = vmatpush2.msra.mxu0 0.0
        %2241 = vmatprep.subr.mxu0 0.0
        %2242 = vmatpush2.msra.mxu0 0.0
        %2243 = vmatprep.subr.mxu0 0.0
        %2244 = vmatpush2.msra.mxu0 0.0
        %2245 = vmatprep.mubr.f32.mxu0 0.0
        %v2246 = vand.u32 %v1930, 4294901760
        %v2247 = vsub.f32 %v1930, %v2246
        %2248 = vmatmul.mubr.f32.gmra.mxu0 %v2247
        %v2249 = vpop.f32.mrf.mxu0
        %v2250 = vadd.f32 %v2150, %v2249
        %v2251 = vpop.f32.mrf.mxu0
        %v2252 = vadd.f32 %v2152, %v2251
        %2253 = vmatprep.mubr.f32.mxu0 0.0
        %v2254 = vand.u32 %v1933, 4294901760
        %v2255 = vsub.f32 %v1933, %v2254
        %2256 = vmatmul.mubr.f32.gmra.mxu0 %v2255
        %v2257 = vpop.f32.mrf.mxu0
        %v2258 = vadd.f32 %v2157, %v2257
        %v2259 = vpop.f32.mrf.mxu0
        %v2260 = vadd.f32 %v2159, %v2259
        %2261 = vdwg.mxu0
        %2262 = vmatprep.subr.mxu0 0.0
        %2263 = vmatpush1.msra.mxu0 0.0
        %2264 = vmatprep.subr.mxu0 0.0
        %2265 = vmatpush1.msra.mxu0 0.0
        %2266 = vmatprep.subr.mxu0 0.0
        %2267 = vmatpush1.msra.mxu0 0.0
        %2268 = vmatprep.subr.mxu0 0.0
        %2269 = vmatpush1.msra.mxu0 0.0
        %2270 = vmatprep.subr.mxu0 0.0
        %2271 = vmatpush1.msra.mxu0 0.0
        %2272 = vmatprep.subr.mxu0 0.0
        %2273 = vmatpush1.msra.mxu0 0.0
        %2274 = vmatprep.subr.mxu0 0.0
        %2275 = vmatpush1.msra.mxu0 0.0
        %2276 = vmatprep.subr.mxu0 0.0
        %2277 = vmatpush1.msra.mxu0 0.0
        %2278 = vmatprep.subr.mxu0 0.0
        %2279 = vmatpush1.msra.mxu0 0.0
        %2280 = vmatprep.subr.mxu0 0.0
        %2281 = vmatpush1.msra.mxu0 0.0
        %2282 = vmatprep.subr.mxu0 0.0
        %2283 = vmatpush1.msra.mxu0 0.0
        %v2284 = vand.u32 %v1917, 4294901760
        %2285 = vmatprep.subr.mxu0 %v2284
        %v2286 = vand.u32 %v1916, 4294901760
        %2287 = vmatpush1.msra.mxu0 %v2286
        %v2288 = vand.u32 %v1915, 4294901760
        %2289 = vmatprep.subr.mxu0 %v2288
        %v2290 = vand.u32 %v1914, 4294901760
        %2291 = vmatpush1.msra.mxu0 %v2290
        %v2292 = vand.u32 %v1913, 4294901760
        %2293 = vmatprep.subr.mxu0 %v2292
        %v2294 = vand.u32 %v1912, 4294901760
        %2295 = vmatpush1.msra.mxu0 %v2294
        %v2296 = vand.u32 %v1911, 4294901760
        %2297 = vmatprep.subr.mxu0 %v2296
        %v2298 = vand.u32 %v1910, 4294901760
        %2299 = vmatpush1.msra.mxu0 %v2298
        %v2300 = vand.u32 %v1909, 4294901760
        %2301 = vmatprep.subr.mxu0 %v2300
        %v2302 = vand.u32 %v1908, 4294901760
        %2303 = vmatpush1.msra.mxu0 %v2302
        %2304 = vmatprep.subr.mxu0 0.0
        %2305 = vmatpush2.msra.mxu0 0.0
        %2306 = vmatprep.subr.mxu0 0.0
        %2307 = vmatpush2.msra.mxu0 0.0
        %2308 = vmatprep.subr.mxu0 0.0
        %2309 = vmatpush2.msra.mxu0 0.0
        %2310 = vmatprep.subr.mxu0 0.0
        %2311 = vmatpush2.msra.mxu0 0.0
        %2312 = vmatprep.subr.mxu0 0.0
        %2313 = vmatpush2.msra.mxu0 0.0
        %2314 = vmatprep.subr.mxu0 0.0
        %2315 = vmatpush2.msra.mxu0 0.0
        %2316 = vmatprep.subr.mxu0 0.0
        %2317 = vmatpush2.msra.mxu0 0.0
        %2318 = vmatprep.subr.mxu0 0.0
        %2319 = vmatpush2.msra.mxu0 0.0
        %2320 = vmatprep.subr.mxu0 0.0
        %2321 = vmatpush2.msra.mxu0 0.0
        %2322 = vmatprep.subr.mxu0 0.0
        %2323 = vmatpush2.msra.mxu0 0.0
        %2324 = vmatprep.subr.mxu0 0.0
        %2325 = vmatpush2.msra.mxu0 0.0
        %2326 = vmatprep.subr.mxu0 0.0
        %2327 = vmatpush2.msra.mxu0 0.0
        %2328 = vmatprep.subr.mxu0 0.0
        %2329 = vmatpush2.msra.mxu0 0.0
        %2330 = vmatprep.subr.mxu0 0.0
        %2331 = vmatpush2.msra.mxu0 0.0
        %2332 = vmatprep.subr.mxu0 0.0
        %2333 = vmatpush2.msra.mxu0 0.0
        %2334 = vmatprep.subr.mxu0 0.0
        %2335 = vmatpush2.msra.mxu0 0.0
        %2336 = vmatprep.mubr.f32.mxu0 0.0
        %v2337 = vand.u32 %v1930, 4294901760
        %v2338 = vsub.f32 %v1930, %v2337
        %v2339 = vand.u32 %v2338, 4294901760
        %2340 = vmatmul.mubr.f32.gmra.mxu0 %v2339
        %v2341 = vpop.f32.mrf.mxu0
        %v2342 = vadd.f32 %v2250, %v2341
        %v2343 = vpop.f32.mrf.mxu0
        %v2344 = vadd.f32 %v2252, %v2343
        %2345 = vmatprep.mubr.f32.mxu0 0.0
        %v2346 = vand.u32 %v1933, 4294901760
        %v2347 = vsub.f32 %v1933, %v2346
        %v2348 = vand.u32 %v2347, 4294901760
        %2349 = vmatmul.mubr.f32.gmra.mxu0 %v2348
        %v2350 = vpop.f32.mrf.mxu0
        %v2351 = vadd.f32 %v2258, %v2350
        %v2352 = vpop.f32.mrf.mxu0
        %v2353 = vadd.f32 %v2260, %v2352
        %2354 = vdwg.mxu0
        %2355 = vmatprep.subr.mxu0 0.0
        %2356 = vmatpush1.msra.mxu0 0.0
        %2357 = vmatprep.subr.mxu0 0.0
        %2358 = vmatpush1.msra.mxu0 0.0
        %2359 = vmatprep.subr.mxu0 0.0
        %2360 = vmatpush1.msra.mxu0 0.0
        %2361 = vmatprep.subr.mxu0 0.0
        %2362 = vmatpush1.msra.mxu0 0.0
        %2363 = vmatprep.subr.mxu0 0.0
        %2364 = vmatpush1.msra.mxu0 0.0
        %2365 = vmatprep.subr.mxu0 0.0
        %2366 = vmatpush1.msra.mxu0 0.0
        %2367 = vmatprep.subr.mxu0 0.0
        %2368 = vmatpush1.msra.mxu0 0.0
        %2369 = vmatprep.subr.mxu0 0.0
        %2370 = vmatpush1.msra.mxu0 0.0
        %2371 = vmatprep.subr.mxu0 0.0
        %2372 = vmatpush1.msra.mxu0 0.0
        %2373 = vmatprep.subr.mxu0 0.0
        %2374 = vmatpush1.msra.mxu0 0.0
        %2375 = vmatprep.subr.mxu0 0.0
        %2376 = vmatpush1.msra.mxu0 0.0
        %v2377 = vand.u32 %v1917, 4294901760
        %v2378 = vsub.f32 %v1917, %v2377
        %v2379 = vand.u32 %v2378, 4294901760
        %2380 = vmatprep.subr.mxu0 %v2379
        %v2381 = vand.u32 %v1916, 4294901760
        %v2382 = vsub.f32 %v1916, %v2381
        %v2383 = vand.u32 %v2382, 4294901760
        %2384 = vmatpush1.msra.mxu0 %v2383
        %v2385 = vand.u32 %v1915, 4294901760
        %v2386 = vsub.f32 %v1915, %v2385
        %v2387 = vand.u32 %v2386, 4294901760
        %2388 = vmatprep.subr.mxu0 %v2387
        %v2389 = vand.u32 %v1914, 4294901760
        %v2390 = vsub.f32 %v1914, %v2389
        %v2391 = vand.u32 %v2390, 4294901760
        %2392 = vmatpush1.msra.mxu0 %v2391
        %v2393 = vand.u32 %v1913, 4294901760
        %v2394 = vsub.f32 %v1913, %v2393
        %v2395 = vand.u32 %v2394, 4294901760
        %2396 = vmatprep.subr.mxu0 %v2395
        %v2397 = vand.u32 %v1912, 4294901760
        %v2398 = vsub.f32 %v1912, %v2397
        %v2399 = vand.u32 %v2398, 4294901760
        %2400 = vmatpush1.msra.mxu0 %v2399
        %v2401 = vand.u32 %v1911, 4294901760
        %v2402 = vsub.f32 %v1911, %v2401
        %v2403 = vand.u32 %v2402, 4294901760
        %2404 = vmatprep.subr.mxu0 %v2403
        %v2405 = vand.u32 %v1910, 4294901760
        %v2406 = vsub.f32 %v1910, %v2405
        %v2407 = vand.u32 %v2406, 4294901760
        %2408 = vmatpush1.msra.mxu0 %v2407
        %v2409 = vand.u32 %v1909, 4294901760
        %v2410 = vsub.f32 %v1909, %v2409
        %v2411 = vand.u32 %v2410, 4294901760
        %2412 = vmatprep.subr.mxu0 %v2411
        %v2413 = vand.u32 %v1908, 4294901760
        %v2414 = vsub.f32 %v1908, %v2413
        %v2415 = vand.u32 %v2414, 4294901760
        %2416 = vmatpush1.msra.mxu0 %v2415
        %2417 = vmatprep.subr.mxu0 0.0
        %2418 = vmatpush2.msra.mxu0 0.0
        %2419 = vmatprep.subr.mxu0 0.0
        %2420 = vmatpush2.msra.mxu0 0.0
        %2421 = vmatprep.subr.mxu0 0.0
        %2422 = vmatpush2.msra.mxu0 0.0
        %2423 = vmatprep.subr.mxu0 0.0
        %2424 = vmatpush2.msra.mxu0 0.0
        %2425 = vmatprep.subr.mxu0 0.0
        %2426 = vmatpush2.msra.mxu0 0.0
        %2427 = vmatprep.subr.mxu0 0.0
        %2428 = vmatpush2.msra.mxu0 0.0
        %2429 = vmatprep.subr.mxu0 0.0
        %2430 = vmatpush2.msra.mxu0 0.0
        %2431 = vmatprep.subr.mxu0 0.0
        %2432 = vmatpush2.msra.mxu0 0.0
        %2433 = vmatprep.subr.mxu0 0.0
        %2434 = vmatpush2.msra.mxu0 0.0
        %2435 = vmatprep.subr.mxu0 0.0
        %2436 = vmatpush2.msra.mxu0 0.0
        %2437 = vmatprep.subr.mxu0 0.0
        %2438 = vmatpush2.msra.mxu0 0.0
        %2439 = vmatprep.subr.mxu0 0.0
        %2440 = vmatpush2.msra.mxu0 0.0
        %2441 = vmatprep.subr.mxu0 0.0
        %2442 = vmatpush2.msra.mxu0 0.0
        %2443 = vmatprep.subr.mxu0 0.0
        %2444 = vmatpush2.msra.mxu0 0.0
        %2445 = vmatprep.subr.mxu0 0.0
        %2446 = vmatpush2.msra.mxu0 0.0
        %2447 = vmatprep.subr.mxu0 0.0
        %2448 = vmatpush2.msra.mxu0 0.0
        %2449 = vmatprep.mubr.f32.mxu0 0.0
        %v2450 = vand.u32 %v1930, 4294901760
        %2451 = vmatmul.mubr.f32.gmra.mxu0 %v2450
        %v2452 = vpop.f32.mrf.mxu0
        %v2453 = vadd.f32 %v2342, %v2452
        %v2454 = vpop.f32.mrf.mxu0
        %v2455 = vadd.f32 %v2344, %v2454
        %2456 = vmatprep.mubr.f32.mxu0 0.0
        %v2457 = vand.u32 %v1933, 4294901760
        %2458 = vmatmul.mubr.f32.gmra.mxu0 %v2457
        %v2459 = vpop.f32.mrf.mxu0
        %v2460 = vadd.f32 %v2351, %v2459
        %v2461 = vpop.f32.mrf.mxu0
        %v2462 = vadd.f32 %v2353, %v2461
        %2463 = vdwg.mxu0
        %2464 = vmatprep.subr.mxu0 0.0
        %2465 = vmatpush1.msra.mxu0 0.0
        %2466 = vmatprep.subr.mxu0 0.0
        %2467 = vmatpush1.msra.mxu0 0.0
        %2468 = vmatprep.subr.mxu0 0.0
        %2469 = vmatpush1.msra.mxu0 0.0
        %2470 = vmatprep.subr.mxu0 0.0
        %2471 = vmatpush1.msra.mxu0 0.0
        %2472 = vmatprep.subr.mxu0 0.0
        %2473 = vmatpush1.msra.mxu0 0.0
        %2474 = vmatprep.subr.mxu0 0.0
        %2475 = vmatpush1.msra.mxu0 0.0
        %2476 = vmatprep.subr.mxu0 0.0
        %2477 = vmatpush1.msra.mxu0 0.0
        %2478 = vmatprep.subr.mxu0 0.0
        %2479 = vmatpush1.msra.mxu0 0.0
        %2480 = vmatprep.subr.mxu0 0.0
        %2481 = vmatpush1.msra.mxu0 0.0
        %2482 = vmatprep.subr.mxu0 0.0
        %2483 = vmatpush1.msra.mxu0 0.0
        %2484 = vmatprep.subr.mxu0 0.0
        %2485 = vmatpush1.msra.mxu0 0.0
        %v2486 = vand.u32 %v1917, 4294901760
        %2487 = vmatprep.subr.mxu0 %v2486
        %v2488 = vand.u32 %v1916, 4294901760
        %2489 = vmatpush1.msra.mxu0 %v2488
        %v2490 = vand.u32 %v1915, 4294901760
        %2491 = vmatprep.subr.mxu0 %v2490
        %v2492 = vand.u32 %v1914, 4294901760
        %2493 = vmatpush1.msra.mxu0 %v2492
        %v2494 = vand.u32 %v1913, 4294901760
        %2495 = vmatprep.subr.mxu0 %v2494
        %v2496 = vand.u32 %v1912, 4294901760
        %2497 = vmatpush1.msra.mxu0 %v2496
        %v2498 = vand.u32 %v1911, 4294901760
        %2499 = vmatprep.subr.mxu0 %v2498
        %v2500 = vand.u32 %v1910, 4294901760
        %2501 = vmatpush1.msra.mxu0 %v2500
        %v2502 = vand.u32 %v1909, 4294901760
        %2503 = vmatprep.subr.mxu0 %v2502
        %v2504 = vand.u32 %v1908, 4294901760
        %2505 = vmatpush1.msra.mxu0 %v2504
        %2506 = vmatprep.subr.mxu0 0.0
        %2507 = vmatpush2.msra.mxu0 0.0
        %2508 = vmatprep.subr.mxu0 0.0
        %2509 = vmatpush2.msra.mxu0 0.0
        %2510 = vmatprep.subr.mxu0 0.0
        %2511 = vmatpush2.msra.mxu0 0.0
        %2512 = vmatprep.subr.mxu0 0.0
        %2513 = vmatpush2.msra.mxu0 0.0
        %2514 = vmatprep.subr.mxu0 0.0
        %2515 = vmatpush2.msra.mxu0 0.0
        %2516 = vmatprep.subr.mxu0 0.0
        %2517 = vmatpush2.msra.mxu0 0.0
        %2518 = vmatprep.subr.mxu0 0.0
        %2519 = vmatpush2.msra.mxu0 0.0
        %2520 = vmatprep.subr.mxu0 0.0
        %2521 = vmatpush2.msra.mxu0 0.0
        %2522 = vmatprep.subr.mxu0 0.0
        %2523 = vmatpush2.msra.mxu0 0.0
        %2524 = vmatprep.subr.mxu0 0.0
        %2525 = vmatpush2.msra.mxu0 0.0
        %2526 = vmatprep.subr.mxu0 0.0
        %2527 = vmatpush2.msra.mxu0 0.0
        %2528 = vmatprep.subr.mxu0 0.0
        %2529 = vmatpush2.msra.mxu0 0.0
        %2530 = vmatprep.subr.mxu0 0.0
        %2531 = vmatpush2.msra.mxu0 0.0
        %2532 = vmatprep.subr.mxu0 0.0
        %2533 = vmatpush2.msra.mxu0 0.0
        %2534 = vmatprep.subr.mxu0 0.0
        %2535 = vmatpush2.msra.mxu0 0.0
        %2536 = vmatprep.subr.mxu0 0.0
        %2537 = vmatpush2.msra.mxu0 0.0
        %2538 = vmatprep.mubr.f32.mxu0 0.0
        %v2539 = vand.u32 %v1930, 4294901760
        %2540 = vmatmul.mubr.f32.gmra.mxu0 %v2539
        %v2541 = vpop.f32.mrf.mxu0
        %v2542 = vadd.f32 %v2453, %v2541
        %v2543 = vpop.f32.mrf.mxu0
        %v2544 = vadd.f32 %v2455, %v2543
        %2545 = vmatprep.mubr.f32.mxu0 0.0
        %v2546 = vand.u32 %v1933, 4294901760
        %2547 = vmatmul.mubr.f32.gmra.mxu0 %v2546
        %v2548 = vpop.f32.mrf.mxu0
        %v2549 = vadd.f32 %v2460, %v2548
        %v2550 = vpop.f32.mrf.mxu0
        %v2551 = vadd.f32 %v2462, %v2550
        %2552 = vdwg.mxu0
        %vm2553 = vcmp.ge.f32.partialorder %v2542, 0.0
        %vm2554 = vcmp.ge.f32.partialorder %v2544, 0.0
        %vm2555 = vcmp.ge.f32.partialorder %v2549, 0.0
        %vm2556 = vcmp.ge.f32.partialorder %v2551, 0.0
        %v2557 = vmul.f32 %v2542, 0.01
        %v2558 = vmul.f32 %v2544, 0.01
        %v2559 = vmul.f32 %v2549, 0.01
        %v2560 = vmul.f32 %v2551, 0.01
        %v2561 = vsel %vm2553, %v2542, %v2557
        %v2562 = vsel %vm2554, %v2544, %v2558
        %v2563 = vsel %vm2555, %v2549, %v2559
        %v2564 = vsel %vm2556, %v2551, %v2560
        %2566 = vset.pattern.permute.xlu0 0
        %2567 = vperm.xlu0 %2566, %v846
        %v2568 = vpop.permute.xlu0 %2567
        %vm2570 = vcmask 80896
        %v2572 = vsel %vm2570, %v838, 0
        %vm2574 = vcmask 1041408
        %v2576 = vsel %vm2574, %v2563, 0
        %v2579 = vsel %vm2574, %v2564, 0
        %2581 = vmatprep.subr.mxu0 0.0
        %2582 = vmatpush1.msra.mxu0 0.0
        %2583 = vmatprep.subr.mxu0 0.0
        %2584 = vmatpush1.msra.mxu0 0.0
        %2585 = vmatprep.subr.mxu0 0.0
        %2586 = vmatpush1.msra.mxu0 0.0
        %2587 = vmatprep.subr.mxu0 0.0
        %2588 = vmatpush1.msra.mxu0 0.0
        %2589 = vmatprep.subr.mxu0 0.0
        %2590 = vmatpush1.msra.mxu0 0.0
        %2591 = vmatprep.subr.mxu0 0.0
        %2592 = vmatpush1.msra.mxu0 0.0
        %2593 = vmatprep.subr.mxu0 0.0
        %2594 = vmatpush1.msra.mxu0 0.0
        %2595 = vmatprep.subr.mxu0 0.0
        %2596 = vmatpush1.msra.mxu0 0.0
        %2597 = vmatprep.subr.mxu0 0.0
        %2598 = vmatpush1.msra.mxu0 0.0
        %2599 = vmatprep.subr.mxu0 0.0
        %2600 = vmatpush1.msra.mxu0 0.0
        %2601 = vmatprep.subr.mxu0 0.0
        %2602 = vmatpush1.msra.mxu0 0.0
        %2603 = vmatprep.subr.mxu0 0.0
        %2604 = vmatpush1.msra.mxu0 0.0
        %2605 = vmatprep.subr.mxu0 0.0
        %2606 = vmatpush1.msra.mxu0 0.0
        %2607 = vmatprep.subr.mxu0 0.0
        %2608 = vmatpush1.msra.mxu0 0.0
        %v2609 = vand.u32 %v2579, 4294901760
        %2610 = vmatprep.subr.mxu0 %v2609
        %v2611 = vand.u32 %v2576, 4294901760
        %2612 = vmatpush1.msra.mxu0 %v2611
        %v2613 = vand.u32 %v2562, 4294901760
        %2614 = vmatprep.subr.mxu0 %v2613
        %v2615 = vand.u32 %v2561, 4294901760
        %2616 = vmatpush1.msra.mxu0 %v2615
        %2617 = vmatprep.subr.mxu0 0.0
        %2618 = vmatpush2.msra.mxu0 0.0
        %2619 = vmatprep.subr.mxu0 0.0
        %2620 = vmatpush2.msra.mxu0 0.0
        %2621 = vmatprep.subr.mxu0 0.0
        %2622 = vmatpush2.msra.mxu0 0.0
        %2623 = vmatprep.subr.mxu0 0.0
        %2624 = vmatpush2.msra.mxu0 0.0
        %2625 = vmatprep.subr.mxu0 0.0
        %2626 = vmatpush2.msra.mxu0 0.0
        %2627 = vmatprep.subr.mxu0 0.0
        %2628 = vmatpush2.msra.mxu0 0.0
        %2629 = vmatprep.subr.mxu0 0.0
        %2630 = vmatpush2.msra.mxu0 0.0
        %2631 = vmatprep.subr.mxu0 0.0
        %2632 = vmatpush2.msra.mxu0 0.0
        %2633 = vmatprep.subr.mxu0 0.0
        %2634 = vmatpush2.msra.mxu0 0.0
        %2635 = vmatprep.subr.mxu0 0.0
        %2636 = vmatpush2.msra.mxu0 0.0
        %2637 = vmatprep.subr.mxu0 0.0
        %2638 = vmatpush2.msra.mxu0 0.0
        %2639 = vmatprep.subr.mxu0 0.0
        %2640 = vmatpush2.msra.mxu0 0.0
        %2641 = vmatprep.subr.mxu0 0.0
        %2642 = vmatpush2.msra.mxu0 0.0
        %2643 = vmatprep.subr.mxu0 0.0
        %2644 = vmatpush2.msra.mxu0 0.0
        %2645 = vmatprep.subr.mxu0 0.0
        %2646 = vmatpush2.msra.mxu0 0.0
        %2647 = vmatprep.subr.mxu0 0.0
        %2648 = vmatpush2.msra.mxu0 0.0
        %2649 = vmatprep.mubr.f32.mxu0 0.0
        %v2650 = vand.u32 %v2572, 4294901760
        %v2651 = vsub.f32 %v2572, %v2650
        %v2652 = vand.u32 %v2651, 4294901760
        %v2653 = vsub.f32 %v2651, %v2652
        %v2654 = vand.u32 %v2653, 4294901760
        %2655 = vmatmul.mubr.f32.gmra.mxu0 %v2654
        %v2656 = vpop.f32.mrf.mxu0
        %v2657 = vadd.f32 %v2568, %v2656
        %v2658 = vpop.f32.mrf.mxu0
        %v2659 = vadd.f32 %v2568, %v2658
        %2660 = vdwg.mxu0
        %2661 = vmatprep.subr.mxu0 0.0
        %2662 = vmatpush1.msra.mxu0 0.0
        %2663 = vmatprep.subr.mxu0 0.0
        %2664 = vmatpush1.msra.mxu0 0.0
        %2665 = vmatprep.subr.mxu0 0.0
        %2666 = vmatpush1.msra.mxu0 0.0
        %2667 = vmatprep.subr.mxu0 0.0
        %2668 = vmatpush1.msra.mxu0 0.0
        %2669 = vmatprep.subr.mxu0 0.0
        %2670 = vmatpush1.msra.mxu0 0.0
        %2671 = vmatprep.subr.mxu0 0.0
        %2672 = vmatpush1.msra.mxu0 0.0
        %2673 = vmatprep.subr.mxu0 0.0
        %2674 = vmatpush1.msra.mxu0 0.0
        %2675 = vmatprep.subr.mxu0 0.0
        %2676 = vmatpush1.msra.mxu0 0.0
        %2677 = vmatprep.subr.mxu0 0.0
        %2678 = vmatpush1.msra.mxu0 0.0
        %2679 = vmatprep.subr.mxu0 0.0
        %2680 = vmatpush1.msra.mxu0 0.0
        %2681 = vmatprep.subr.mxu0 0.0
        %2682 = vmatpush1.msra.mxu0 0.0
        %2683 = vmatprep.subr.mxu0 0.0
        %2684 = vmatpush1.msra.mxu0 0.0
        %2685 = vmatprep.subr.mxu0 0.0
        %2686 = vmatpush1.msra.mxu0 0.0
        %2687 = vmatprep.subr.mxu0 0.0
        %2688 = vmatpush1.msra.mxu0 0.0
        %v2689 = vand.u32 %v2579, 4294901760
        %v2690 = vsub.f32 %v2579, %v2689
        %v2691 = vand.u32 %v2690, 4294901760
        %v2692 = vsub.f32 %v2690, %v2691
        %v2693 = vand.u32 %v2692, 4294901760
        %2694 = vmatprep.subr.mxu0 %v2693
        %v2695 = vand.u32 %v2576, 4294901760
        %v2696 = vsub.f32 %v2576, %v2695
        %v2697 = vand.u32 %v2696, 4294901760
        %v2698 = vsub.f32 %v2696, %v2697
        %v2699 = vand.u32 %v2698, 4294901760
        %2700 = vmatpush1.msra.mxu0 %v2699
        %v2701 = vand.u32 %v2562, 4294901760
        %v2702 = vsub.f32 %v2562, %v2701
        %v2703 = vand.u32 %v2702, 4294901760
        %v2704 = vsub.f32 %v2702, %v2703
        %v2705 = vand.u32 %v2704, 4294901760
        %2706 = vmatprep.subr.mxu0 %v2705
        %v2707 = vand.u32 %v2561, 4294901760
        %v2708 = vsub.f32 %v2561, %v2707
        %v2709 = vand.u32 %v2708, 4294901760
        %v2710 = vsub.f32 %v2708, %v2709
        %v2711 = vand.u32 %v2710, 4294901760
        %2712 = vmatpush1.msra.mxu0 %v2711
        %2713 = vmatprep.subr.mxu0 0.0
        %2714 = vmatpush2.msra.mxu0 0.0
        %2715 = vmatprep.subr.mxu0 0.0
        %2716 = vmatpush2.msra.mxu0 0.0
        %2717 = vmatprep.subr.mxu0 0.0
        %2718 = vmatpush2.msra.mxu0 0.0
        %2719 = vmatprep.subr.mxu0 0.0
        %2720 = vmatpush2.msra.mxu0 0.0
        %2721 = vmatprep.subr.mxu0 0.0
        %2722 = vmatpush2.msra.mxu0 0.0
        %2723 = vmatprep.subr.mxu0 0.0
        %2724 = vmatpush2.msra.mxu0 0.0
        %2725 = vmatprep.subr.mxu0 0.0
        %2726 = vmatpush2.msra.mxu0 0.0
        %2727 = vmatprep.subr.mxu0 0.0
        %2728 = vmatpush2.msra.mxu0 0.0
        %2729 = vmatprep.subr.mxu0 0.0
        %2730 = vmatpush2.msra.mxu0 0.0
        %2731 = vmatprep.subr.mxu0 0.0
        %2732 = vmatpush2.msra.mxu0 0.0
        %2733 = vmatprep.subr.mxu0 0.0
        %2734 = vmatpush2.msra.mxu0 0.0
        %2735 = vmatprep.subr.mxu0 0.0
        %2736 = vmatpush2.msra.mxu0 0.0
        %2737 = vmatprep.subr.mxu0 0.0
        %2738 = vmatpush2.msra.mxu0 0.0
        %2739 = vmatprep.subr.mxu0 0.0
        %2740 = vmatpush2.msra.mxu0 0.0
        %2741 = vmatprep.subr.mxu0 0.0
        %2742 = vmatpush2.msra.mxu0 0.0
        %2743 = vmatprep.subr.mxu0 0.0
        %2744 = vmatpush2.msra.mxu0 0.0
        %2745 = vmatprep.mubr.f32.mxu0 0.0
        %v2746 = vand.u32 %v2572, 4294901760
        %2747 = vmatmul.mubr.f32.gmra.mxu0 %v2746
        %v2748 = vpop.f32.mrf.mxu0
        %v2749 = vadd.f32 %v2657, %v2748
        %v2750 = vpop.f32.mrf.mxu0
        %v2751 = vadd.f32 %v2659, %v2750
        %2752 = vdwg.mxu0
        %2753 = vmatprep.subr.mxu0 0.0
        %2754 = vmatpush1.msra.mxu0 0.0
        %2755 = vmatprep.subr.mxu0 0.0
        %2756 = vmatpush1.msra.mxu0 0.0
        %2757 = vmatprep.subr.mxu0 0.0
        %2758 = vmatpush1.msra.mxu0 0.0
        %2759 = vmatprep.subr.mxu0 0.0
        %2760 = vmatpush1.msra.mxu0 0.0
        %2761 = vmatprep.subr.mxu0 0.0
        %2762 = vmatpush1.msra.mxu0 0.0
        %2763 = vmatprep.subr.mxu0 0.0
        %2764 = vmatpush1.msra.mxu0 0.0
        %2765 = vmatprep.subr.mxu0 0.0
        %2766 = vmatpush1.msra.mxu0 0.0
        %2767 = vmatprep.subr.mxu0 0.0
        %2768 = vmatpush1.msra.mxu0 0.0
        %2769 = vmatprep.subr.mxu0 0.0
        %2770 = vmatpush1.msra.mxu0 0.0
        %2771 = vmatprep.subr.mxu0 0.0
        %2772 = vmatpush1.msra.mxu0 0.0
        %2773 = vmatprep.subr.mxu0 0.0
        %2774 = vmatpush1.msra.mxu0 0.0
        %2775 = vmatprep.subr.mxu0 0.0
        %2776 = vmatpush1.msra.mxu0 0.0
        %2777 = vmatprep.subr.mxu0 0.0
        %2778 = vmatpush1.msra.mxu0 0.0
        %2779 = vmatprep.subr.mxu0 0.0
        %2780 = vmatpush1.msra.mxu0 0.0
        %v2781 = vand.u32 %v2579, 4294901760
        %v2782 = vsub.f32 %v2579, %v2781
        %2783 = vmatprep.subr.mxu0 %v2782
        %v2784 = vand.u32 %v2576, 4294901760
        %v2785 = vsub.f32 %v2576, %v2784
        %2786 = vmatpush1.msra.mxu0 %v2785
        %v2787 = vand.u32 %v2562, 4294901760
        %v2788 = vsub.f32 %v2562, %v2787
        %2789 = vmatprep.subr.mxu0 %v2788
        %v2790 = vand.u32 %v2561, 4294901760
        %v2791 = vsub.f32 %v2561, %v2790
        %2792 = vmatpush1.msra.mxu0 %v2791
        %2793 = vmatprep.subr.mxu0 0.0
        %2794 = vmatpush2.msra.mxu0 0.0
        %2795 = vmatprep.subr.mxu0 0.0
        %2796 = vmatpush2.msra.mxu0 0.0
        %2797 = vmatprep.subr.mxu0 0.0
        %2798 = vmatpush2.msra.mxu0 0.0
        %2799 = vmatprep.subr.mxu0 0.0
        %2800 = vmatpush2.msra.mxu0 0.0
        %2801 = vmatprep.subr.mxu0 0.0
        %2802 = vmatpush2.msra.mxu0 0.0
        %2803 = vmatprep.subr.mxu0 0.0
        %2804 = vmatpush2.msra.mxu0 0.0
        %2805 = vmatprep.subr.mxu0 0.0
        %2806 = vmatpush2.msra.mxu0 0.0
        %2807 = vmatprep.subr.mxu0 0.0
        %2808 = vmatpush2.msra.mxu0 0.0
        %2809 = vmatprep.subr.mxu0 0.0
        %2810 = vmatpush2.msra.mxu0 0.0
        %2811 = vmatprep.subr.mxu0 0.0
        %2812 = vmatpush2.msra.mxu0 0.0
        %2813 = vmatprep.subr.mxu0 0.0
        %2814 = vmatpush2.msra.mxu0 0.0
        %2815 = vmatprep.subr.mxu0 0.0
        %2816 = vmatpush2.msra.mxu0 0.0
        %2817 = vmatprep.subr.mxu0 0.0
        %2818 = vmatpush2.msra.mxu0 0.0
        %2819 = vmatprep.subr.mxu0 0.0
        %2820 = vmatpush2.msra.mxu0 0.0
        %2821 = vmatprep.subr.mxu0 0.0
        %2822 = vmatpush2.msra.mxu0 0.0
        %2823 = vmatprep.subr.mxu0 0.0
        %2824 = vmatpush2.msra.mxu0 0.0
        %2825 = vmatprep.mubr.f32.mxu0 0.0
        %v2826 = vand.u32 %v2572, 4294901760
        %v2827 = vsub.f32 %v2572, %v2826
        %2828 = vmatmul.mubr.f32.gmra.mxu0 %v2827
        %v2829 = vpop.f32.mrf.mxu0
        %v2830 = vadd.f32 %v2749, %v2829
        %v2831 = vpop.f32.mrf.mxu0
        %v2832 = vadd.f32 %v2751, %v2831
        %2833 = vdwg.mxu0
        %2834 = vmatprep.subr.mxu0 0.0
        %2835 = vmatpush1.msra.mxu0 0.0
        %2836 = vmatprep.subr.mxu0 0.0
        %2837 = vmatpush1.msra.mxu0 0.0
        %2838 = vmatprep.subr.mxu0 0.0
        %2839 = vmatpush1.msra.mxu0 0.0
        %2840 = vmatprep.subr.mxu0 0.0
        %2841 = vmatpush1.msra.mxu0 0.0
        %2842 = vmatprep.subr.mxu0 0.0
        %2843 = vmatpush1.msra.mxu0 0.0
        %2844 = vmatprep.subr.mxu0 0.0
        %2845 = vmatpush1.msra.mxu0 0.0
        %2846 = vmatprep.subr.mxu0 0.0
        %2847 = vmatpush1.msra.mxu0 0.0
        %2848 = vmatprep.subr.mxu0 0.0
        %2849 = vmatpush1.msra.mxu0 0.0
        %2850 = vmatprep.subr.mxu0 0.0
        %2851 = vmatpush1.msra.mxu0 0.0
        %2852 = vmatprep.subr.mxu0 0.0
        %2853 = vmatpush1.msra.mxu0 0.0
        %2854 = vmatprep.subr.mxu0 0.0
        %2855 = vmatpush1.msra.mxu0 0.0
        %2856 = vmatprep.subr.mxu0 0.0
        %2857 = vmatpush1.msra.mxu0 0.0
        %2858 = vmatprep.subr.mxu0 0.0
        %2859 = vmatpush1.msra.mxu0 0.0
        %2860 = vmatprep.subr.mxu0 0.0
        %2861 = vmatpush1.msra.mxu0 0.0
        %v2862 = vand.u32 %v2579, 4294901760
        %2863 = vmatprep.subr.mxu0 %v2862
        %v2864 = vand.u32 %v2576, 4294901760
        %2865 = vmatpush1.msra.mxu0 %v2864
        %v2866 = vand.u32 %v2562, 4294901760
        %2867 = vmatprep.subr.mxu0 %v2866
        %v2868 = vand.u32 %v2561, 4294901760
        %2869 = vmatpush1.msra.mxu0 %v2868
        %2870 = vmatprep.subr.mxu0 0.0
        %2871 = vmatpush2.msra.mxu0 0.0
        %2872 = vmatprep.subr.mxu0 0.0
        %2873 = vmatpush2.msra.mxu0 0.0
        %2874 = vmatprep.subr.mxu0 0.0
        %2875 = vmatpush2.msra.mxu0 0.0
        %2876 = vmatprep.subr.mxu0 0.0
        %2877 = vmatpush2.msra.mxu0 0.0
        %2878 = vmatprep.subr.mxu0 0.0
        %2879 = vmatpush2.msra.mxu0 0.0
        %2880 = vmatprep.subr.mxu0 0.0
        %2881 = vmatpush2.msra.mxu0 0.0
        %2882 = vmatprep.subr.mxu0 0.0
        %2883 = vmatpush2.msra.mxu0 0.0
        %2884 = vmatprep.subr.mxu0 0.0
        %2885 = vmatpush2.msra.mxu0 0.0
        %2886 = vmatprep.subr.mxu0 0.0
        %2887 = vmatpush2.msra.mxu0 0.0
        %2888 = vmatprep.subr.mxu0 0.0
        %2889 = vmatpush2.msra.mxu0 0.0
        %2890 = vmatprep.subr.mxu0 0.0
        %2891 = vmatpush2.msra.mxu0 0.0
        %2892 = vmatprep.subr.mxu0 0.0
        %2893 = vmatpush2.msra.mxu0 0.0
        %2894 = vmatprep.subr.mxu0 0.0
        %2895 = vmatpush2.msra.mxu0 0.0
        %2896 = vmatprep.subr.mxu0 0.0
        %2897 = vmatpush2.msra.mxu0 0.0
        %2898 = vmatprep.subr.mxu0 0.0
        %2899 = vmatpush2.msra.mxu0 0.0
        %2900 = vmatprep.subr.mxu0 0.0
        %2901 = vmatpush2.msra.mxu0 0.0
        %2902 = vmatprep.mubr.f32.mxu0 0.0
        %v2903 = vand.u32 %v2572, 4294901760
        %v2904 = vsub.f32 %v2572, %v2903
        %v2905 = vand.u32 %v2904, 4294901760
        %2906 = vmatmul.mubr.f32.gmra.mxu0 %v2905
        %v2907 = vpop.f32.mrf.mxu0
        %v2908 = vadd.f32 %v2830, %v2907
        %v2909 = vpop.f32.mrf.mxu0
        %v2910 = vadd.f32 %v2832, %v2909
        %2911 = vdwg.mxu0
        %2912 = vmatprep.subr.mxu0 0.0
        %2913 = vmatpush1.msra.mxu0 0.0
        %2914 = vmatprep.subr.mxu0 0.0
        %2915 = vmatpush1.msra.mxu0 0.0
        %2916 = vmatprep.subr.mxu0 0.0
        %2917 = vmatpush1.msra.mxu0 0.0
        %2918 = vmatprep.subr.mxu0 0.0
        %2919 = vmatpush1.msra.mxu0 0.0
        %2920 = vmatprep.subr.mxu0 0.0
        %2921 = vmatpush1.msra.mxu0 0.0
        %2922 = vmatprep.subr.mxu0 0.0
        %2923 = vmatpush1.msra.mxu0 0.0
        %2924 = vmatprep.subr.mxu0 0.0
        %2925 = vmatpush1.msra.mxu0 0.0
        %2926 = vmatprep.subr.mxu0 0.0
        %2927 = vmatpush1.msra.mxu0 0.0
        %2928 = vmatprep.subr.mxu0 0.0
        %2929 = vmatpush1.msra.mxu0 0.0
        %2930 = vmatprep.subr.mxu0 0.0
        %2931 = vmatpush1.msra.mxu0 0.0
        %2932 = vmatprep.subr.mxu0 0.0
        %2933 = vmatpush1.msra.mxu0 0.0
        %2934 = vmatprep.subr.mxu0 0.0
        %2935 = vmatpush1.msra.mxu0 0.0
        %2936 = vmatprep.subr.mxu0 0.0
        %2937 = vmatpush1.msra.mxu0 0.0
        %2938 = vmatprep.subr.mxu0 0.0
        %2939 = vmatpush1.msra.mxu0 0.0
        %v2940 = vand.u32 %v2579, 4294901760
        %v2941 = vsub.f32 %v2579, %v2940
        %v2942 = vand.u32 %v2941, 4294901760
        %2943 = vmatprep.subr.mxu0 %v2942
        %v2944 = vand.u32 %v2576, 4294901760
        %v2945 = vsub.f32 %v2576, %v2944
        %v2946 = vand.u32 %v2945, 4294901760
        %2947 = vmatpush1.msra.mxu0 %v2946
        %v2948 = vand.u32 %v2562, 4294901760
        %v2949 = vsub.f32 %v2562, %v2948
        %v2950 = vand.u32 %v2949, 4294901760
        %2951 = vmatprep.subr.mxu0 %v2950
        %v2952 = vand.u32 %v2561, 4294901760
        %v2953 = vsub.f32 %v2561, %v2952
        %v2954 = vand.u32 %v2953, 4294901760
        %2955 = vmatpush1.msra.mxu0 %v2954
        %2956 = vmatprep.subr.mxu0 0.0
        %2957 = vmatpush2.msra.mxu0 0.0
        %2958 = vmatprep.subr.mxu0 0.0
        %2959 = vmatpush2.msra.mxu0 0.0
        %2960 = vmatprep.subr.mxu0 0.0
        %2961 = vmatpush2.msra.mxu0 0.0
        %2962 = vmatprep.subr.mxu0 0.0
        %2963 = vmatpush2.msra.mxu0 0.0
        %2964 = vmatprep.subr.mxu0 0.0
        %2965 = vmatpush2.msra.mxu0 0.0
        %2966 = vmatprep.subr.mxu0 0.0
        %2967 = vmatpush2.msra.mxu0 0.0
        %2968 = vmatprep.subr.mxu0 0.0
        %2969 = vmatpush2.msra.mxu0 0.0
        %2970 = vmatprep.subr.mxu0 0.0
        %2971 = vmatpush2.msra.mxu0 0.0
        %2972 = vmatprep.subr.mxu0 0.0
        %2973 = vmatpush2.msra.mxu0 0.0
        %2974 = vmatprep.subr.mxu0 0.0
        %2975 = vmatpush2.msra.mxu0 0.0
        %2976 = vmatprep.subr.mxu0 0.0
        %2977 = vmatpush2.msra.mxu0 0.0
        %2978 = vmatprep.subr.mxu0 0.0
        %2979 = vmatpush2.msra.mxu0 0.0
        %2980 = vmatprep.subr.mxu0 0.0
        %2981 = vmatpush2.msra.mxu0 0.0
        %2982 = vmatprep.subr.mxu0 0.0
        %2983 = vmatpush2.msra.mxu0 0.0
        %2984 = vmatprep.subr.mxu0 0.0
        %2985 = vmatpush2.msra.mxu0 0.0
        %2986 = vmatprep.subr.mxu0 0.0
        %2987 = vmatpush2.msra.mxu0 0.0
        %2988 = vmatprep.mubr.f32.mxu0 0.0
        %v2989 = vand.u32 %v2572, 4294901760
        %2990 = vmatmul.mubr.f32.gmra.mxu0 %v2989
        %v2991 = vpop.f32.mrf.mxu0
        %v2992 = vadd.f32 %v2908, %v2991
        %v2993 = vpop.f32.mrf.mxu0
        %v2994 = vadd.f32 %v2910, %v2993
        %2995 = vdwg.mxu0
        %2996 = vmatprep.subr.mxu0 0.0
        %2997 = vmatpush1.msra.mxu0 0.0
        %2998 = vmatprep.subr.mxu0 0.0
        %2999 = vmatpush1.msra.mxu0 0.0
        %3000 = vmatprep.subr.mxu0 0.0
        %3001 = vmatpush1.msra.mxu0 0.0
        %3002 = vmatprep.subr.mxu0 0.0
        %3003 = vmatpush1.msra.mxu0 0.0
        %3004 = vmatprep.subr.mxu0 0.0
        %3005 = vmatpush1.msra.mxu0 0.0
        %3006 = vmatprep.subr.mxu0 0.0
        %3007 = vmatpush1.msra.mxu0 0.0
        %3008 = vmatprep.subr.mxu0 0.0
        %3009 = vmatpush1.msra.mxu0 0.0
        %3010 = vmatprep.subr.mxu0 0.0
        %3011 = vmatpush1.msra.mxu0 0.0
        %3012 = vmatprep.subr.mxu0 0.0
        %3013 = vmatpush1.msra.mxu0 0.0
        %3014 = vmatprep.subr.mxu0 0.0
        %3015 = vmatpush1.msra.mxu0 0.0
        %3016 = vmatprep.subr.mxu0 0.0
        %3017 = vmatpush1.msra.mxu0 0.0
        %3018 = vmatprep.subr.mxu0 0.0
        %3019 = vmatpush1.msra.mxu0 0.0
        %3020 = vmatprep.subr.mxu0 0.0
        %3021 = vmatpush1.msra.mxu0 0.0
        %3022 = vmatprep.subr.mxu0 0.0
        %3023 = vmatpush1.msra.mxu0 0.0
        %v3024 = vand.u32 %v2579, 4294901760
        %3025 = vmatprep.subr.mxu0 %v3024
        %v3026 = vand.u32 %v2576, 4294901760
        %3027 = vmatpush1.msra.mxu0 %v3026
        %v3028 = vand.u32 %v2562, 4294901760
        %3029 = vmatprep.subr.mxu0 %v3028
        %v3030 = vand.u32 %v2561, 4294901760
        %3031 = vmatpush1.msra.mxu0 %v3030
        %3032 = vmatprep.subr.mxu0 0.0
        %3033 = vmatpush2.msra.mxu0 0.0
        %3034 = vmatprep.subr.mxu0 0.0
        %3035 = vmatpush2.msra.mxu0 0.0
        %3036 = vmatprep.subr.mxu0 0.0
        %3037 = vmatpush2.msra.mxu0 0.0
        %3038 = vmatprep.subr.mxu0 0.0
        %3039 = vmatpush2.msra.mxu0 0.0
        %3040 = vmatprep.subr.mxu0 0.0
        %3041 = vmatpush2.msra.mxu0 0.0
        %3042 = vmatprep.subr.mxu0 0.0
        %3043 = vmatpush2.msra.mxu0 0.0
        %3044 = vmatprep.subr.mxu0 0.0
        %3045 = vmatpush2.msra.mxu0 0.0
        %3046 = vmatprep.subr.mxu0 0.0
        %3047 = vmatpush2.msra.mxu0 0.0
        %3048 = vmatprep.subr.mxu0 0.0
        %3049 = vmatpush2.msra.mxu0 0.0
        %3050 = vmatprep.subr.mxu0 0.0
        %3051 = vmatpush2.msra.mxu0 0.0
        %3052 = vmatprep.subr.mxu0 0.0
        %3053 = vmatpush2.msra.mxu0 0.0
        %3054 = vmatprep.subr.mxu0 0.0
        %3055 = vmatpush2.msra.mxu0 0.0
        %3056 = vmatprep.subr.mxu0 0.0
        %3057 = vmatpush2.msra.mxu0 0.0
        %3058 = vmatprep.subr.mxu0 0.0
        %3059 = vmatpush2.msra.mxu0 0.0
        %3060 = vmatprep.subr.mxu0 0.0
        %3061 = vmatpush2.msra.mxu0 0.0
        %3062 = vmatprep.subr.mxu0 0.0
        %3063 = vmatpush2.msra.mxu0 0.0
        %3064 = vmatprep.mubr.f32.mxu0 0.0
        %v3065 = vand.u32 %v2572, 4294901760
        %3066 = vmatmul.mubr.f32.gmra.mxu0 %v3065
        %v3067 = vpop.f32.mrf.mxu0
        %v3068 = vadd.f32 %v2992, %v3067
        %v3069 = vpop.f32.mrf.mxu0
        %v3070 = vadd.f32 %v2994, %v3069
        %3071 = vdwg.mxu0
        %3072 = vst [vmem:[%s830] sm:$0xf] %v3068
        %3073 = vst [vmem:[%s830 + $0x8] sm:$0xf] %v3070
        %s3074 = scalar_lea.vmem %s767, 16 [#allocation2]
        %v3075 = vld [vmem:[%s3074] sm:$0xff]
        %v3076 = vld [vmem:[%s3074 + $0x8] sm:$0xff]
        %s3077 = scalar_lea.vmem %s774, 8 [#allocation3]
        %v3078 = vld [vmem:[%s3077] sm:$0xff]
        %3082 = vrot.lane.b32.xlu0 %v3075, 127
        %v3083 = vpop.permute.xlu0 %3082
        %3084 = vrot.lane.b32.xlu0 %v3076, 127
        %v3085 = vpop.permute.xlu0 %3084
        %3086 = vrot.lane.b32.xlu0 %v3078, 127
        %v3087 = vpop.permute.xlu0 %3086
        %v3088 = vsel %vm859, %v3083, %v3085
        %v3089 = vsel %vm859, %v3085, %v3087
        %3092 = vrot.lane.b32.xlu0 %v3075, 126
        %v3093 = vpop.permute.xlu0 %3092
        %3094 = vrot.lane.b32.xlu0 %v3076, 126
        %v3095 = vpop.permute.xlu0 %3094
        %3096 = vrot.lane.b32.xlu0 %v3078, 126
        %v3097 = vpop.permute.xlu0 %3096
        %v3098 = vsel %vm870, %v3093, %v3095
        %v3099 = vsel %vm870, %v3095, %v3097
        %3102 = vrot.lane.b32.xlu0 %v3075, 125
        %v3103 = vpop.permute.xlu0 %3102
        %3104 = vrot.lane.b32.xlu0 %v3076, 125
        %v3105 = vpop.permute.xlu0 %3104
        %3106 = vrot.lane.b32.xlu0 %v3078, 125
        %v3107 = vpop.permute.xlu0 %3106
        %v3108 = vsel %vm881, %v3103, %v3105
        %v3109 = vsel %vm881, %v3105, %v3107
        %3112 = vrot.lane.b32.xlu0 %v3075, 124
        %v3113 = vpop.permute.xlu0 %3112
        %3114 = vrot.lane.b32.xlu0 %v3076, 124
        %v3115 = vpop.permute.xlu0 %3114
        %3116 = vrot.lane.b32.xlu0 %v3078, 124
        %v3117 = vpop.permute.xlu0 %3116
        %v3118 = vsel %vm892, %v3113, %v3115
        %v3119 = vsel %vm892, %v3115, %v3117
        %3122 = vrot.lane.b32.xlu0 %v3075, 123
        %v3123 = vpop.permute.xlu0 %3122
        %3124 = vrot.lane.b32.xlu0 %v3076, 123
        %v3125 = vpop.permute.xlu0 %3124
        %3126 = vrot.lane.b32.xlu0 %v3078, 123
        %v3127 = vpop.permute.xlu0 %3126
        %v3128 = vsel %vm903, %v3123, %v3125
        %v3129 = vsel %vm903, %v3125, %v3127
        %3132 = vrot.lane.b32.xlu0 %v3075, 122
        %v3133 = vpop.permute.xlu0 %3132
        %3134 = vrot.lane.b32.xlu0 %v3076, 122
        %v3135 = vpop.permute.xlu0 %3134
        %3136 = vrot.lane.b32.xlu0 %v3078, 122
        %v3137 = vpop.permute.xlu0 %3136
        %v3138 = vsel %vm914, %v3133, %v3135
        %v3139 = vsel %vm914, %v3135, %v3137
        %3142 = vrot.lane.b32.xlu0 %v3075, 121
        %v3143 = vpop.permute.xlu0 %3142
        %3144 = vrot.lane.b32.xlu0 %v3076, 121
        %v3145 = vpop.permute.xlu0 %3144
        %3146 = vrot.lane.b32.xlu0 %v3078, 121
        %v3147 = vpop.permute.xlu0 %3146
        %v3148 = vsel %vm925, %v3143, %v3145
        %v3149 = vsel %vm925, %v3145, %v3147
        %3152 = vrot.lane.b32.xlu0 %v3075, 120
        %v3153 = vpop.permute.xlu0 %3152
        %3154 = vrot.lane.b32.xlu0 %v3076, 120
        %v3155 = vpop.permute.xlu0 %3154
        %3156 = vrot.lane.b32.xlu0 %v3078, 120
        %v3157 = vpop.permute.xlu0 %3156
        %v3158 = vsel %vm936, %v3153, %v3155
        %v3159 = vsel %vm936, %v3155, %v3157
        %3162 = vrot.lane.b32.xlu0 %v3075, 119
        %v3163 = vpop.permute.xlu0 %3162
        %3164 = vrot.lane.b32.xlu0 %v3076, 119
        %v3165 = vpop.permute.xlu0 %3164
        %3166 = vrot.lane.b32.xlu0 %v3078, 119
        %v3167 = vpop.permute.xlu0 %3166
        %v3168 = vsel %vm947, %v3163, %v3165
        %v3169 = vsel %vm947, %v3165, %v3167
        %3172 = vmatprep.subr.mxu0 0.0
        %3173 = vmatpush1.msra.mxu0 0.0
        %3174 = vmatprep.subr.mxu0 0.0
        %3175 = vmatpush1.msra.mxu0 0.0
        %3176 = vmatprep.subr.mxu0 0.0
        %3177 = vmatpush1.msra.mxu0 0.0
        %3178 = vmatprep.subr.mxu0 0.0
        %3179 = vmatpush1.msra.mxu0 0.0
        %3180 = vmatprep.subr.mxu0 0.0
        %3181 = vmatpush1.msra.mxu0 0.0
        %3182 = vmatprep.subr.mxu0 0.0
        %3183 = vmatpush1.msra.mxu0 0.0
        %v3184 = vand.u32 %v3169, 4294901760
        %3185 = vmatprep.subr.mxu0 %v3184
        %v3186 = vand.u32 %v3168, 4294901760
        %3187 = vmatpush1.msra.mxu0 %v3186
        %v3188 = vand.u32 %v3159, 4294901760
        %3189 = vmatprep.subr.mxu0 %v3188
        %v3190 = vand.u32 %v3158, 4294901760
        %3191 = vmatpush1.msra.mxu0 %v3190
        %v3192 = vand.u32 %v3149, 4294901760
        %3193 = vmatprep.subr.mxu0 %v3192
        %v3194 = vand.u32 %v3148, 4294901760
        %3195 = vmatpush1.msra.mxu0 %v3194
        %v3196 = vand.u32 %v3139, 4294901760
        %3197 = vmatprep.subr.mxu0 %v3196
        %v3198 = vand.u32 %v3138, 4294901760
        %3199 = vmatpush1.msra.mxu0 %v3198
        %v3200 = vand.u32 %v3129, 4294901760
        %3201 = vmatprep.subr.mxu0 %v3200
        %v3202 = vand.u32 %v3128, 4294901760
        %3203 = vmatpush1.msra.mxu0 %v3202
        %v3204 = vand.u32 %v3119, 4294901760
        %3205 = vmatprep.subr.mxu0 %v3204
        %v3206 = vand.u32 %v3118, 4294901760
        %3207 = vmatpush1.msra.mxu0 %v3206
        %v3208 = vand.u32 %v3109, 4294901760
        %3209 = vmatprep.subr.mxu0 %v3208
        %v3210 = vand.u32 %v3108, 4294901760
        %3211 = vmatpush1.msra.mxu0 %v3210
        %v3212 = vand.u32 %v3099, 4294901760
        %3213 = vmatprep.subr.mxu0 %v3212
        %v3214 = vand.u32 %v3098, 4294901760
        %3215 = vmatpush1.msra.mxu0 %v3214
        %v3216 = vand.u32 %v3089, 4294901760
        %3217 = vmatprep.subr.mxu0 %v3216
        %v3218 = vand.u32 %v3088, 4294901760
        %3219 = vmatpush1.msra.mxu0 %v3218
        %v3220 = vand.u32 %v3076, 4294901760
        %3221 = vmatprep.subr.mxu0 %v3220
        %v3222 = vand.u32 %v3075, 4294901760
        %3223 = vmatpush1.msra.mxu0 %v3222
        %3224 = vmatprep.subr.mxu0 0.0
        %3225 = vmatpush2.msra.mxu0 0.0
        %3226 = vmatprep.subr.mxu0 0.0
        %3227 = vmatpush2.msra.mxu0 0.0
        %3228 = vmatprep.subr.mxu0 0.0
        %3229 = vmatpush2.msra.mxu0 0.0
        %3230 = vmatprep.subr.mxu0 0.0
        %3231 = vmatpush2.msra.mxu0 0.0
        %3232 = vmatprep.subr.mxu0 0.0
        %3233 = vmatpush2.msra.mxu0 0.0
        %3234 = vmatprep.subr.mxu0 0.0
        %3235 = vmatpush2.msra.mxu0 0.0
        %3236 = vmatprep.subr.mxu0 0.0
        %3237 = vmatpush2.msra.mxu0 0.0
        %3238 = vmatprep.subr.mxu0 0.0
        %3239 = vmatpush2.msra.mxu0 0.0
        %3240 = vmatprep.subr.mxu0 0.0
        %3241 = vmatpush2.msra.mxu0 0.0
        %3242 = vmatprep.subr.mxu0 0.0
        %3243 = vmatpush2.msra.mxu0 0.0
        %3244 = vmatprep.subr.mxu0 0.0
        %3245 = vmatpush2.msra.mxu0 0.0
        %3246 = vmatprep.subr.mxu0 0.0
        %3247 = vmatpush2.msra.mxu0 0.0
        %3248 = vmatprep.subr.mxu0 0.0
        %3249 = vmatpush2.msra.mxu0 0.0
        %3250 = vmatprep.subr.mxu0 0.0
        %3251 = vmatpush2.msra.mxu0 0.0
        %3252 = vmatprep.subr.mxu0 0.0
        %3253 = vmatpush2.msra.mxu0 0.0
        %3254 = vmatprep.subr.mxu0 0.0
        %3255 = vmatpush2.msra.mxu0 0.0
        %3256 = vmatprep.mubr.f32.mxu0 0.0
        %v3257 = vand.u32 %v979, 4294901760
        %v3258 = vsub.f32 %v979, %v3257
        %v3259 = vand.u32 %v3258, 4294901760
        %v3260 = vsub.f32 %v3258, %v3259
        %v3261 = vand.u32 %v3260, 4294901760
        %3262 = vmatmul.mubr.f32.gmra.mxu0 %v3261
        %v3263 = vpop.f32.mrf.mxu0
        %v3264 = vadd.f32 %v955, %v3263
        %v3265 = vpop.f32.mrf.mxu0
        %v3266 = vadd.f32 %v955, %v3265
        %3267 = vmatprep.mubr.f32.mxu0 0.0
        %v3268 = vand.u32 %v982, 4294901760
        %v3269 = vsub.f32 %v982, %v3268
        %v3270 = vand.u32 %v3269, 4294901760
        %v3271 = vsub.f32 %v3269, %v3270
        %v3272 = vand.u32 %v3271, 4294901760
        %3273 = vmatmul.mubr.f32.gmra.mxu0 %v3272
        %v3274 = vpop.f32.mrf.mxu0
        %v3275 = vadd.f32 %v960, %v3274
        %v3276 = vpop.f32.mrf.mxu0
        %v3277 = vadd.f32 %v960, %v3276
        %3278 = vmatprep.mubr.f32.mxu0 0.0
        %v3279 = vand.u32 %v985, 4294901760
        %v3280 = vsub.f32 %v985, %v3279
        %v3281 = vand.u32 %v3280, 4294901760
        %v3282 = vsub.f32 %v3280, %v3281
        %v3283 = vand.u32 %v3282, 4294901760
        %3284 = vmatmul.mubr.f32.gmra.mxu0 %v3283
        %v3285 = vpop.f32.mrf.mxu0
        %v3286 = vadd.f32 %v965, %v3285
        %v3287 = vpop.f32.mrf.mxu0
        %v3288 = vadd.f32 %v965, %v3287
        %3289 = vmatprep.mubr.f32.mxu0 0.0
        %v3290 = vand.u32 %v988, 4294901760
        %v3291 = vsub.f32 %v988, %v3290
        %v3292 = vand.u32 %v3291, 4294901760
        %v3293 = vsub.f32 %v3291, %v3292
        %v3294 = vand.u32 %v3293, 4294901760
        %3295 = vmatmul.mubr.f32.gmra.mxu0 %v3294
        %v3296 = vpop.f32.mrf.mxu0
        %v3297 = vadd.f32 %v970, %v3296
        %v3298 = vpop.f32.mrf.mxu0
        %v3299 = vadd.f32 %v970, %v3298
        %3300 = vmatprep.mubr.f32.mxu0 0.0
        %v3301 = vand.u32 %v991, 4294901760
        %v3302 = vsub.f32 %v991, %v3301
        %v3303 = vand.u32 %v3302, 4294901760
        %v3304 = vsub.f32 %v3302, %v3303
        %v3305 = vand.u32 %v3304, 4294901760
        %3306 = vmatmul.mubr.f32.gmra.mxu0 %v3305
        %v3307 = vpop.f32.mrf.mxu0
        %v3308 = vadd.f32 %v975, %v3307
        %v3309 = vpop.f32.mrf.mxu0
        %v3310 = vadd.f32 %v975, %v3309
        %3311 = vdwg.mxu0
        %3312 = vmatprep.subr.mxu0 0.0
        %3313 = vmatpush1.msra.mxu0 0.0
        %3314 = vmatprep.subr.mxu0 0.0
        %3315 = vmatpush1.msra.mxu0 0.0
        %3316 = vmatprep.subr.mxu0 0.0
        %3317 = vmatpush1.msra.mxu0 0.0
        %3318 = vmatprep.subr.mxu0 0.0
        %3319 = vmatpush1.msra.mxu0 0.0
        %3320 = vmatprep.subr.mxu0 0.0
        %3321 = vmatpush1.msra.mxu0 0.0
        %3322 = vmatprep.subr.mxu0 0.0
        %3323 = vmatpush1.msra.mxu0 0.0
        %v3324 = vand.u32 %v3169, 4294901760
        %v3325 = vsub.f32 %v3169, %v3324
        %v3326 = vand.u32 %v3325, 4294901760
        %v3327 = vsub.f32 %v3325, %v3326
        %v3328 = vand.u32 %v3327, 4294901760
        %3329 = vmatprep.subr.mxu0 %v3328
        %v3330 = vand.u32 %v3168, 4294901760
        %v3331 = vsub.f32 %v3168, %v3330
        %v3332 = vand.u32 %v3331, 4294901760
        %v3333 = vsub.f32 %v3331, %v3332
        %v3334 = vand.u32 %v3333, 4294901760
        %3335 = vmatpush1.msra.mxu0 %v3334
        %v3336 = vand.u32 %v3159, 4294901760
        %v3337 = vsub.f32 %v3159, %v3336
        %v3338 = vand.u32 %v3337, 4294901760
        %v3339 = vsub.f32 %v3337, %v3338
        %v3340 = vand.u32 %v3339, 4294901760
        %3341 = vmatprep.subr.mxu0 %v3340
        %v3342 = vand.u32 %v3158, 4294901760
        %v3343 = vsub.f32 %v3158, %v3342
        %v3344 = vand.u32 %v3343, 4294901760
        %v3345 = vsub.f32 %v3343, %v3344
        %v3346 = vand.u32 %v3345, 4294901760
        %3347 = vmatpush1.msra.mxu0 %v3346
        %v3348 = vand.u32 %v3149, 4294901760
        %v3349 = vsub.f32 %v3149, %v3348
        %v3350 = vand.u32 %v3349, 4294901760
        %v3351 = vsub.f32 %v3349, %v3350
        %v3352 = vand.u32 %v3351, 4294901760
        %3353 = vmatprep.subr.mxu0 %v3352
        %v3354 = vand.u32 %v3148, 4294901760
        %v3355 = vsub.f32 %v3148, %v3354
        %v3356 = vand.u32 %v3355, 4294901760
        %v3357 = vsub.f32 %v3355, %v3356
        %v3358 = vand.u32 %v3357, 4294901760
        %3359 = vmatpush1.msra.mxu0 %v3358
        %v3360 = vand.u32 %v3139, 4294901760
        %v3361 = vsub.f32 %v3139, %v3360
        %v3362 = vand.u32 %v3361, 4294901760
        %v3363 = vsub.f32 %v3361, %v3362
        %v3364 = vand.u32 %v3363, 4294901760
        %3365 = vmatprep.subr.mxu0 %v3364
        %v3366 = vand.u32 %v3138, 4294901760
        %v3367 = vsub.f32 %v3138, %v3366
        %v3368 = vand.u32 %v3367, 4294901760
        %v3369 = vsub.f32 %v3367, %v3368
        %v3370 = vand.u32 %v3369, 4294901760
        %3371 = vmatpush1.msra.mxu0 %v3370
        %v3372 = vand.u32 %v3129, 4294901760
        %v3373 = vsub.f32 %v3129, %v3372
        %v3374 = vand.u32 %v3373, 4294901760
        %v3375 = vsub.f32 %v3373, %v3374
        %v3376 = vand.u32 %v3375, 4294901760
        %3377 = vmatprep.subr.mxu0 %v3376
        %v3378 = vand.u32 %v3128, 4294901760
        %v3379 = vsub.f32 %v3128, %v3378
        %v3380 = vand.u32 %v3379, 4294901760
        %v3381 = vsub.f32 %v3379, %v3380
        %v3382 = vand.u32 %v3381, 4294901760
        %3383 = vmatpush1.msra.mxu0 %v3382
        %v3384 = vand.u32 %v3119, 4294901760
        %v3385 = vsub.f32 %v3119, %v3384
        %v3386 = vand.u32 %v3385, 4294901760
        %v3387 = vsub.f32 %v3385, %v3386
        %v3388 = vand.u32 %v3387, 4294901760
        %3389 = vmatprep.subr.mxu0 %v3388
        %v3390 = vand.u32 %v3118, 4294901760
        %v3391 = vsub.f32 %v3118, %v3390
        %v3392 = vand.u32 %v3391, 4294901760
        %v3393 = vsub.f32 %v3391, %v3392
        %v3394 = vand.u32 %v3393, 4294901760
        %3395 = vmatpush1.msra.mxu0 %v3394
        %v3396 = vand.u32 %v3109, 4294901760
        %v3397 = vsub.f32 %v3109, %v3396
        %v3398 = vand.u32 %v3397, 4294901760
        %v3399 = vsub.f32 %v3397, %v3398
        %v3400 = vand.u32 %v3399, 4294901760
        %3401 = vmatprep.subr.mxu0 %v3400
        %v3402 = vand.u32 %v3108, 4294901760
        %v3403 = vsub.f32 %v3108, %v3402
        %v3404 = vand.u32 %v3403, 4294901760
        %v3405 = vsub.f32 %v3403, %v3404
        %v3406 = vand.u32 %v3405, 4294901760
        %3407 = vmatpush1.msra.mxu0 %v3406
        %v3408 = vand.u32 %v3099, 4294901760
        %v3409 = vsub.f32 %v3099, %v3408
        %v3410 = vand.u32 %v3409, 4294901760
        %v3411 = vsub.f32 %v3409, %v3410
        %v3412 = vand.u32 %v3411, 4294901760
        %3413 = vmatprep.subr.mxu0 %v3412
        %v3414 = vand.u32 %v3098, 4294901760
        %v3415 = vsub.f32 %v3098, %v3414
        %v3416 = vand.u32 %v3415, 4294901760
        %v3417 = vsub.f32 %v3415, %v3416
        %v3418 = vand.u32 %v3417, 4294901760
        %3419 = vmatpush1.msra.mxu0 %v3418
        %v3420 = vand.u32 %v3089, 4294901760
        %v3421 = vsub.f32 %v3089, %v3420
        %v3422 = vand.u32 %v3421, 4294901760
        %v3423 = vsub.f32 %v3421, %v3422
        %v3424 = vand.u32 %v3423, 4294901760
        %3425 = vmatprep.subr.mxu0 %v3424
        %v3426 = vand.u32 %v3088, 4294901760
        %v3427 = vsub.f32 %v3088, %v3426
        %v3428 = vand.u32 %v3427, 4294901760
        %v3429 = vsub.f32 %v3427, %v3428
        %v3430 = vand.u32 %v3429, 4294901760
        %3431 = vmatpush1.msra.mxu0 %v3430
        %v3432 = vand.u32 %v3076, 4294901760
        %v3433 = vsub.f32 %v3076, %v3432
        %v3434 = vand.u32 %v3433, 4294901760
        %v3435 = vsub.f32 %v3433, %v3434
        %v3436 = vand.u32 %v3435, 4294901760
        %3437 = vmatprep.subr.mxu0 %v3436
        %v3438 = vand.u32 %v3075, 4294901760
        %v3439 = vsub.f32 %v3075, %v3438
        %v3440 = vand.u32 %v3439, 4294901760
        %v3441 = vsub.f32 %v3439, %v3440
        %v3442 = vand.u32 %v3441, 4294901760
        %3443 = vmatpush1.msra.mxu0 %v3442
        %3444 = vmatprep.subr.mxu0 0.0
        %3445 = vmatpush2.msra.mxu0 0.0
        %3446 = vmatprep.subr.mxu0 0.0
        %3447 = vmatpush2.msra.mxu0 0.0
        %3448 = vmatprep.subr.mxu0 0.0
        %3449 = vmatpush2.msra.mxu0 0.0
        %3450 = vmatprep.subr.mxu0 0.0
        %3451 = vmatpush2.msra.mxu0 0.0
        %3452 = vmatprep.subr.mxu0 0.0
        %3453 = vmatpush2.msra.mxu0 0.0
        %3454 = vmatprep.subr.mxu0 0.0
        %3455 = vmatpush2.msra.mxu0 0.0
        %3456 = vmatprep.subr.mxu0 0.0
        %3457 = vmatpush2.msra.mxu0 0.0
        %3458 = vmatprep.subr.mxu0 0.0
        %3459 = vmatpush2.msra.mxu0 0.0
        %3460 = vmatprep.subr.mxu0 0.0
        %3461 = vmatpush2.msra.mxu0 0.0
        %3462 = vmatprep.subr.mxu0 0.0
        %3463 = vmatpush2.msra.mxu0 0.0
        %3464 = vmatprep.subr.mxu0 0.0
        %3465 = vmatpush2.msra.mxu0 0.0
        %3466 = vmatprep.subr.mxu0 0.0
        %3467 = vmatpush2.msra.mxu0 0.0
        %3468 = vmatprep.subr.mxu0 0.0
        %3469 = vmatpush2.msra.mxu0 0.0
        %3470 = vmatprep.subr.mxu0 0.0
        %3471 = vmatpush2.msra.mxu0 0.0
        %3472 = vmatprep.subr.mxu0 0.0
        %3473 = vmatpush2.msra.mxu0 0.0
        %3474 = vmatprep.subr.mxu0 0.0
        %3475 = vmatpush2.msra.mxu0 0.0
        %3476 = vmatprep.mubr.f32.mxu0 0.0
        %v3477 = vand.u32 %v979, 4294901760
        %3478 = vmatmul.mubr.f32.gmra.mxu0 %v3477
        %v3479 = vpop.f32.mrf.mxu0
        %v3480 = vadd.f32 %v3264, %v3479
        %v3481 = vpop.f32.mrf.mxu0
        %v3482 = vadd.f32 %v3266, %v3481
        %3483 = vmatprep.mubr.f32.mxu0 0.0
        %v3484 = vand.u32 %v982, 4294901760
        %3485 = vmatmul.mubr.f32.gmra.mxu0 %v3484
        %v3486 = vpop.f32.mrf.mxu0
        %v3487 = vadd.f32 %v3275, %v3486
        %v3488 = vpop.f32.mrf.mxu0
        %v3489 = vadd.f32 %v3277, %v3488
        %3490 = vmatprep.mubr.f32.mxu0 0.0
        %v3491 = vand.u32 %v985, 4294901760
        %3492 = vmatmul.mubr.f32.gmra.mxu0 %v3491
        %v3493 = vpop.f32.mrf.mxu0
        %v3494 = vadd.f32 %v3286, %v3493
        %v3495 = vpop.f32.mrf.mxu0
        %v3496 = vadd.f32 %v3288, %v3495
        %3497 = vmatprep.mubr.f32.mxu0 0.0
        %v3498 = vand.u32 %v988, 4294901760
        %3499 = vmatmul.mubr.f32.gmra.mxu0 %v3498
        %v3500 = vpop.f32.mrf.mxu0
        %v3501 = vadd.f32 %v3297, %v3500
        %v3502 = vpop.f32.mrf.mxu0
        %v3503 = vadd.f32 %v3299, %v3502
        %3504 = vmatprep.mubr.f32.mxu0 0.0
        %v3505 = vand.u32 %v991, 4294901760
        %3506 = vmatmul.mubr.f32.gmra.mxu0 %v3505
        %v3507 = vpop.f32.mrf.mxu0
        %v3508 = vadd.f32 %v3308, %v3507
        %v3509 = vpop.f32.mrf.mxu0
        %v3510 = vadd.f32 %v3310, %v3509
        %3511 = vdwg.mxu0
        %3512 = vmatprep.subr.mxu0 0.0
        %3513 = vmatpush1.msra.mxu0 0.0
        %3514 = vmatprep.subr.mxu0 0.0
        %3515 = vmatpush1.msra.mxu0 0.0
        %3516 = vmatprep.subr.mxu0 0.0
        %3517 = vmatpush1.msra.mxu0 0.0
        %3518 = vmatprep.subr.mxu0 0.0
        %3519 = vmatpush1.msra.mxu0 0.0
        %3520 = vmatprep.subr.mxu0 0.0
        %3521 = vmatpush1.msra.mxu0 0.0
        %3522 = vmatprep.subr.mxu0 0.0
        %3523 = vmatpush1.msra.mxu0 0.0
        %v3524 = vand.u32 %v3169, 4294901760
        %v3525 = vsub.f32 %v3169, %v3524
        %3526 = vmatprep.subr.mxu0 %v3525
        %v3527 = vand.u32 %v3168, 4294901760
        %v3528 = vsub.f32 %v3168, %v3527
        %3529 = vmatpush1.msra.mxu0 %v3528
        %v3530 = vand.u32 %v3159, 4294901760
        %v3531 = vsub.f32 %v3159, %v3530
        %3532 = vmatprep.subr.mxu0 %v3531
        %v3533 = vand.u32 %v3158, 4294901760
        %v3534 = vsub.f32 %v3158, %v3533
        %3535 = vmatpush1.msra.mxu0 %v3534
        %v3536 = vand.u32 %v3149, 4294901760
        %v3537 = vsub.f32 %v3149, %v3536
        %3538 = vmatprep.subr.mxu0 %v3537
        %v3539 = vand.u32 %v3148, 4294901760
        %v3540 = vsub.f32 %v3148, %v3539
        %3541 = vmatpush1.msra.mxu0 %v3540
        %v3542 = vand.u32 %v3139, 4294901760
        %v3543 = vsub.f32 %v3139, %v3542
        %3544 = vmatprep.subr.mxu0 %v3543
        %v3545 = vand.u32 %v3138, 4294901760
        %v3546 = vsub.f32 %v3138, %v3545
        %3547 = vmatpush1.msra.mxu0 %v3546
        %v3548 = vand.u32 %v3129, 4294901760
        %v3549 = vsub.f32 %v3129, %v3548
        %3550 = vmatprep.subr.mxu0 %v3549
        %v3551 = vand.u32 %v3128, 4294901760
        %v3552 = vsub.f32 %v3128, %v3551
        %3553 = vmatpush1.msra.mxu0 %v3552
        %v3554 = vand.u32 %v3119, 4294901760
        %v3555 = vsub.f32 %v3119, %v3554
        %3556 = vmatprep.subr.mxu0 %v3555
        %v3557 = vand.u32 %v3118, 4294901760
        %v3558 = vsub.f32 %v3118, %v3557
        %3559 = vmatpush1.msra.mxu0 %v3558
        %v3560 = vand.u32 %v3109, 4294901760
        %v3561 = vsub.f32 %v3109, %v3560
        %3562 = vmatprep.subr.mxu0 %v3561
        %v3563 = vand.u32 %v3108, 4294901760
        %v3564 = vsub.f32 %v3108, %v3563
        %3565 = vmatpush1.msra.mxu0 %v3564
        %v3566 = vand.u32 %v3099, 4294901760
        %v3567 = vsub.f32 %v3099, %v3566
        %3568 = vmatprep.subr.mxu0 %v3567
        %v3569 = vand.u32 %v3098, 4294901760
        %v3570 = vsub.f32 %v3098, %v3569
        %3571 = vmatpush1.msra.mxu0 %v3570
        %v3572 = vand.u32 %v3089, 4294901760
        %v3573 = vsub.f32 %v3089, %v3572
        %3574 = vmatprep.subr.mxu0 %v3573
        %v3575 = vand.u32 %v3088, 4294901760
        %v3576 = vsub.f32 %v3088, %v3575
        %3577 = vmatpush1.msra.mxu0 %v3576
        %v3578 = vand.u32 %v3076, 4294901760
        %v3579 = vsub.f32 %v3076, %v3578
        %3580 = vmatprep.subr.mxu0 %v3579
        %v3581 = vand.u32 %v3075, 4294901760
        %v3582 = vsub.f32 %v3075, %v3581
        %3583 = vmatpush1.msra.mxu0 %v3582
        %3584 = vmatprep.subr.mxu0 0.0
        %3585 = vmatpush2.msra.mxu0 0.0
        %3586 = vmatprep.subr.mxu0 0.0
        %3587 = vmatpush2.msra.mxu0 0.0
        %3588 = vmatprep.subr.mxu0 0.0
        %3589 = vmatpush2.msra.mxu0 0.0
        %3590 = vmatprep.subr.mxu0 0.0
        %3591 = vmatpush2.msra.mxu0 0.0
        %3592 = vmatprep.subr.mxu0 0.0
        %3593 = vmatpush2.msra.mxu0 0.0
        %3594 = vmatprep.subr.mxu0 0.0
        %3595 = vmatpush2.msra.mxu0 0.0
        %3596 = vmatprep.subr.mxu0 0.0
        %3597 = vmatpush2.msra.mxu0 0.0
        %3598 = vmatprep.subr.mxu0 0.0
        %3599 = vmatpush2.msra.mxu0 0.0
        %3600 = vmatprep.subr.mxu0 0.0
        %3601 = vmatpush2.msra.mxu0 0.0
        %3602 = vmatprep.subr.mxu0 0.0
        %3603 = vmatpush2.msra.mxu0 0.0
        %3604 = vmatprep.subr.mxu0 0.0
        %3605 = vmatpush2.msra.mxu0 0.0
        %3606 = vmatprep.subr.mxu0 0.0
        %3607 = vmatpush2.msra.mxu0 0.0
        %3608 = vmatprep.subr.mxu0 0.0
        %3609 = vmatpush2.msra.mxu0 0.0
        %3610 = vmatprep.subr.mxu0 0.0
        %3611 = vmatpush2.msra.mxu0 0.0
        %3612 = vmatprep.subr.mxu0 0.0
        %3613 = vmatpush2.msra.mxu0 0.0
        %3614 = vmatprep.subr.mxu0 0.0
        %3615 = vmatpush2.msra.mxu0 0.0
        %3616 = vmatprep.mubr.f32.mxu0 0.0
        %v3617 = vand.u32 %v979, 4294901760
        %v3618 = vsub.f32 %v979, %v3617
        %3619 = vmatmul.mubr.f32.gmra.mxu0 %v3618
        %v3620 = vpop.f32.mrf.mxu0
        %v3621 = vadd.f32 %v3480, %v3620
        %v3622 = vpop.f32.mrf.mxu0
        %v3623 = vadd.f32 %v3482, %v3622
        %3624 = vmatprep.mubr.f32.mxu0 0.0
        %v3625 = vand.u32 %v982, 4294901760
        %v3626 = vsub.f32 %v982, %v3625
        %3627 = vmatmul.mubr.f32.gmra.mxu0 %v3626
        %v3628 = vpop.f32.mrf.mxu0
        %v3629 = vadd.f32 %v3487, %v3628
        %v3630 = vpop.f32.mrf.mxu0
        %v3631 = vadd.f32 %v3489, %v3630
        %3632 = vmatprep.mubr.f32.mxu0 0.0
        %v3633 = vand.u32 %v985, 4294901760
        %v3634 = vsub.f32 %v985, %v3633
        %3635 = vmatmul.mubr.f32.gmra.mxu0 %v3634
        %v3636 = vpop.f32.mrf.mxu0
        %v3637 = vadd.f32 %v3494, %v3636
        %v3638 = vpop.f32.mrf.mxu0
        %v3639 = vadd.f32 %v3496, %v3638
        %3640 = vmatprep.mubr.f32.mxu0 0.0
        %v3641 = vand.u32 %v988, 4294901760
        %v3642 = vsub.f32 %v988, %v3641
        %3643 = vmatmul.mubr.f32.gmra.mxu0 %v3642
        %v3644 = vpop.f32.mrf.mxu0
        %v3645 = vadd.f32 %v3501, %v3644
        %v3646 = vpop.f32.mrf.mxu0
        %v3647 = vadd.f32 %v3503, %v3646
        %3648 = vmatprep.mubr.f32.mxu0 0.0
        %v3649 = vand.u32 %v991, 4294901760
        %v3650 = vsub.f32 %v991, %v3649
        %3651 = vmatmul.mubr.f32.gmra.mxu0 %v3650
        %v3652 = vpop.f32.mrf.mxu0
        %v3653 = vadd.f32 %v3508, %v3652
        %v3654 = vpop.f32.mrf.mxu0
        %v3655 = vadd.f32 %v3510, %v3654
        %3656 = vdwg.mxu0
        %3657 = vmatprep.subr.mxu0 0.0
        %3658 = vmatpush1.msra.mxu0 0.0
        %3659 = vmatprep.subr.mxu0 0.0
        %3660 = vmatpush1.msra.mxu0 0.0
        %3661 = vmatprep.subr.mxu0 0.0
        %3662 = vmatpush1.msra.mxu0 0.0
        %3663 = vmatprep.subr.mxu0 0.0
        %3664 = vmatpush1.msra.mxu0 0.0
        %3665 = vmatprep.subr.mxu0 0.0
        %3666 = vmatpush1.msra.mxu0 0.0
        %3667 = vmatprep.subr.mxu0 0.0
        %3668 = vmatpush1.msra.mxu0 0.0
        %v3669 = vand.u32 %v3169, 4294901760
        %3670 = vmatprep.subr.mxu0 %v3669
        %v3671 = vand.u32 %v3168, 4294901760
        %3672 = vmatpush1.msra.mxu0 %v3671
        %v3673 = vand.u32 %v3159, 4294901760
        %3674 = vmatprep.subr.mxu0 %v3673
        %v3675 = vand.u32 %v3158, 4294901760
        %3676 = vmatpush1.msra.mxu0 %v3675
        %v3677 = vand.u32 %v3149, 4294901760
        %3678 = vmatprep.subr.mxu0 %v3677
        %v3679 = vand.u32 %v3148, 4294901760
        %3680 = vmatpush1.msra.mxu0 %v3679
        %v3681 = vand.u32 %v3139, 4294901760
        %3682 = vmatprep.subr.mxu0 %v3681
        %v3683 = vand.u32 %v3138, 4294901760
        %3684 = vmatpush1.msra.mxu0 %v3683
        %v3685 = vand.u32 %v3129, 4294901760
        %3686 = vmatprep.subr.mxu0 %v3685
        %v3687 = vand.u32 %v3128, 4294901760
        %3688 = vmatpush1.msra.mxu0 %v3687
        %v3689 = vand.u32 %v3119, 4294901760
        %3690 = vmatprep.subr.mxu0 %v3689
        %v3691 = vand.u32 %v3118, 4294901760
        %3692 = vmatpush1.msra.mxu0 %v3691
        %v3693 = vand.u32 %v3109, 4294901760
        %3694 = vmatprep.subr.mxu0 %v3693
        %v3695 = vand.u32 %v3108, 4294901760
        %3696 = vmatpush1.msra.mxu0 %v3695
        %v3697 = vand.u32 %v3099, 4294901760
        %3698 = vmatprep.subr.mxu0 %v3697
        %v3699 = vand.u32 %v3098, 4294901760
        %3700 = vmatpush1.msra.mxu0 %v3699
        %v3701 = vand.u32 %v3089, 4294901760
        %3702 = vmatprep.subr.mxu0 %v3701
        %v3703 = vand.u32 %v3088, 4294901760
        %3704 = vmatpush1.msra.mxu0 %v3703
        %v3705 = vand.u32 %v3076, 4294901760
        %3706 = vmatprep.subr.mxu0 %v3705
        %v3707 = vand.u32 %v3075, 4294901760
        %3708 = vmatpush1.msra.mxu0 %v3707
        %3709 = vmatprep.subr.mxu0 0.0
        %3710 = vmatpush2.msra.mxu0 0.0
        %3711 = vmatprep.subr.mxu0 0.0
        %3712 = vmatpush2.msra.mxu0 0.0
        %3713 = vmatprep.subr.mxu0 0.0
        %3714 = vmatpush2.msra.mxu0 0.0
        %3715 = vmatprep.subr.mxu0 0.0
        %3716 = vmatpush2.msra.mxu0 0.0
        %3717 = vmatprep.subr.mxu0 0.0
        %3718 = vmatpush2.msra.mxu0 0.0
        %3719 = vmatprep.subr.mxu0 0.0
        %3720 = vmatpush2.msra.mxu0 0.0
        %3721 = vmatprep.subr.mxu0 0.0
        %3722 = vmatpush2.msra.mxu0 0.0
        %3723 = vmatprep.subr.mxu0 0.0
        %3724 = vmatpush2.msra.mxu0 0.0
        %3725 = vmatprep.subr.mxu0 0.0
        %3726 = vmatpush2.msra.mxu0 0.0
        %3727 = vmatprep.subr.mxu0 0.0
        %3728 = vmatpush2.msra.mxu0 0.0
        %3729 = vmatprep.subr.mxu0 0.0
        %3730 = vmatpush2.msra.mxu0 0.0
        %3731 = vmatprep.subr.mxu0 0.0
        %3732 = vmatpush2.msra.mxu0 0.0
        %3733 = vmatprep.subr.mxu0 0.0
        %3734 = vmatpush2.msra.mxu0 0.0
        %3735 = vmatprep.subr.mxu0 0.0
        %3736 = vmatpush2.msra.mxu0 0.0
        %3737 = vmatprep.subr.mxu0 0.0
        %3738 = vmatpush2.msra.mxu0 0.0
        %3739 = vmatprep.subr.mxu0 0.0
        %3740 = vmatpush2.msra.mxu0 0.0
        %3741 = vmatprep.mubr.f32.mxu0 0.0
        %v3742 = vand.u32 %v979, 4294901760
        %v3743 = vsub.f32 %v979, %v3742
        %v3744 = vand.u32 %v3743, 4294901760
        %3745 = vmatmul.mubr.f32.gmra.mxu0 %v3744
        %v3746 = vpop.f32.mrf.mxu0
        %v3747 = vadd.f32 %v3621, %v3746
        %v3748 = vpop.f32.mrf.mxu0
        %v3749 = vadd.f32 %v3623, %v3748
        %3750 = vmatprep.mubr.f32.mxu0 0.0
        %v3751 = vand.u32 %v982, 4294901760
        %v3752 = vsub.f32 %v982, %v3751
        %v3753 = vand.u32 %v3752, 4294901760
        %3754 = vmatmul.mubr.f32.gmra.mxu0 %v3753
        %v3755 = vpop.f32.mrf.mxu0
        %v3756 = vadd.f32 %v3629, %v3755
        %v3757 = vpop.f32.mrf.mxu0
        %v3758 = vadd.f32 %v3631, %v3757
        %3759 = vmatprep.mubr.f32.mxu0 0.0
        %v3760 = vand.u32 %v985, 4294901760
        %v3761 = vsub.f32 %v985, %v3760
        %v3762 = vand.u32 %v3761, 4294901760
        %3763 = vmatmul.mubr.f32.gmra.mxu0 %v3762
        %v3764 = vpop.f32.mrf.mxu0
        %v3765 = vadd.f32 %v3637, %v3764
        %v3766 = vpop.f32.mrf.mxu0
        %v3767 = vadd.f32 %v3639, %v3766
        %3768 = vmatprep.mubr.f32.mxu0 0.0
        %v3769 = vand.u32 %v988, 4294901760
        %v3770 = vsub.f32 %v988, %v3769
        %v3771 = vand.u32 %v3770, 4294901760
        %3772 = vmatmul.mubr.f32.gmra.mxu0 %v3771
        %v3773 = vpop.f32.mrf.mxu0
        %v3774 = vadd.f32 %v3645, %v3773
        %v3775 = vpop.f32.mrf.mxu0
        %v3776 = vadd.f32 %v3647, %v3775
        %3777 = vmatprep.mubr.f32.mxu0 0.0
        %v3778 = vand.u32 %v991, 4294901760
        %v3779 = vsub.f32 %v991, %v3778
        %v3780 = vand.u32 %v3779, 4294901760
        %3781 = vmatmul.mubr.f32.gmra.mxu0 %v3780
        %v3782 = vpop.f32.mrf.mxu0
        %v3783 = vadd.f32 %v3653, %v3782
        %v3784 = vpop.f32.mrf.mxu0
        %v3785 = vadd.f32 %v3655, %v3784
        %3786 = vdwg.mxu0
        %3787 = vmatprep.subr.mxu0 0.0
        %3788 = vmatpush1.msra.mxu0 0.0
        %3789 = vmatprep.subr.mxu0 0.0
        %3790 = vmatpush1.msra.mxu0 0.0
        %3791 = vmatprep.subr.mxu0 0.0
        %3792 = vmatpush1.msra.mxu0 0.0
        %3793 = vmatprep.subr.mxu0 0.0
        %3794 = vmatpush1.msra.mxu0 0.0
        %3795 = vmatprep.subr.mxu0 0.0
        %3796 = vmatpush1.msra.mxu0 0.0
        %3797 = vmatprep.subr.mxu0 0.0
        %3798 = vmatpush1.msra.mxu0 0.0
        %v3799 = vand.u32 %v3169, 4294901760
        %v3800 = vsub.f32 %v3169, %v3799
        %v3801 = vand.u32 %v3800, 4294901760
        %3802 = vmatprep.subr.mxu0 %v3801
        %v3803 = vand.u32 %v3168, 4294901760
        %v3804 = vsub.f32 %v3168, %v3803
        %v3805 = vand.u32 %v3804, 4294901760
        %3806 = vmatpush1.msra.mxu0 %v3805
        %v3807 = vand.u32 %v3159, 4294901760
        %v3808 = vsub.f32 %v3159, %v3807
        %v3809 = vand.u32 %v3808, 4294901760
        %3810 = vmatprep.subr.mxu0 %v3809
        %v3811 = vand.u32 %v3158, 4294901760
        %v3812 = vsub.f32 %v3158, %v3811
        %v3813 = vand.u32 %v3812, 4294901760
        %3814 = vmatpush1.msra.mxu0 %v3813
        %v3815 = vand.u32 %v3149, 4294901760
        %v3816 = vsub.f32 %v3149, %v3815
        %v3817 = vand.u32 %v3816, 4294901760
        %3818 = vmatprep.subr.mxu0 %v3817
        %v3819 = vand.u32 %v3148, 4294901760
        %v3820 = vsub.f32 %v3148, %v3819
        %v3821 = vand.u32 %v3820, 4294901760
        %3822 = vmatpush1.msra.mxu0 %v3821
        %v3823 = vand.u32 %v3139, 4294901760
        %v3824 = vsub.f32 %v3139, %v3823
        %v3825 = vand.u32 %v3824, 4294901760
        %3826 = vmatprep.subr.mxu0 %v3825
        %v3827 = vand.u32 %v3138, 4294901760
        %v3828 = vsub.f32 %v3138, %v3827
        %v3829 = vand.u32 %v3828, 4294901760
        %3830 = vmatpush1.msra.mxu0 %v3829
        %v3831 = vand.u32 %v3129, 4294901760
        %v3832 = vsub.f32 %v3129, %v3831
        %v3833 = vand.u32 %v3832, 4294901760
        %3834 = vmatprep.subr.mxu0 %v3833
        %v3835 = vand.u32 %v3128, 4294901760
        %v3836 = vsub.f32 %v3128, %v3835
        %v3837 = vand.u32 %v3836, 4294901760
        %3838 = vmatpush1.msra.mxu0 %v3837
        %v3839 = vand.u32 %v3119, 4294901760
        %v3840 = vsub.f32 %v3119, %v3839
        %v3841 = vand.u32 %v3840, 4294901760
        %3842 = vmatprep.subr.mxu0 %v3841
        %v3843 = vand.u32 %v3118, 4294901760
        %v3844 = vsub.f32 %v3118, %v3843
        %v3845 = vand.u32 %v3844, 4294901760
        %3846 = vmatpush1.msra.mxu0 %v3845
        %v3847 = vand.u32 %v3109, 4294901760
        %v3848 = vsub.f32 %v3109, %v3847
        %v3849 = vand.u32 %v3848, 4294901760
        %3850 = vmatprep.subr.mxu0 %v3849
        %v3851 = vand.u32 %v3108, 4294901760
        %v3852 = vsub.f32 %v3108, %v3851
        %v3853 = vand.u32 %v3852, 4294901760
        %3854 = vmatpush1.msra.mxu0 %v3853
        %v3855 = vand.u32 %v3099, 4294901760
        %v3856 = vsub.f32 %v3099, %v3855
        %v3857 = vand.u32 %v3856, 4294901760
        %3858 = vmatprep.subr.mxu0 %v3857
        %v3859 = vand.u32 %v3098, 4294901760
        %v3860 = vsub.f32 %v3098, %v3859
        %v3861 = vand.u32 %v3860, 4294901760
        %3862 = vmatpush1.msra.mxu0 %v3861
        %v3863 = vand.u32 %v3089, 4294901760
        %v3864 = vsub.f32 %v3089, %v3863
        %v3865 = vand.u32 %v3864, 4294901760
        %3866 = vmatprep.subr.mxu0 %v3865
        %v3867 = vand.u32 %v3088, 4294901760
        %v3868 = vsub.f32 %v3088, %v3867
        %v3869 = vand.u32 %v3868, 4294901760
        %3870 = vmatpush1.msra.mxu0 %v3869
        %v3871 = vand.u32 %v3076, 4294901760
        %v3872 = vsub.f32 %v3076, %v3871
        %v3873 = vand.u32 %v3872, 4294901760
        %3874 = vmatprep.subr.mxu0 %v3873
        %v3875 = vand.u32 %v3075, 4294901760
        %v3876 = vsub.f32 %v3075, %v3875
        %v3877 = vand.u32 %v3876, 4294901760
        %3878 = vmatpush1.msra.mxu0 %v3877
        %3879 = vmatprep.subr.mxu0 0.0
        %3880 = vmatpush2.msra.mxu0 0.0
        %3881 = vmatprep.subr.mxu0 0.0
        %3882 = vmatpush2.msra.mxu0 0.0
        %3883 = vmatprep.subr.mxu0 0.0
        %3884 = vmatpush2.msra.mxu0 0.0
        %3885 = vmatprep.subr.mxu0 0.0
        %3886 = vmatpush2.msra.mxu0 0.0
        %3887 = vmatprep.subr.mxu0 0.0
        %3888 = vmatpush2.msra.mxu0 0.0
        %3889 = vmatprep.subr.mxu0 0.0
        %3890 = vmatpush2.msra.mxu0 0.0
        %3891 = vmatprep.subr.mxu0 0.0
        %3892 = vmatpush2.msra.mxu0 0.0
        %3893 = vmatprep.subr.mxu0 0.0
        %3894 = vmatpush2.msra.mxu0 0.0
        %3895 = vmatprep.subr.mxu0 0.0
        %3896 = vmatpush2.msra.mxu0 0.0
        %3897 = vmatprep.subr.mxu0 0.0
        %3898 = vmatpush2.msra.mxu0 0.0
        %3899 = vmatprep.subr.mxu0 0.0
        %3900 = vmatpush2.msra.mxu0 0.0
        %3901 = vmatprep.subr.mxu0 0.0
        %3902 = vmatpush2.msra.mxu0 0.0
        %3903 = vmatprep.subr.mxu0 0.0
        %3904 = vmatpush2.msra.mxu0 0.0
        %3905 = vmatprep.subr.mxu0 0.0
        %3906 = vmatpush2.msra.mxu0 0.0
        %3907 = vmatprep.subr.mxu0 0.0
        %3908 = vmatpush2.msra.mxu0 0.0
        %3909 = vmatprep.subr.mxu0 0.0
        %3910 = vmatpush2.msra.mxu0 0.0
        %3911 = vmatprep.mubr.f32.mxu0 0.0
        %v3912 = vand.u32 %v979, 4294901760
        %3913 = vmatmul.mubr.f32.gmra.mxu0 %v3912
        %v3914 = vpop.f32.mrf.mxu0
        %v3915 = vadd.f32 %v3747, %v3914
        %v3916 = vpop.f32.mrf.mxu0
        %v3917 = vadd.f32 %v3749, %v3916
        %3918 = vmatprep.mubr.f32.mxu0 0.0
        %v3919 = vand.u32 %v982, 4294901760
        %3920 = vmatmul.mubr.f32.gmra.mxu0 %v3919
        %v3921 = vpop.f32.mrf.mxu0
        %v3922 = vadd.f32 %v3756, %v3921
        %v3923 = vpop.f32.mrf.mxu0
        %v3924 = vadd.f32 %v3758, %v3923
        %3925 = vmatprep.mubr.f32.mxu0 0.0
        %v3926 = vand.u32 %v985, 4294901760
        %3927 = vmatmul.mubr.f32.gmra.mxu0 %v3926
        %v3928 = vpop.f32.mrf.mxu0
        %v3929 = vadd.f32 %v3765, %v3928
        %v3930 = vpop.f32.mrf.mxu0
        %v3931 = vadd.f32 %v3767, %v3930
        %3932 = vmatprep.mubr.f32.mxu0 0.0
        %v3933 = vand.u32 %v988, 4294901760
        %3934 = vmatmul.mubr.f32.gmra.mxu0 %v3933
        %v3935 = vpop.f32.mrf.mxu0
        %v3936 = vadd.f32 %v3774, %v3935
        %v3937 = vpop.f32.mrf.mxu0
        %v3938 = vadd.f32 %v3776, %v3937
        %3939 = vmatprep.mubr.f32.mxu0 0.0
        %v3940 = vand.u32 %v991, 4294901760
        %3941 = vmatmul.mubr.f32.gmra.mxu0 %v3940
        %v3942 = vpop.f32.mrf.mxu0
        %v3943 = vadd.f32 %v3783, %v3942
        %v3944 = vpop.f32.mrf.mxu0
        %v3945 = vadd.f32 %v3785, %v3944
        %3946 = vdwg.mxu0
        %3947 = vmatprep.subr.mxu0 0.0
        %3948 = vmatpush1.msra.mxu0 0.0
        %3949 = vmatprep.subr.mxu0 0.0
        %3950 = vmatpush1.msra.mxu0 0.0
        %3951 = vmatprep.subr.mxu0 0.0
        %3952 = vmatpush1.msra.mxu0 0.0
        %3953 = vmatprep.subr.mxu0 0.0
        %3954 = vmatpush1.msra.mxu0 0.0
        %3955 = vmatprep.subr.mxu0 0.0
        %3956 = vmatpush1.msra.mxu0 0.0
        %3957 = vmatprep.subr.mxu0 0.0
        %3958 = vmatpush1.msra.mxu0 0.0
        %v3959 = vand.u32 %v3169, 4294901760
        %3960 = vmatprep.subr.mxu0 %v3959
        %v3961 = vand.u32 %v3168, 4294901760
        %3962 = vmatpush1.msra.mxu0 %v3961
        %v3963 = vand.u32 %v3159, 4294901760
        %3964 = vmatprep.subr.mxu0 %v3963
        %v3965 = vand.u32 %v3158, 4294901760
        %3966 = vmatpush1.msra.mxu0 %v3965
        %v3967 = vand.u32 %v3149, 4294901760
        %3968 = vmatprep.subr.mxu0 %v3967
        %v3969 = vand.u32 %v3148, 4294901760
        %3970 = vmatpush1.msra.mxu0 %v3969
        %v3971 = vand.u32 %v3139, 4294901760
        %3972 = vmatprep.subr.mxu0 %v3971
        %v3973 = vand.u32 %v3138, 4294901760
        %3974 = vmatpush1.msra.mxu0 %v3973
        %v3975 = vand.u32 %v3129, 4294901760
        %3976 = vmatprep.subr.mxu0 %v3975
        %v3977 = vand.u32 %v3128, 4294901760
        %3978 = vmatpush1.msra.mxu0 %v3977
        %v3979 = vand.u32 %v3119, 4294901760
        %3980 = vmatprep.subr.mxu0 %v3979
        %v3981 = vand.u32 %v3118, 4294901760
        %3982 = vmatpush1.msra.mxu0 %v3981
        %v3983 = vand.u32 %v3109, 4294901760
        %3984 = vmatprep.subr.mxu0 %v3983
        %v3985 = vand.u32 %v3108, 4294901760
        %3986 = vmatpush1.msra.mxu0 %v3985
        %v3987 = vand.u32 %v3099, 4294901760
        %3988 = vmatprep.subr.mxu0 %v3987
        %v3989 = vand.u32 %v3098, 4294901760
        %3990 = vmatpush1.msra.mxu0 %v3989
        %v3991 = vand.u32 %v3089, 4294901760
        %3992 = vmatprep.subr.mxu0 %v3991
        %v3993 = vand.u32 %v3088, 4294901760
        %3994 = vmatpush1.msra.mxu0 %v3993
        %v3995 = vand.u32 %v3076, 4294901760
        %3996 = vmatprep.subr.mxu0 %v3995
        %v3997 = vand.u32 %v3075, 4294901760
        %3998 = vmatpush1.msra.mxu0 %v3997
        %3999 = vmatprep.subr.mxu0 0.0
        %4000 = vmatpush2.msra.mxu0 0.0
        %4001 = vmatprep.subr.mxu0 0.0
        %4002 = vmatpush2.msra.mxu0 0.0
        %4003 = vmatprep.subr.mxu0 0.0
        %4004 = vmatpush2.msra.mxu0 0.0
        %4005 = vmatprep.subr.mxu0 0.0
        %4006 = vmatpush2.msra.mxu0 0.0
        %4007 = vmatprep.subr.mxu0 0.0
        %4008 = vmatpush2.msra.mxu0 0.0
        %4009 = vmatprep.subr.mxu0 0.0
        %4010 = vmatpush2.msra.mxu0 0.0
        %4011 = vmatprep.subr.mxu0 0.0
        %4012 = vmatpush2.msra.mxu0 0.0
        %4013 = vmatprep.subr.mxu0 0.0
        %4014 = vmatpush2.msra.mxu0 0.0
        %4015 = vmatprep.subr.mxu0 0.0
        %4016 = vmatpush2.msra.mxu0 0.0
        %4017 = vmatprep.subr.mxu0 0.0
        %4018 = vmatpush2.msra.mxu0 0.0
        %4019 = vmatprep.subr.mxu0 0.0
        %4020 = vmatpush2.msra.mxu0 0.0
        %4021 = vmatprep.subr.mxu0 0.0
        %4022 = vmatpush2.msra.mxu0 0.0
        %4023 = vmatprep.subr.mxu0 0.0
        %4024 = vmatpush2.msra.mxu0 0.0
        %4025 = vmatprep.subr.mxu0 0.0
        %4026 = vmatpush2.msra.mxu0 0.0
        %4027 = vmatprep.subr.mxu0 0.0
        %4028 = vmatpush2.msra.mxu0 0.0
        %4029 = vmatprep.subr.mxu0 0.0
        %4030 = vmatpush2.msra.mxu0 0.0
        %4031 = vmatprep.mubr.f32.mxu0 0.0
        %v4032 = vand.u32 %v979, 4294901760
        %4033 = vmatmul.mubr.f32.gmra.mxu0 %v4032
        %v4034 = vpop.f32.mrf.mxu0
        %v4035 = vadd.f32 %v3915, %v4034
        %v4036 = vpop.f32.mrf.mxu0
        %v4037 = vadd.f32 %v3917, %v4036
        %4038 = vmatprep.mubr.f32.mxu0 0.0
        %v4039 = vand.u32 %v982, 4294901760
        %4040 = vmatmul.mubr.f32.gmra.mxu0 %v4039
        %v4041 = vpop.f32.mrf.mxu0
        %v4042 = vadd.f32 %v3922, %v4041
        %v4043 = vpop.f32.mrf.mxu0
        %v4044 = vadd.f32 %v3924, %v4043
        %4045 = vmatprep.mubr.f32.mxu0 0.0
        %v4046 = vand.u32 %v985, 4294901760
        %4047 = vmatmul.mubr.f32.gmra.mxu0 %v4046
        %v4048 = vpop.f32.mrf.mxu0
        %v4049 = vadd.f32 %v3929, %v4048
        %v4050 = vpop.f32.mrf.mxu0
        %v4051 = vadd.f32 %v3931, %v4050
        %4052 = vmatprep.mubr.f32.mxu0 0.0
        %v4053 = vand.u32 %v988, 4294901760
        %4054 = vmatmul.mubr.f32.gmra.mxu0 %v4053
        %v4055 = vpop.f32.mrf.mxu0
        %v4056 = vadd.f32 %v3936, %v4055
        %v4057 = vpop.f32.mrf.mxu0
        %v4058 = vadd.f32 %v3938, %v4057
        %4059 = vmatprep.mubr.f32.mxu0 0.0
        %v4060 = vand.u32 %v991, 4294901760
        %4061 = vmatmul.mubr.f32.gmra.mxu0 %v4060
        %v4062 = vpop.f32.mrf.mxu0
        %v4063 = vadd.f32 %v3943, %v4062
        %v4064 = vpop.f32.mrf.mxu0
        %v4065 = vadd.f32 %v3945, %v4064
        %4066 = vdwg.mxu0
        %vm4067 = vcmp.ge.f32.partialorder %v4035, 0.0
        %vm4068 = vcmp.ge.f32.partialorder %v4037, 0.0
        %vm4069 = vcmp.ge.f32.partialorder %v4042, 0.0
        %vm4070 = vcmp.ge.f32.partialorder %v4044, 0.0
        %vm4071 = vcmp.ge.f32.partialorder %v4049, 0.0
        %vm4072 = vcmp.ge.f32.partialorder %v4051, 0.0
        %vm4073 = vcmp.ge.f32.partialorder %v4056, 0.0
        %vm4074 = vcmp.ge.f32.partialorder %v4058, 0.0
        %vm4075 = vcmp.ge.f32.partialorder %v4063, 0.0
        %vm4076 = vcmp.ge.f32.partialorder %v4065, 0.0
        %v4077 = vmul.f32 %v4035, 0.01
        %v4078 = vmul.f32 %v4037, 0.01
        %v4079 = vmul.f32 %v4042, 0.01
        %v4080 = vmul.f32 %v4044, 0.01
        %v4081 = vmul.f32 %v4049, 0.01
        %v4082 = vmul.f32 %v4051, 0.01
        %v4083 = vmul.f32 %v4056, 0.01
        %v4084 = vmul.f32 %v4058, 0.01
        %v4085 = vmul.f32 %v4063, 0.01
        %v4086 = vmul.f32 %v4065, 0.01
        %v4087 = vsel %vm4067, %v4035, %v4077
        %v4088 = vsel %vm4068, %v4037, %v4078
        %v4089 = vsel %vm4069, %v4042, %v4079
        %v4090 = vsel %vm4070, %v4044, %v4080
        %v4091 = vsel %vm4071, %v4049, %v4081
        %v4092 = vsel %vm4072, %v4051, %v4082
        %v4093 = vsel %vm4073, %v4056, %v4083
        %v4094 = vsel %vm4074, %v4058, %v4084
        %v4095 = vsel %vm4075, %v4063, %v4085
        %v4096 = vsel %vm4076, %v4065, %v4086
        %4097 = vmatprep.subr.mxu0 0.0
        %4098 = vmatpush1.msra.mxu0 0.0
        %4099 = vmatprep.subr.mxu0 0.0
        %4100 = vmatpush1.msra.mxu0 0.0
        %4101 = vmatprep.subr.mxu0 0.0
        %4102 = vmatpush1.msra.mxu0 0.0
        %4103 = vmatprep.subr.mxu0 0.0
        %4104 = vmatpush1.msra.mxu0 0.0
        %4105 = vmatprep.subr.mxu0 0.0
        %4106 = vmatpush1.msra.mxu0 0.0
        %4107 = vmatprep.subr.mxu0 0.0
        %4108 = vmatpush1.msra.mxu0 0.0
        %4109 = vmatprep.subr.mxu0 0.0
        %4110 = vmatpush1.msra.mxu0 0.0
        %4111 = vmatprep.subr.mxu0 0.0
        %4112 = vmatpush1.msra.mxu0 0.0
        %4113 = vmatprep.subr.mxu0 0.0
        %4114 = vmatpush1.msra.mxu0 0.0
        %4115 = vmatprep.subr.mxu0 0.0
        %4116 = vmatpush1.msra.mxu0 0.0
        %4117 = vmatprep.subr.mxu0 0.0
        %4118 = vmatpush1.msra.mxu0 0.0
        %v4119 = vand.u32 %v4096, 4294901760
        %4120 = vmatprep.subr.mxu0 %v4119
        %v4121 = vand.u32 %v4095, 4294901760
        %4122 = vmatpush1.msra.mxu0 %v4121
        %v4123 = vand.u32 %v4094, 4294901760
        %4124 = vmatprep.subr.mxu0 %v4123
        %v4125 = vand.u32 %v4093, 4294901760
        %4126 = vmatpush1.msra.mxu0 %v4125
        %v4127 = vand.u32 %v4092, 4294901760
        %4128 = vmatprep.subr.mxu0 %v4127
        %v4129 = vand.u32 %v4091, 4294901760
        %4130 = vmatpush1.msra.mxu0 %v4129
        %v4131 = vand.u32 %v4090, 4294901760
        %4132 = vmatprep.subr.mxu0 %v4131
        %v4133 = vand.u32 %v4089, 4294901760
        %4134 = vmatpush1.msra.mxu0 %v4133
        %v4135 = vand.u32 %v4088, 4294901760
        %4136 = vmatprep.subr.mxu0 %v4135
        %v4137 = vand.u32 %v4087, 4294901760
        %4138 = vmatpush1.msra.mxu0 %v4137
        %4139 = vmatprep.subr.mxu0 0.0
        %4140 = vmatpush2.msra.mxu0 0.0
        %4141 = vmatprep.subr.mxu0 0.0
        %4142 = vmatpush2.msra.mxu0 0.0
        %4143 = vmatprep.subr.mxu0 0.0
        %4144 = vmatpush2.msra.mxu0 0.0
        %4145 = vmatprep.subr.mxu0 0.0
        %4146 = vmatpush2.msra.mxu0 0.0
        %4147 = vmatprep.subr.mxu0 0.0
        %4148 = vmatpush2.msra.mxu0 0.0
        %4149 = vmatprep.subr.mxu0 0.0
        %4150 = vmatpush2.msra.mxu0 0.0
        %4151 = vmatprep.subr.mxu0 0.0
        %4152 = vmatpush2.msra.mxu0 0.0
        %4153 = vmatprep.subr.mxu0 0.0
        %4154 = vmatpush2.msra.mxu0 0.0
        %4155 = vmatprep.subr.mxu0 0.0
        %4156 = vmatpush2.msra.mxu0 0.0
        %4157 = vmatprep.subr.mxu0 0.0
        %4158 = vmatpush2.msra.mxu0 0.0
        %4159 = vmatprep.subr.mxu0 0.0
        %4160 = vmatpush2.msra.mxu0 0.0
        %4161 = vmatprep.subr.mxu0 0.0
        %4162 = vmatpush2.msra.mxu0 0.0
        %4163 = vmatprep.subr.mxu0 0.0
        %4164 = vmatpush2.msra.mxu0 0.0
        %4165 = vmatprep.subr.mxu0 0.0
        %4166 = vmatpush2.msra.mxu0 0.0
        %4167 = vmatprep.subr.mxu0 0.0
        %4168 = vmatpush2.msra.mxu0 0.0
        %4169 = vmatprep.subr.mxu0 0.0
        %4170 = vmatpush2.msra.mxu0 0.0
        %4171 = vmatprep.mubr.f32.mxu0 0.0
        %v4172 = vand.u32 %v1930, 4294901760
        %v4173 = vsub.f32 %v1930, %v4172
        %v4174 = vand.u32 %v4173, 4294901760
        %v4175 = vsub.f32 %v4173, %v4174
        %v4176 = vand.u32 %v4175, 4294901760
        %4177 = vmatmul.mubr.f32.gmra.mxu0 %v4176
        %v4178 = vpop.f32.mrf.mxu0
        %v4179 = vadd.f32 %v1921, %v4178
        %v4180 = vpop.f32.mrf.mxu0
        %v4181 = vadd.f32 %v1921, %v4180
        %4182 = vmatprep.mubr.f32.mxu0 0.0
        %v4183 = vand.u32 %v1933, 4294901760
        %v4184 = vsub.f32 %v1933, %v4183
        %v4185 = vand.u32 %v4184, 4294901760
        %v4186 = vsub.f32 %v4184, %v4185
        %v4187 = vand.u32 %v4186, 4294901760
        %4188 = vmatmul.mubr.f32.gmra.mxu0 %v4187
        %v4189 = vpop.f32.mrf.mxu0
        %v4190 = vadd.f32 %v1926, %v4189
        %v4191 = vpop.f32.mrf.mxu0
        %v4192 = vadd.f32 %v1926, %v4191
        %4193 = vdwg.mxu0
        %4194 = vmatprep.subr.mxu0 0.0
        %4195 = vmatpush1.msra.mxu0 0.0
        %4196 = vmatprep.subr.mxu0 0.0
        %4197 = vmatpush1.msra.mxu0 0.0
        %4198 = vmatprep.subr.mxu0 0.0
        %4199 = vmatpush1.msra.mxu0 0.0
        %4200 = vmatprep.subr.mxu0 0.0
        %4201 = vmatpush1.msra.mxu0 0.0
        %4202 = vmatprep.subr.mxu0 0.0
        %4203 = vmatpush1.msra.mxu0 0.0
        %4204 = vmatprep.subr.mxu0 0.0
        %4205 = vmatpush1.msra.mxu0 0.0
        %4206 = vmatprep.subr.mxu0 0.0
        %4207 = vmatpush1.msra.mxu0 0.0
        %4208 = vmatprep.subr.mxu0 0.0
        %4209 = vmatpush1.msra.mxu0 0.0
        %4210 = vmatprep.subr.mxu0 0.0
        %4211 = vmatpush1.msra.mxu0 0.0
        %4212 = vmatprep.subr.mxu0 0.0
        %4213 = vmatpush1.msra.mxu0 0.0
        %4214 = vmatprep.subr.mxu0 0.0
        %4215 = vmatpush1.msra.mxu0 0.0
        %v4216 = vand.u32 %v4096, 4294901760
        %v4217 = vsub.f32 %v4096, %v4216
        %v4218 = vand.u32 %v4217, 4294901760
        %v4219 = vsub.f32 %v4217, %v4218
        %v4220 = vand.u32 %v4219, 4294901760
        %4221 = vmatprep.subr.mxu0 %v4220
        %v4222 = vand.u32 %v4095, 4294901760
        %v4223 = vsub.f32 %v4095, %v4222
        %v4224 = vand.u32 %v4223, 4294901760
        %v4225 = vsub.f32 %v4223, %v4224
        %v4226 = vand.u32 %v4225, 4294901760
        %4227 = vmatpush1.msra.mxu0 %v4226
        %v4228 = vand.u32 %v4094, 4294901760
        %v4229 = vsub.f32 %v4094, %v4228
        %v4230 = vand.u32 %v4229, 4294901760
        %v4231 = vsub.f32 %v4229, %v4230
        %v4232 = vand.u32 %v4231, 4294901760
        %4233 = vmatprep.subr.mxu0 %v4232
        %v4234 = vand.u32 %v4093, 4294901760
        %v4235 = vsub.f32 %v4093, %v4234
        %v4236 = vand.u32 %v4235, 4294901760
        %v4237 = vsub.f32 %v4235, %v4236
        %v4238 = vand.u32 %v4237, 4294901760
        %4239 = vmatpush1.msra.mxu0 %v4238
        %v4240 = vand.u32 %v4092, 4294901760
        %v4241 = vsub.f32 %v4092, %v4240
        %v4242 = vand.u32 %v4241, 4294901760
        %v4243 = vsub.f32 %v4241, %v4242
        %v4244 = vand.u32 %v4243, 4294901760
        %4245 = vmatprep.subr.mxu0 %v4244
        %v4246 = vand.u32 %v4091, 4294901760
        %v4247 = vsub.f32 %v4091, %v4246
        %v4248 = vand.u32 %v4247, 4294901760
        %v4249 = vsub.f32 %v4247, %v4248
        %v4250 = vand.u32 %v4249, 4294901760
        %4251 = vmatpush1.msra.mxu0 %v4250
        %v4252 = vand.u32 %v4090, 4294901760
        %v4253 = vsub.f32 %v4090, %v4252
        %v4254 = vand.u32 %v4253, 4294901760
        %v4255 = vsub.f32 %v4253, %v4254
        %v4256 = vand.u32 %v4255, 4294901760
        %4257 = vmatprep.subr.mxu0 %v4256
        %v4258 = vand.u32 %v4089, 4294901760
        %v4259 = vsub.f32 %v4089, %v4258
        %v4260 = vand.u32 %v4259, 4294901760
        %v4261 = vsub.f32 %v4259, %v4260
        %v4262 = vand.u32 %v4261, 4294901760
        %4263 = vmatpush1.msra.mxu0 %v4262
        %v4264 = vand.u32 %v4088, 4294901760
        %v4265 = vsub.f32 %v4088, %v4264
        %v4266 = vand.u32 %v4265, 4294901760
        %v4267 = vsub.f32 %v4265, %v4266
        %v4268 = vand.u32 %v4267, 4294901760
        %4269 = vmatprep.subr.mxu0 %v4268
        %v4270 = vand.u32 %v4087, 4294901760
        %v4271 = vsub.f32 %v4087, %v4270
        %v4272 = vand.u32 %v4271, 4294901760
        %v4273 = vsub.f32 %v4271, %v4272
        %v4274 = vand.u32 %v4273, 4294901760
        %4275 = vmatpush1.msra.mxu0 %v4274
        %4276 = vmatprep.subr.mxu0 0.0
        %4277 = vmatpush2.msra.mxu0 0.0
        %4278 = vmatprep.subr.mxu0 0.0
        %4279 = vmatpush2.msra.mxu0 0.0
        %4280 = vmatprep.subr.mxu0 0.0
        %4281 = vmatpush2.msra.mxu0 0.0
        %4282 = vmatprep.subr.mxu0 0.0
        %4283 = vmatpush2.msra.mxu0 0.0
        %4284 = vmatprep.subr.mxu0 0.0
        %4285 = vmatpush2.msra.mxu0 0.0
        %4286 = vmatprep.subr.mxu0 0.0
        %4287 = vmatpush2.msra.mxu0 0.0
        %4288 = vmatprep.subr.mxu0 0.0
        %4289 = vmatpush2.msra.mxu0 0.0
        %4290 = vmatprep.subr.mxu0 0.0
        %4291 = vmatpush2.msra.mxu0 0.0
        %4292 = vmatprep.subr.mxu0 0.0
        %4293 = vmatpush2.msra.mxu0 0.0
        %4294 = vmatprep.subr.mxu0 0.0
        %4295 = vmatpush2.msra.mxu0 0.0
        %4296 = vmatprep.subr.mxu0 0.0
        %4297 = vmatpush2.msra.mxu0 0.0
        %4298 = vmatprep.subr.mxu0 0.0
        %4299 = vmatpush2.msra.mxu0 0.0
        %4300 = vmatprep.subr.mxu0 0.0
        %4301 = vmatpush2.msra.mxu0 0.0
        %4302 = vmatprep.subr.mxu0 0.0
        %4303 = vmatpush2.msra.mxu0 0.0
        %4304 = vmatprep.subr.mxu0 0.0
        %4305 = vmatpush2.msra.mxu0 0.0
        %4306 = vmatprep.subr.mxu0 0.0
        %4307 = vmatpush2.msra.mxu0 0.0
        %4308 = vmatprep.mubr.f32.mxu0 0.0
        %v4309 = vand.u32 %v1930, 4294901760
        %4310 = vmatmul.mubr.f32.gmra.mxu0 %v4309
        %v4311 = vpop.f32.mrf.mxu0
        %v4312 = vadd.f32 %v4179, %v4311
        %v4313 = vpop.f32.mrf.mxu0
        %v4314 = vadd.f32 %v4181, %v4313
        %4315 = vmatprep.mubr.f32.mxu0 0.0
        %v4316 = vand.u32 %v1933, 4294901760
        %4317 = vmatmul.mubr.f32.gmra.mxu0 %v4316
        %v4318 = vpop.f32.mrf.mxu0
        %v4319 = vadd.f32 %v4190, %v4318
        %v4320 = vpop.f32.mrf.mxu0
        %v4321 = vadd.f32 %v4192, %v4320
        %4322 = vdwg.mxu0
        %4323 = vmatprep.subr.mxu0 0.0
        %4324 = vmatpush1.msra.mxu0 0.0
        %4325 = vmatprep.subr.mxu0 0.0
        %4326 = vmatpush1.msra.mxu0 0.0
        %4327 = vmatprep.subr.mxu0 0.0
        %4328 = vmatpush1.msra.mxu0 0.0
        %4329 = vmatprep.subr.mxu0 0.0
        %4330 = vmatpush1.msra.mxu0 0.0
        %4331 = vmatprep.subr.mxu0 0.0
        %4332 = vmatpush1.msra.mxu0 0.0
        %4333 = vmatprep.subr.mxu0 0.0
        %4334 = vmatpush1.msra.mxu0 0.0
        %4335 = vmatprep.subr.mxu0 0.0
        %4336 = vmatpush1.msra.mxu0 0.0
        %4337 = vmatprep.subr.mxu0 0.0
        %4338 = vmatpush1.msra.mxu0 0.0
        %4339 = vmatprep.subr.mxu0 0.0
        %4340 = vmatpush1.msra.mxu0 0.0
        %4341 = vmatprep.subr.mxu0 0.0
        %4342 = vmatpush1.msra.mxu0 0.0
        %4343 = vmatprep.subr.mxu0 0.0
        %4344 = vmatpush1.msra.mxu0 0.0
        %v4345 = vand.u32 %v4096, 4294901760
        %v4346 = vsub.f32 %v4096, %v4345
        %4347 = vmatprep.subr.mxu0 %v4346
        %v4348 = vand.u32 %v4095, 4294901760
        %v4349 = vsub.f32 %v4095, %v4348
        %4350 = vmatpush1.msra.mxu0 %v4349
        %v4351 = vand.u32 %v4094, 4294901760
        %v4352 = vsub.f32 %v4094, %v4351
        %4353 = vmatprep.subr.mxu0 %v4352
        %v4354 = vand.u32 %v4093, 4294901760
        %v4355 = vsub.f32 %v4093, %v4354
        %4356 = vmatpush1.msra.mxu0 %v4355
        %v4357 = vand.u32 %v4092, 4294901760
        %v4358 = vsub.f32 %v4092, %v4357
        %4359 = vmatprep.subr.mxu0 %v4358
        %v4360 = vand.u32 %v4091, 4294901760
        %v4361 = vsub.f32 %v4091, %v4360
        %4362 = vmatpush1.msra.mxu0 %v4361
        %v4363 = vand.u32 %v4090, 4294901760
        %v4364 = vsub.f32 %v4090, %v4363
        %4365 = vmatprep.subr.mxu0 %v4364
        %v4366 = vand.u32 %v4089, 4294901760
        %v4367 = vsub.f32 %v4089, %v4366
        %4368 = vmatpush1.msra.mxu0 %v4367
        %v4369 = vand.u32 %v4088, 4294901760
        %v4370 = vsub.f32 %v4088, %v4369
        %4371 = vmatprep.subr.mxu0 %v4370
        %v4372 = vand.u32 %v4087, 4294901760
        %v4373 = vsub.f32 %v4087, %v4372
        %4374 = vmatpush1.msra.mxu0 %v4373
        %4375 = vmatprep.subr.mxu0 0.0
        %4376 = vmatpush2.msra.mxu0 0.0
        %4377 = vmatprep.subr.mxu0 0.0
        %4378 = vmatpush2.msra.mxu0 0.0
        %4379 = vmatprep.subr.mxu0 0.0
        %4380 = vmatpush2.msra.mxu0 0.0
        %4381 = vmatprep.subr.mxu0 0.0
        %4382 = vmatpush2.msra.mxu0 0.0
        %4383 = vmatprep.subr.mxu0 0.0
        %4384 = vmatpush2.msra.mxu0 0.0
        %4385 = vmatprep.subr.mxu0 0.0
        %4386 = vmatpush2.msra.mxu0 0.0
        %4387 = vmatprep.subr.mxu0 0.0
        %4388 = vmatpush2.msra.mxu0 0.0
        %4389 = vmatprep.subr.mxu0 0.0
        %4390 = vmatpush2.msra.mxu0 0.0
        %4391 = vmatprep.subr.mxu0 0.0
        %4392 = vmatpush2.msra.mxu0 0.0
        %4393 = vmatprep.subr.mxu0 0.0
        %4394 = vmatpush2.msra.mxu0 0.0
        %4395 = vmatprep.subr.mxu0 0.0
        %4396 = vmatpush2.msra.mxu0 0.0
        %4397 = vmatprep.subr.mxu0 0.0
        %4398 = vmatpush2.msra.mxu0 0.0
        %4399 = vmatprep.subr.mxu0 0.0
        %4400 = vmatpush2.msra.mxu0 0.0
        %4401 = vmatprep.subr.mxu0 0.0
        %4402 = vmatpush2.msra.mxu0 0.0
        %4403 = vmatprep.subr.mxu0 0.0
        %4404 = vmatpush2.msra.mxu0 0.0
        %4405 = vmatprep.subr.mxu0 0.0
        %4406 = vmatpush2.msra.mxu0 0.0
        %4407 = vmatprep.mubr.f32.mxu0 0.0
        %v4408 = vand.u32 %v1930, 4294901760
        %v4409 = vsub.f32 %v1930, %v4408
        %4410 = vmatmul.mubr.f32.gmra.mxu0 %v4409
        %v4411 = vpop.f32.mrf.mxu0
        %v4412 = vadd.f32 %v4312, %v4411
        %v4413 = vpop.f32.mrf.mxu0
        %v4414 = vadd.f32 %v4314, %v4413
        %4415 = vmatprep.mubr.f32.mxu0 0.0
        %v4416 = vand.u32 %v1933, 4294901760
        %v4417 = vsub.f32 %v1933, %v4416
        %4418 = vmatmul.mubr.f32.gmra.mxu0 %v4417
        %v4419 = vpop.f32.mrf.mxu0
        %v4420 = vadd.f32 %v4319, %v4419
        %v4421 = vpop.f32.mrf.mxu0
        %v4422 = vadd.f32 %v4321, %v4421
        %4423 = vdwg.mxu0
        %4424 = vmatprep.subr.mxu0 0.0
        %4425 = vmatpush1.msra.mxu0 0.0
        %4426 = vmatprep.subr.mxu0 0.0
        %4427 = vmatpush1.msra.mxu0 0.0
        %4428 = vmatprep.subr.mxu0 0.0
        %4429 = vmatpush1.msra.mxu0 0.0
        %4430 = vmatprep.subr.mxu0 0.0
        %4431 = vmatpush1.msra.mxu0 0.0
        %4432 = vmatprep.subr.mxu0 0.0
        %4433 = vmatpush1.msra.mxu0 0.0
        %4434 = vmatprep.subr.mxu0 0.0
        %4435 = vmatpush1.msra.mxu0 0.0
        %4436 = vmatprep.subr.mxu0 0.0
        %4437 = vmatpush1.msra.mxu0 0.0
        %4438 = vmatprep.subr.mxu0 0.0
        %4439 = vmatpush1.msra.mxu0 0.0
        %4440 = vmatprep.subr.mxu0 0.0
        %4441 = vmatpush1.msra.mxu0 0.0
        %4442 = vmatprep.subr.mxu0 0.0
        %4443 = vmatpush1.msra.mxu0 0.0
        %4444 = vmatprep.subr.mxu0 0.0
        %4445 = vmatpush1.msra.mxu0 0.0
        %v4446 = vand.u32 %v4096, 4294901760
        %4447 = vmatprep.subr.mxu0 %v4446
        %v4448 = vand.u32 %v4095, 4294901760
        %4449 = vmatpush1.msra.mxu0 %v4448
        %v4450 = vand.u32 %v4094, 4294901760
        %4451 = vmatprep.subr.mxu0 %v4450
        %v4452 = vand.u32 %v4093, 4294901760
        %4453 = vmatpush1.msra.mxu0 %v4452
        %v4454 = vand.u32 %v4092, 4294901760
        %4455 = vmatprep.subr.mxu0 %v4454
        %v4456 = vand.u32 %v4091, 4294901760
        %4457 = vmatpush1.msra.mxu0 %v4456
        %v4458 = vand.u32 %v4090, 4294901760
        %4459 = vmatprep.subr.mxu0 %v4458
        %v4460 = vand.u32 %v4089, 4294901760
        %4461 = vmatpush1.msra.mxu0 %v4460
        %v4462 = vand.u32 %v4088, 4294901760
        %4463 = vmatprep.subr.mxu0 %v4462
        %v4464 = vand.u32 %v4087, 4294901760
        %4465 = vmatpush1.msra.mxu0 %v4464
        %4466 = vmatprep.subr.mxu0 0.0
        %4467 = vmatpush2.msra.mxu0 0.0
        %4468 = vmatprep.subr.mxu0 0.0
        %4469 = vmatpush2.msra.mxu0 0.0
        %4470 = vmatprep.subr.mxu0 0.0
        %4471 = vmatpush2.msra.mxu0 0.0
        %4472 = vmatprep.subr.mxu0 0.0
        %4473 = vmatpush2.msra.mxu0 0.0
        %4474 = vmatprep.subr.mxu0 0.0
        %4475 = vmatpush2.msra.mxu0 0.0
        %4476 = vmatprep.subr.mxu0 0.0
        %4477 = vmatpush2.msra.mxu0 0.0
        %4478 = vmatprep.subr.mxu0 0.0
        %4479 = vmatpush2.msra.mxu0 0.0
        %4480 = vmatprep.subr.mxu0 0.0
        %4481 = vmatpush2.msra.mxu0 0.0
        %4482 = vmatprep.subr.mxu0 0.0
        %4483 = vmatpush2.msra.mxu0 0.0
        %4484 = vmatprep.subr.mxu0 0.0
        %4485 = vmatpush2.msra.mxu0 0.0
        %4486 = vmatprep.subr.mxu0 0.0
        %4487 = vmatpush2.msra.mxu0 0.0
        %4488 = vmatprep.subr.mxu0 0.0
        %4489 = vmatpush2.msra.mxu0 0.0
        %4490 = vmatprep.subr.mxu0 0.0
        %4491 = vmatpush2.msra.mxu0 0.0
        %4492 = vmatprep.subr.mxu0 0.0
        %4493 = vmatpush2.msra.mxu0 0.0
        %4494 = vmatprep.subr.mxu0 0.0
        %4495 = vmatpush2.msra.mxu0 0.0
        %4496 = vmatprep.subr.mxu0 0.0
        %4497 = vmatpush2.msra.mxu0 0.0
        %4498 = vmatprep.mubr.f32.mxu0 0.0
        %v4499 = vand.u32 %v1930, 4294901760
        %v4500 = vsub.f32 %v1930, %v4499
        %v4501 = vand.u32 %v4500, 4294901760
        %4502 = vmatmul.mubr.f32.gmra.mxu0 %v4501
        %v4503 = vpop.f32.mrf.mxu0
        %v4504 = vadd.f32 %v4412, %v4503
        %v4505 = vpop.f32.mrf.mxu0
        %v4506 = vadd.f32 %v4414, %v4505
        %4507 = vmatprep.mubr.f32.mxu0 0.0
        %v4508 = vand.u32 %v1933, 4294901760
        %v4509 = vsub.f32 %v1933, %v4508
        %v4510 = vand.u32 %v4509, 4294901760
        %4511 = vmatmul.mubr.f32.gmra.mxu0 %v4510
        %v4512 = vpop.f32.mrf.mxu0
        %v4513 = vadd.f32 %v4420, %v4512
        %v4514 = vpop.f32.mrf.mxu0
        %v4515 = vadd.f32 %v4422, %v4514
        %4516 = vdwg.mxu0
        %4517 = vmatprep.subr.mxu0 0.0
        %4518 = vmatpush1.msra.mxu0 0.0
        %4519 = vmatprep.subr.mxu0 0.0
        %4520 = vmatpush1.msra.mxu0 0.0
        %4521 = vmatprep.subr.mxu0 0.0
        %4522 = vmatpush1.msra.mxu0 0.0
        %4523 = vmatprep.subr.mxu0 0.0
        %4524 = vmatpush1.msra.mxu0 0.0
        %4525 = vmatprep.subr.mxu0 0.0
        %4526 = vmatpush1.msra.mxu0 0.0
        %4527 = vmatprep.subr.mxu0 0.0
        %4528 = vmatpush1.msra.mxu0 0.0
        %4529 = vmatprep.subr.mxu0 0.0
        %4530 = vmatpush1.msra.mxu0 0.0
        %4531 = vmatprep.subr.mxu0 0.0
        %4532 = vmatpush1.msra.mxu0 0.0
        %4533 = vmatprep.subr.mxu0 0.0
        %4534 = vmatpush1.msra.mxu0 0.0
        %4535 = vmatprep.subr.mxu0 0.0
        %4536 = vmatpush1.msra.mxu0 0.0
        %4537 = vmatprep.subr.mxu0 0.0
        %4538 = vmatpush1.msra.mxu0 0.0
        %v4539 = vand.u32 %v4096, 4294901760
        %v4540 = vsub.f32 %v4096, %v4539
        %v4541 = vand.u32 %v4540, 4294901760
        %4542 = vmatprep.subr.mxu0 %v4541
        %v4543 = vand.u32 %v4095, 4294901760
        %v4544 = vsub.f32 %v4095, %v4543
        %v4545 = vand.u32 %v4544, 4294901760
        %4546 = vmatpush1.msra.mxu0 %v4545
        %v4547 = vand.u32 %v4094, 4294901760
        %v4548 = vsub.f32 %v4094, %v4547
        %v4549 = vand.u32 %v4548, 4294901760
        %4550 = vmatprep.subr.mxu0 %v4549
        %v4551 = vand.u32 %v4093, 4294901760
        %v4552 = vsub.f32 %v4093, %v4551
        %v4553 = vand.u32 %v4552, 4294901760
        %4554 = vmatpush1.msra.mxu0 %v4553
        %v4555 = vand.u32 %v4092, 4294901760
        %v4556 = vsub.f32 %v4092, %v4555
        %v4557 = vand.u32 %v4556, 4294901760
        %4558 = vmatprep.subr.mxu0 %v4557
        %v4559 = vand.u32 %v4091, 4294901760
        %v4560 = vsub.f32 %v4091, %v4559
        %v4561 = vand.u32 %v4560, 4294901760
        %4562 = vmatpush1.msra.mxu0 %v4561
        %v4563 = vand.u32 %v4090, 4294901760
        %v4564 = vsub.f32 %v4090, %v4563
        %v4565 = vand.u32 %v4564, 4294901760
        %4566 = vmatprep.subr.mxu0 %v4565
        %v4567 = vand.u32 %v4089, 4294901760
        %v4568 = vsub.f32 %v4089, %v4567
        %v4569 = vand.u32 %v4568, 4294901760
        %4570 = vmatpush1.msra.mxu0 %v4569
        %v4571 = vand.u32 %v4088, 4294901760
        %v4572 = vsub.f32 %v4088, %v4571
        %v4573 = vand.u32 %v4572, 4294901760
        %4574 = vmatprep.subr.mxu0 %v4573
        %v4575 = vand.u32 %v4087, 4294901760
        %v4576 = vsub.f32 %v4087, %v4575
        %v4577 = vand.u32 %v4576, 4294901760
        %4578 = vmatpush1.msra.mxu0 %v4577
        %4579 = vmatprep.subr.mxu0 0.0
        %4580 = vmatpush2.msra.mxu0 0.0
        %4581 = vmatprep.subr.mxu0 0.0
        %4582 = vmatpush2.msra.mxu0 0.0
        %4583 = vmatprep.subr.mxu0 0.0
        %4584 = vmatpush2.msra.mxu0 0.0
        %4585 = vmatprep.subr.mxu0 0.0
        %4586 = vmatpush2.msra.mxu0 0.0
        %4587 = vmatprep.subr.mxu0 0.0
        %4588 = vmatpush2.msra.mxu0 0.0
        %4589 = vmatprep.subr.mxu0 0.0
        %4590 = vmatpush2.msra.mxu0 0.0
        %4591 = vmatprep.subr.mxu0 0.0
        %4592 = vmatpush2.msra.mxu0 0.0
        %4593 = vmatprep.subr.mxu0 0.0
        %4594 = vmatpush2.msra.mxu0 0.0
        %4595 = vmatprep.subr.mxu0 0.0
        %4596 = vmatpush2.msra.mxu0 0.0
        %4597 = vmatprep.subr.mxu0 0.0
        %4598 = vmatpush2.msra.mxu0 0.0
        %4599 = vmatprep.subr.mxu0 0.0
        %4600 = vmatpush2.msra.mxu0 0.0
        %4601 = vmatprep.subr.mxu0 0.0
        %4602 = vmatpush2.msra.mxu0 0.0
        %4603 = vmatprep.subr.mxu0 0.0
        %4604 = vmatpush2.msra.mxu0 0.0
        %4605 = vmatprep.subr.mxu0 0.0
        %4606 = vmatpush2.msra.mxu0 0.0
        %4607 = vmatprep.subr.mxu0 0.0
        %4608 = vmatpush2.msra.mxu0 0.0
        %4609 = vmatprep.subr.mxu0 0.0
        %4610 = vmatpush2.msra.mxu0 0.0
        %4611 = vmatprep.mubr.f32.mxu0 0.0
        %v4612 = vand.u32 %v1930, 4294901760
        %4613 = vmatmul.mubr.f32.gmra.mxu0 %v4612
        %v4614 = vpop.f32.mrf.mxu0
        %v4615 = vadd.f32 %v4504, %v4614
        %v4616 = vpop.f32.mrf.mxu0
        %v4617 = vadd.f32 %v4506, %v4616
        %4618 = vmatprep.mubr.f32.mxu0 0.0
        %v4619 = vand.u32 %v1933, 4294901760
        %4620 = vmatmul.mubr.f32.gmra.mxu0 %v4619
        %v4621 = vpop.f32.mrf.mxu0
        %v4622 = vadd.f32 %v4513, %v4621
        %v4623 = vpop.f32.mrf.mxu0
        %v4624 = vadd.f32 %v4515, %v4623
        %4625 = vdwg.mxu0
        %4626 = vmatprep.subr.mxu0 0.0
        %4627 = vmatpush1.msra.mxu0 0.0
        %4628 = vmatprep.subr.mxu0 0.0
        %4629 = vmatpush1.msra.mxu0 0.0
        %4630 = vmatprep.subr.mxu0 0.0
        %4631 = vmatpush1.msra.mxu0 0.0
        %4632 = vmatprep.subr.mxu0 0.0
        %4633 = vmatpush1.msra.mxu0 0.0
        %4634 = vmatprep.subr.mxu0 0.0
        %4635 = vmatpush1.msra.mxu0 0.0
        %4636 = vmatprep.subr.mxu0 0.0
        %4637 = vmatpush1.msra.mxu0 0.0
        %4638 = vmatprep.subr.mxu0 0.0
        %4639 = vmatpush1.msra.mxu0 0.0
        %4640 = vmatprep.subr.mxu0 0.0
        %4641 = vmatpush1.msra.mxu0 0.0
        %4642 = vmatprep.subr.mxu0 0.0
        %4643 = vmatpush1.msra.mxu0 0.0
        %4644 = vmatprep.subr.mxu0 0.0
        %4645 = vmatpush1.msra.mxu0 0.0
        %4646 = vmatprep.subr.mxu0 0.0
        %4647 = vmatpush1.msra.mxu0 0.0
        %v4648 = vand.u32 %v4096, 4294901760
        %4649 = vmatprep.subr.mxu0 %v4648
        %v4650 = vand.u32 %v4095, 4294901760
        %4651 = vmatpush1.msra.mxu0 %v4650
        %v4652 = vand.u32 %v4094, 4294901760
        %4653 = vmatprep.subr.mxu0 %v4652
        %v4654 = vand.u32 %v4093, 4294901760
        %4655 = vmatpush1.msra.mxu0 %v4654
        %v4656 = vand.u32 %v4092, 4294901760
        %4657 = vmatprep.subr.mxu0 %v4656
        %v4658 = vand.u32 %v4091, 4294901760
        %4659 = vmatpush1.msra.mxu0 %v4658
        %v4660 = vand.u32 %v4090, 4294901760
        %4661 = vmatprep.subr.mxu0 %v4660
        %v4662 = vand.u32 %v4089, 4294901760
        %4663 = vmatpush1.msra.mxu0 %v4662
        %v4664 = vand.u32 %v4088, 4294901760
        %4665 = vmatprep.subr.mxu0 %v4664
        %v4666 = vand.u32 %v4087, 4294901760
        %4667 = vmatpush1.msra.mxu0 %v4666
        %4668 = vmatprep.subr.mxu0 0.0
        %4669 = vmatpush2.msra.mxu0 0.0
        %4670 = vmatprep.subr.mxu0 0.0
        %4671 = vmatpush2.msra.mxu0 0.0
        %4672 = vmatprep.subr.mxu0 0.0
        %4673 = vmatpush2.msra.mxu0 0.0
        %4674 = vmatprep.subr.mxu0 0.0
        %4675 = vmatpush2.msra.mxu0 0.0
        %4676 = vmatprep.subr.mxu0 0.0
        %4677 = vmatpush2.msra.mxu0 0.0
        %4678 = vmatprep.subr.mxu0 0.0
        %4679 = vmatpush2.msra.mxu0 0.0
        %4680 = vmatprep.subr.mxu0 0.0
        %4681 = vmatpush2.msra.mxu0 0.0
        %4682 = vmatprep.subr.mxu0 0.0
        %4683 = vmatpush2.msra.mxu0 0.0
        %4684 = vmatprep.subr.mxu0 0.0
        %4685 = vmatpush2.msra.mxu0 0.0
        %4686 = vmatprep.subr.mxu0 0.0
        %4687 = vmatpush2.msra.mxu0 0.0
        %4688 = vmatprep.subr.mxu0 0.0
        %4689 = vmatpush2.msra.mxu0 0.0
        %4690 = vmatprep.subr.mxu0 0.0
        %4691 = vmatpush2.msra.mxu0 0.0
        %4692 = vmatprep.subr.mxu0 0.0
        %4693 = vmatpush2.msra.mxu0 0.0
        %4694 = vmatprep.subr.mxu0 0.0
        %4695 = vmatpush2.msra.mxu0 0.0
        %4696 = vmatprep.subr.mxu0 0.0
        %4697 = vmatpush2.msra.mxu0 0.0
        %4698 = vmatprep.subr.mxu0 0.0
        %4699 = vmatpush2.msra.mxu0 0.0
        %4700 = vmatprep.mubr.f32.mxu0 0.0
        %v4701 = vand.u32 %v1930, 4294901760
        %4702 = vmatmul.mubr.f32.gmra.mxu0 %v4701
        %v4703 = vpop.f32.mrf.mxu0
        %v4704 = vadd.f32 %v4615, %v4703
        %v4705 = vpop.f32.mrf.mxu0
        %v4706 = vadd.f32 %v4617, %v4705
        %4707 = vmatprep.mubr.f32.mxu0 0.0
        %v4708 = vand.u32 %v1933, 4294901760
        %4709 = vmatmul.mubr.f32.gmra.mxu0 %v4708
        %v4710 = vpop.f32.mrf.mxu0
        %v4711 = vadd.f32 %v4622, %v4710
        %v4712 = vpop.f32.mrf.mxu0
        %v4713 = vadd.f32 %v4624, %v4712
        %4714 = vdwg.mxu0
        %vm4715 = vcmp.ge.f32.partialorder %v4704, 0.0
        %vm4716 = vcmp.ge.f32.partialorder %v4706, 0.0
        %vm4717 = vcmp.ge.f32.partialorder %v4711, 0.0
        %vm4718 = vcmp.ge.f32.partialorder %v4713, 0.0
        %v4719 = vmul.f32 %v4704, 0.01
        %v4720 = vmul.f32 %v4706, 0.01
        %v4721 = vmul.f32 %v4711, 0.01
        %v4722 = vmul.f32 %v4713, 0.01
        %v4723 = vsel %vm4715, %v4704, %v4719
        %v4724 = vsel %vm4716, %v4706, %v4720
        %v4725 = vsel %vm4717, %v4711, %v4721
        %v4726 = vsel %vm4718, %v4713, %v4722
        %v4728 = vsel %vm2574, %v4725, 0
        %v4731 = vsel %vm2574, %v4726, 0
        %4733 = vmatprep.subr.mxu0 0.0
        %4734 = vmatpush1.msra.mxu0 0.0
        %4735 = vmatprep.subr.mxu0 0.0
        %4736 = vmatpush1.msra.mxu0 0.0
        %4737 = vmatprep.subr.mxu0 0.0
        %4738 = vmatpush1.msra.mxu0 0.0
        %4739 = vmatprep.subr.mxu0 0.0
        %4740 = vmatpush1.msra.mxu0 0.0
        %4741 = vmatprep.subr.mxu0 0.0
        %4742 = vmatpush1.msra.mxu0 0.0
        %4743 = vmatprep.subr.mxu0 0.0
        %4744 = vmatpush1.msra.mxu0 0.0
        %4745 = vmatprep.subr.mxu0 0.0
        %4746 = vmatpush1.msra.mxu0 0.0
        %4747 = vmatprep.subr.mxu0 0.0
        %4748 = vmatpush1.msra.mxu0 0.0
        %4749 = vmatprep.subr.mxu0 0.0
        %4750 = vmatpush1.msra.mxu0 0.0
        %4751 = vmatprep.subr.mxu0 0.0
        %4752 = vmatpush1.msra.mxu0 0.0
        %4753 = vmatprep.subr.mxu0 0.0
        %4754 = vmatpush1.msra.mxu0 0.0
        %4755 = vmatprep.subr.mxu0 0.0
        %4756 = vmatpush1.msra.mxu0 0.0
        %4757 = vmatprep.subr.mxu0 0.0
        %4758 = vmatpush1.msra.mxu0 0.0
        %4759 = vmatprep.subr.mxu0 0.0
        %4760 = vmatpush1.msra.mxu0 0.0
        %v4761 = vand.u32 %v4731, 4294901760
        %4762 = vmatprep.subr.mxu0 %v4761
        %v4763 = vand.u32 %v4728, 4294901760
        %4764 = vmatpush1.msra.mxu0 %v4763
        %v4765 = vand.u32 %v4724, 4294901760
        %4766 = vmatprep.subr.mxu0 %v4765
        %v4767 = vand.u32 %v4723, 4294901760
        %4768 = vmatpush1.msra.mxu0 %v4767
        %4769 = vmatprep.subr.mxu0 0.0
        %4770 = vmatpush2.msra.mxu0 0.0
        %4771 = vmatprep.subr.mxu0 0.0
        %4772 = vmatpush2.msra.mxu0 0.0
        %4773 = vmatprep.subr.mxu0 0.0
        %4774 = vmatpush2.msra.mxu0 0.0
        %4775 = vmatprep.subr.mxu0 0.0
        %4776 = vmatpush2.msra.mxu0 0.0
        %4777 = vmatprep.subr.mxu0 0.0
        %4778 = vmatpush2.msra.mxu0 0.0
        %4779 = vmatprep.subr.mxu0 0.0
        %4780 = vmatpush2.msra.mxu0 0.0
        %4781 = vmatprep.subr.mxu0 0.0
        %4782 = vmatpush2.msra.mxu0 0.0
        %4783 = vmatprep.subr.mxu0 0.0
        %4784 = vmatpush2.msra.mxu0 0.0
        %4785 = vmatprep.subr.mxu0 0.0
        %4786 = vmatpush2.msra.mxu0 0.0
        %4787 = vmatprep.subr.mxu0 0.0
        %4788 = vmatpush2.msra.mxu0 0.0
        %4789 = vmatprep.subr.mxu0 0.0
        %4790 = vmatpush2.msra.mxu0 0.0
        %4791 = vmatprep.subr.mxu0 0.0
        %4792 = vmatpush2.msra.mxu0 0.0
        %4793 = vmatprep.subr.mxu0 0.0
        %4794 = vmatpush2.msra.mxu0 0.0
        %4795 = vmatprep.subr.mxu0 0.0
        %4796 = vmatpush2.msra.mxu0 0.0
        %4797 = vmatprep.subr.mxu0 0.0
        %4798 = vmatpush2.msra.mxu0 0.0
        %4799 = vmatprep.subr.mxu0 0.0
        %4800 = vmatpush2.msra.mxu0 0.0
        %4801 = vmatprep.mubr.f32.mxu0 0.0
        %v4802 = vand.u32 %v2572, 4294901760
        %v4803 = vsub.f32 %v2572, %v4802
        %v4804 = vand.u32 %v4803, 4294901760
        %v4805 = vsub.f32 %v4803, %v4804
        %v4806 = vand.u32 %v4805, 4294901760
        %4807 = vmatmul.mubr.f32.gmra.mxu0 %v4806
        %v4808 = vpop.f32.mrf.mxu0
        %v4809 = vadd.f32 %v2568, %v4808
        %v4810 = vpop.f32.mrf.mxu0
        %v4811 = vadd.f32 %v2568, %v4810
        %4812 = vdwg.mxu0
        %4813 = vmatprep.subr.mxu0 0.0
        %4814 = vmatpush1.msra.mxu0 0.0
        %4815 = vmatprep.subr.mxu0 0.0
        %4816 = vmatpush1.msra.mxu0 0.0
        %4817 = vmatprep.subr.mxu0 0.0
        %4818 = vmatpush1.msra.mxu0 0.0
        %4819 = vmatprep.subr.mxu0 0.0
        %4820 = vmatpush1.msra.mxu0 0.0
        %4821 = vmatprep.subr.mxu0 0.0
        %4822 = vmatpush1.msra.mxu0 0.0
        %4823 = vmatprep.subr.mxu0 0.0
        %4824 = vmatpush1.msra.mxu0 0.0
        %4825 = vmatprep.subr.mxu0 0.0
        %4826 = vmatpush1.msra.mxu0 0.0
        %4827 = vmatprep.subr.mxu0 0.0
        %4828 = vmatpush1.msra.mxu0 0.0
        %4829 = vmatprep.subr.mxu0 0.0
        %4830 = vmatpush1.msra.mxu0 0.0
        %4831 = vmatprep.subr.mxu0 0.0
        %4832 = vmatpush1.msra.mxu0 0.0
        %4833 = vmatprep.subr.mxu0 0.0
        %4834 = vmatpush1.msra.mxu0 0.0
        %4835 = vmatprep.subr.mxu0 0.0
        %4836 = vmatpush1.msra.mxu0 0.0
        %4837 = vmatprep.subr.mxu0 0.0
        %4838 = vmatpush1.msra.mxu0 0.0
        %4839 = vmatprep.subr.mxu0 0.0
        %4840 = vmatpush1.msra.mxu0 0.0
        %v4841 = vand.u32 %v4731, 4294901760
        %v4842 = vsub.f32 %v4731, %v4841
        %v4843 = vand.u32 %v4842, 4294901760
        %v4844 = vsub.f32 %v4842, %v4843
        %v4845 = vand.u32 %v4844, 4294901760
        %4846 = vmatprep.subr.mxu0 %v4845
        %v4847 = vand.u32 %v4728, 4294901760
        %v4848 = vsub.f32 %v4728, %v4847
        %v4849 = vand.u32 %v4848, 4294901760
        %v4850 = vsub.f32 %v4848, %v4849
        %v4851 = vand.u32 %v4850, 4294901760
        %4852 = vmatpush1.msra.mxu0 %v4851
        %v4853 = vand.u32 %v4724, 4294901760
        %v4854 = vsub.f32 %v4724, %v4853
        %v4855 = vand.u32 %v4854, 4294901760
        %v4856 = vsub.f32 %v4854, %v4855
        %v4857 = vand.u32 %v4856, 4294901760
        %4858 = vmatprep.subr.mxu0 %v4857
        %v4859 = vand.u32 %v4723, 4294901760
        %v4860 = vsub.f32 %v4723, %v4859
        %v4861 = vand.u32 %v4860, 4294901760
        %v4862 = vsub.f32 %v4860, %v4861
        %v4863 = vand.u32 %v4862, 4294901760
        %4864 = vmatpush1.msra.mxu0 %v4863
        %4865 = vmatprep.subr.mxu0 0.0
        %4866 = vmatpush2.msra.mxu0 0.0
        %4867 = vmatprep.subr.mxu0 0.0
        %4868 = vmatpush2.msra.mxu0 0.0
        %4869 = vmatprep.subr.mxu0 0.0
        %4870 = vmatpush2.msra.mxu0 0.0
        %4871 = vmatprep.subr.mxu0 0.0
        %4872 = vmatpush2.msra.mxu0 0.0
        %4873 = vmatprep.subr.mxu0 0.0
        %4874 = vmatpush2.msra.mxu0 0.0
        %4875 = vmatprep.subr.mxu0 0.0
        %4876 = vmatpush2.msra.mxu0 0.0
        %4877 = vmatprep.subr.mxu0 0.0
        %4878 = vmatpush2.msra.mxu0 0.0
        %4879 = vmatprep.subr.mxu0 0.0
        %4880 = vmatpush2.msra.mxu0 0.0
        %4881 = vmatprep.subr.mxu0 0.0
        %4882 = vmatpush2.msra.mxu0 0.0
        %4883 = vmatprep.subr.mxu0 0.0
        %4884 = vmatpush2.msra.mxu0 0.0
        %4885 = vmatprep.subr.mxu0 0.0
        %4886 = vmatpush2.msra.mxu0 0.0
        %4887 = vmatprep.subr.mxu0 0.0
        %4888 = vmatpush2.msra.mxu0 0.0
        %4889 = vmatprep.subr.mxu0 0.0
        %4890 = vmatpush2.msra.mxu0 0.0
        %4891 = vmatprep.subr.mxu0 0.0
        %4892 = vmatpush2.msra.mxu0 0.0
        %4893 = vmatprep.subr.mxu0 0.0
        %4894 = vmatpush2.msra.mxu0 0.0
        %4895 = vmatprep.subr.mxu0 0.0
        %4896 = vmatpush2.msra.mxu0 0.0
        %4897 = vmatprep.mubr.f32.mxu0 0.0
        %v4898 = vand.u32 %v2572, 4294901760
        %4899 = vmatmul.mubr.f32.gmra.mxu0 %v4898
        %v4900 = vpop.f32.mrf.mxu0
        %v4901 = vadd.f32 %v4809, %v4900
        %v4902 = vpop.f32.mrf.mxu0
        %v4903 = vadd.f32 %v4811, %v4902
        %4904 = vdwg.mxu0
        %4905 = vmatprep.subr.mxu0 0.0
        %4906 = vmatpush1.msra.mxu0 0.0
        %4907 = vmatprep.subr.mxu0 0.0
        %4908 = vmatpush1.msra.mxu0 0.0
        %4909 = vmatprep.subr.mxu0 0.0
        %4910 = vmatpush1.msra.mxu0 0.0
        %4911 = vmatprep.subr.mxu0 0.0
        %4912 = vmatpush1.msra.mxu0 0.0
        %4913 = vmatprep.subr.mxu0 0.0
        %4914 = vmatpush1.msra.mxu0 0.0
        %4915 = vmatprep.subr.mxu0 0.0
        %4916 = vmatpush1.msra.mxu0 0.0
        %4917 = vmatprep.subr.mxu0 0.0
        %4918 = vmatpush1.msra.mxu0 0.0
        %4919 = vmatprep.subr.mxu0 0.0
        %4920 = vmatpush1.msra.mxu0 0.0
        %4921 = vmatprep.subr.mxu0 0.0
        %4922 = vmatpush1.msra.mxu0 0.0
        %4923 = vmatprep.subr.mxu0 0.0
        %4924 = vmatpush1.msra.mxu0 0.0
        %4925 = vmatprep.subr.mxu0 0.0
        %4926 = vmatpush1.msra.mxu0 0.0
        %4927 = vmatprep.subr.mxu0 0.0
        %4928 = vmatpush1.msra.mxu0 0.0
        %4929 = vmatprep.subr.mxu0 0.0
        %4930 = vmatpush1.msra.mxu0 0.0
        %4931 = vmatprep.subr.mxu0 0.0
        %4932 = vmatpush1.msra.mxu0 0.0
        %v4933 = vand.u32 %v4731, 4294901760
        %v4934 = vsub.f32 %v4731, %v4933
        %4935 = vmatprep.subr.mxu0 %v4934
        %v4936 = vand.u32 %v4728, 4294901760
        %v4937 = vsub.f32 %v4728, %v4936
        %4938 = vmatpush1.msra.mxu0 %v4937
        %v4939 = vand.u32 %v4724, 4294901760
        %v4940 = vsub.f32 %v4724, %v4939
        %4941 = vmatprep.subr.mxu0 %v4940
        %v4942 = vand.u32 %v4723, 4294901760
        %v4943 = vsub.f32 %v4723, %v4942
        %4944 = vmatpush1.msra.mxu0 %v4943
        %4945 = vmatprep.subr.mxu0 0.0
        %4946 = vmatpush2.msra.mxu0 0.0
        %4947 = vmatprep.subr.mxu0 0.0
        %4948 = vmatpush2.msra.mxu0 0.0
        %4949 = vmatprep.subr.mxu0 0.0
        %4950 = vmatpush2.msra.mxu0 0.0
        %4951 = vmatprep.subr.mxu0 0.0
        %4952 = vmatpush2.msra.mxu0 0.0
        %4953 = vmatprep.subr.mxu0 0.0
        %4954 = vmatpush2.msra.mxu0 0.0
        %4955 = vmatprep.subr.mxu0 0.0
        %4956 = vmatpush2.msra.mxu0 0.0
        %4957 = vmatprep.subr.mxu0 0.0
        %4958 = vmatpush2.msra.mxu0 0.0
        %4959 = vmatprep.subr.mxu0 0.0
        %4960 = vmatpush2.msra.mxu0 0.0
        %4961 = vmatprep.subr.mxu0 0.0
        %4962 = vmatpush2.msra.mxu0 0.0
        %4963 = vmatprep.subr.mxu0 0.0
        %4964 = vmatpush2.msra.mxu0 0.0
        %4965 = vmatprep.subr.mxu0 0.0
        %4966 = vmatpush2.msra.mxu0 0.0
        %4967 = vmatprep.subr.mxu0 0.0
        %4968 = vmatpush2.msra.mxu0 0.0
        %4969 = vmatprep.subr.mxu0 0.0
        %4970 = vmatpush2.msra.mxu0 0.0
        %4971 = vmatprep.subr.mxu0 0.0
        %4972 = vmatpush2.msra.mxu0 0.0
        %4973 = vmatprep.subr.mxu0 0.0
        %4974 = vmatpush2.msra.mxu0 0.0
        %4975 = vmatprep.subr.mxu0 0.0
        %4976 = vmatpush2.msra.mxu0 0.0
        %4977 = vmatprep.mubr.f32.mxu0 0.0
        %v4978 = vand.u32 %v2572, 4294901760
        %v4979 = vsub.f32 %v2572, %v4978
        %4980 = vmatmul.mubr.f32.gmra.mxu0 %v4979
        %v4981 = vpop.f32.mrf.mxu0
        %v4982 = vadd.f32 %v4901, %v4981
        %v4983 = vpop.f32.mrf.mxu0
        %v4984 = vadd.f32 %v4903, %v4983
        %4985 = vdwg.mxu0
        %4986 = vmatprep.subr.mxu0 0.0
        %4987 = vmatpush1.msra.mxu0 0.0
        %4988 = vmatprep.subr.mxu0 0.0
        %4989 = vmatpush1.msra.mxu0 0.0
        %4990 = vmatprep.subr.mxu0 0.0
        %4991 = vmatpush1.msra.mxu0 0.0
        %4992 = vmatprep.subr.mxu0 0.0
        %4993 = vmatpush1.msra.mxu0 0.0
        %4994 = vmatprep.subr.mxu0 0.0
        %4995 = vmatpush1.msra.mxu0 0.0
        %4996 = vmatprep.subr.mxu0 0.0
        %4997 = vmatpush1.msra.mxu0 0.0
        %4998 = vmatprep.subr.mxu0 0.0
        %4999 = vmatpush1.msra.mxu0 0.0
        %5000 = vmatprep.subr.mxu0 0.0
        %5001 = vmatpush1.msra.mxu0 0.0
        %5002 = vmatprep.subr.mxu0 0.0
        %5003 = vmatpush1.msra.mxu0 0.0
        %5004 = vmatprep.subr.mxu0 0.0
        %5005 = vmatpush1.msra.mxu0 0.0
        %5006 = vmatprep.subr.mxu0 0.0
        %5007 = vmatpush1.msra.mxu0 0.0
        %5008 = vmatprep.subr.mxu0 0.0
        %5009 = vmatpush1.msra.mxu0 0.0
        %5010 = vmatprep.subr.mxu0 0.0
        %5011 = vmatpush1.msra.mxu0 0.0
        %5012 = vmatprep.subr.mxu0 0.0
        %5013 = vmatpush1.msra.mxu0 0.0
        %v5014 = vand.u32 %v4731, 4294901760
        %5015 = vmatprep.subr.mxu0 %v5014
        %v5016 = vand.u32 %v4728, 4294901760
        %5017 = vmatpush1.msra.mxu0 %v5016
        %v5018 = vand.u32 %v4724, 4294901760
        %5019 = vmatprep.subr.mxu0 %v5018
        %v5020 = vand.u32 %v4723, 4294901760
        %5021 = vmatpush1.msra.mxu0 %v5020
        %5022 = vmatprep.subr.mxu0 0.0
        %5023 = vmatpush2.msra.mxu0 0.0
        %5024 = vmatprep.subr.mxu0 0.0
        %5025 = vmatpush2.msra.mxu0 0.0
        %5026 = vmatprep.subr.mxu0 0.0
        %5027 = vmatpush2.msra.mxu0 0.0
        %5028 = vmatprep.subr.mxu0 0.0
        %5029 = vmatpush2.msra.mxu0 0.0
        %5030 = vmatprep.subr.mxu0 0.0
        %5031 = vmatpush2.msra.mxu0 0.0
        %5032 = vmatprep.subr.mxu0 0.0
        %5033 = vmatpush2.msra.mxu0 0.0
        %5034 = vmatprep.subr.mxu0 0.0
        %5035 = vmatpush2.msra.mxu0 0.0
        %5036 = vmatprep.subr.mxu0 0.0
        %5037 = vmatpush2.msra.mxu0 0.0
        %5038 = vmatprep.subr.mxu0 0.0
        %5039 = vmatpush2.msra.mxu0 0.0
        %5040 = vmatprep.subr.mxu0 0.0
        %5041 = vmatpush2.msra.mxu0 0.0
        %5042 = vmatprep.subr.mxu0 0.0
        %5043 = vmatpush2.msra.mxu0 0.0
        %5044 = vmatprep.subr.mxu0 0.0
        %5045 = vmatpush2.msra.mxu0 0.0
        %5046 = vmatprep.subr.mxu0 0.0
        %5047 = vmatpush2.msra.mxu0 0.0
        %5048 = vmatprep.subr.mxu0 0.0
        %5049 = vmatpush2.msra.mxu0 0.0
        %5050 = vmatprep.subr.mxu0 0.0
        %5051 = vmatpush2.msra.mxu0 0.0
        %5052 = vmatprep.subr.mxu0 0.0
        %5053 = vmatpush2.msra.mxu0 0.0
        %5054 = vmatprep.mubr.f32.mxu0 0.0
        %v5055 = vand.u32 %v2572, 4294901760
        %v5056 = vsub.f32 %v2572, %v5055
        %v5057 = vand.u32 %v5056, 4294901760
        %5058 = vmatmul.mubr.f32.gmra.mxu0 %v5057
        %v5059 = vpop.f32.mrf.mxu0
        %v5060 = vadd.f32 %v4982, %v5059
        %v5061 = vpop.f32.mrf.mxu0
        %v5062 = vadd.f32 %v4984, %v5061
        %5063 = vdwg.mxu0
        %5064 = vmatprep.subr.mxu0 0.0
        %5065 = vmatpush1.msra.mxu0 0.0
        %5066 = vmatprep.subr.mxu0 0.0
        %5067 = vmatpush1.msra.mxu0 0.0
        %5068 = vmatprep.subr.mxu0 0.0
        %5069 = vmatpush1.msra.mxu0 0.0
        %5070 = vmatprep.subr.mxu0 0.0
        %5071 = vmatpush1.msra.mxu0 0.0
        %5072 = vmatprep.subr.mxu0 0.0
        %5073 = vmatpush1.msra.mxu0 0.0
        %5074 = vmatprep.subr.mxu0 0.0
        %5075 = vmatpush1.msra.mxu0 0.0
        %5076 = vmatprep.subr.mxu0 0.0
        %5077 = vmatpush1.msra.mxu0 0.0
        %5078 = vmatprep.subr.mxu0 0.0
        %5079 = vmatpush1.msra.mxu0 0.0
        %5080 = vmatprep.subr.mxu0 0.0
        %5081 = vmatpush1.msra.mxu0 0.0
        %5082 = vmatprep.subr.mxu0 0.0
        %5083 = vmatpush1.msra.mxu0 0.0
        %5084 = vmatprep.subr.mxu0 0.0
        %5085 = vmatpush1.msra.mxu0 0.0
        %5086 = vmatprep.subr.mxu0 0.0
        %5087 = vmatpush1.msra.mxu0 0.0
        %5088 = vmatprep.subr.mxu0 0.0
        %5089 = vmatpush1.msra.mxu0 0.0
        %5090 = vmatprep.subr.mxu0 0.0
        %5091 = vmatpush1.msra.mxu0 0.0
        %v5092 = vand.u32 %v4731, 4294901760
        %v5093 = vsub.f32 %v4731, %v5092
        %v5094 = vand.u32 %v5093, 4294901760
        %5095 = vmatprep.subr.mxu0 %v5094
        %v5096 = vand.u32 %v4728, 4294901760
        %v5097 = vsub.f32 %v4728, %v5096
        %v5098 = vand.u32 %v5097, 4294901760
        %5099 = vmatpush1.msra.mxu0 %v5098
        %v5100 = vand.u32 %v4724, 4294901760
        %v5101 = vsub.f32 %v4724, %v5100
        %v5102 = vand.u32 %v5101, 4294901760
        %5103 = vmatprep.subr.mxu0 %v5102
        %v5104 = vand.u32 %v4723, 4294901760
        %v5105 = vsub.f32 %v4723, %v5104
        %v5106 = vand.u32 %v5105, 4294901760
        %5107 = vmatpush1.msra.mxu0 %v5106
        %5108 = vmatprep.subr.mxu0 0.0
        %5109 = vmatpush2.msra.mxu0 0.0
        %5110 = vmatprep.subr.mxu0 0.0
        %5111 = vmatpush2.msra.mxu0 0.0
        %5112 = vmatprep.subr.mxu0 0.0
        %5113 = vmatpush2.msra.mxu0 0.0
        %5114 = vmatprep.subr.mxu0 0.0
        %5115 = vmatpush2.msra.mxu0 0.0
        %5116 = vmatprep.subr.mxu0 0.0
        %5117 = vmatpush2.msra.mxu0 0.0
        %5118 = vmatprep.subr.mxu0 0.0
        %5119 = vmatpush2.msra.mxu0 0.0
        %5120 = vmatprep.subr.mxu0 0.0
        %5121 = vmatpush2.msra.mxu0 0.0
        %5122 = vmatprep.subr.mxu0 0.0
        %5123 = vmatpush2.msra.mxu0 0.0
        %5124 = vmatprep.subr.mxu0 0.0
        %5125 = vmatpush2.msra.mxu0 0.0
        %5126 = vmatprep.subr.mxu0 0.0
        %5127 = vmatpush2.msra.mxu0 0.0
        %5128 = vmatprep.subr.mxu0 0.0
        %5129 = vmatpush2.msra.mxu0 0.0
        %5130 = vmatprep.subr.mxu0 0.0
        %5131 = vmatpush2.msra.mxu0 0.0
        %5132 = vmatprep.subr.mxu0 0.0
        %5133 = vmatpush2.msra.mxu0 0.0
        %5134 = vmatprep.subr.mxu0 0.0
        %5135 = vmatpush2.msra.mxu0 0.0
        %5136 = vmatprep.subr.mxu0 0.0
        %5137 = vmatpush2.msra.mxu0 0.0
        %5138 = vmatprep.subr.mxu0 0.0
        %5139 = vmatpush2.msra.mxu0 0.0
        %5140 = vmatprep.mubr.f32.mxu0 0.0
        %v5141 = vand.u32 %v2572, 4294901760
        %5142 = vmatmul.mubr.f32.gmra.mxu0 %v5141
        %v5143 = vpop.f32.mrf.mxu0
        %v5144 = vadd.f32 %v5060, %v5143
        %v5145 = vpop.f32.mrf.mxu0
        %v5146 = vadd.f32 %v5062, %v5145
        %5147 = vdwg.mxu0
        %5148 = vmatprep.subr.mxu0 0.0
        %5149 = vmatpush1.msra.mxu0 0.0
        %5150 = vmatprep.subr.mxu0 0.0
        %5151 = vmatpush1.msra.mxu0 0.0
        %5152 = vmatprep.subr.mxu0 0.0
        %5153 = vmatpush1.msra.mxu0 0.0
        %5154 = vmatprep.subr.mxu0 0.0
        %5155 = vmatpush1.msra.mxu0 0.0
        %5156 = vmatprep.subr.mxu0 0.0
        %5157 = vmatpush1.msra.mxu0 0.0
        %5158 = vmatprep.subr.mxu0 0.0
        %5159 = vmatpush1.msra.mxu0 0.0
        %5160 = vmatprep.subr.mxu0 0.0
        %5161 = vmatpush1.msra.mxu0 0.0
        %5162 = vmatprep.subr.mxu0 0.0
        %5163 = vmatpush1.msra.mxu0 0.0
        %5164 = vmatprep.subr.mxu0 0.0
        %5165 = vmatpush1.msra.mxu0 0.0
        %5166 = vmatprep.subr.mxu0 0.0
        %5167 = vmatpush1.msra.mxu0 0.0
        %5168 = vmatprep.subr.mxu0 0.0
        %5169 = vmatpush1.msra.mxu0 0.0
        %5170 = vmatprep.subr.mxu0 0.0
        %5171 = vmatpush1.msra.mxu0 0.0
        %5172 = vmatprep.subr.mxu0 0.0
        %5173 = vmatpush1.msra.mxu0 0.0
        %5174 = vmatprep.subr.mxu0 0.0
        %5175 = vmatpush1.msra.mxu0 0.0
        %v5176 = vand.u32 %v4731, 4294901760
        %5177 = vmatprep.subr.mxu0 %v5176
        %v5178 = vand.u32 %v4728, 4294901760
        %5179 = vmatpush1.msra.mxu0 %v5178
        %v5180 = vand.u32 %v4724, 4294901760
        %5181 = vmatprep.subr.mxu0 %v5180
        %v5182 = vand.u32 %v4723, 4294901760
        %5183 = vmatpush1.msra.mxu0 %v5182
        %5184 = vmatprep.subr.mxu0 0.0
        %5185 = vmatpush2.msra.mxu0 0.0
        %5186 = vmatprep.subr.mxu0 0.0
        %5187 = vmatpush2.msra.mxu0 0.0
        %5188 = vmatprep.subr.mxu0 0.0
        %5189 = vmatpush2.msra.mxu0 0.0
        %5190 = vmatprep.subr.mxu0 0.0
        %5191 = vmatpush2.msra.mxu0 0.0
        %5192 = vmatprep.subr.mxu0 0.0
        %5193 = vmatpush2.msra.mxu0 0.0
        %5194 = vmatprep.subr.mxu0 0.0
        %5195 = vmatpush2.msra.mxu0 0.0
        %5196 = vmatprep.subr.mxu0 0.0
        %5197 = vmatpush2.msra.mxu0 0.0
        %5198 = vmatprep.subr.mxu0 0.0
        %5199 = vmatpush2.msra.mxu0 0.0
        %5200 = vmatprep.subr.mxu0 0.0
        %5201 = vmatpush2.msra.mxu0 0.0
        %5202 = vmatprep.subr.mxu0 0.0
        %5203 = vmatpush2.msra.mxu0 0.0
        %5204 = vmatprep.subr.mxu0 0.0
        %5205 = vmatpush2.msra.mxu0 0.0
        %5206 = vmatprep.subr.mxu0 0.0
        %5207 = vmatpush2.msra.mxu0 0.0
        %5208 = vmatprep.subr.mxu0 0.0
        %5209 = vmatpush2.msra.mxu0 0.0
        %5210 = vmatprep.subr.mxu0 0.0
        %5211 = vmatpush2.msra.mxu0 0.0
        %5212 = vmatprep.subr.mxu0 0.0
        %5213 = vmatpush2.msra.mxu0 0.0
        %5214 = vmatprep.subr.mxu0 0.0
        %5215 = vmatpush2.msra.mxu0 0.0
        %5216 = vmatprep.mubr.f32.mxu0 0.0
        %v5217 = vand.u32 %v2572, 4294901760
        %5218 = vmatmul.mubr.f32.gmra.mxu0 %v5217
        %v5219 = vpop.f32.mrf.mxu0
        %v5220 = vadd.f32 %v5144, %v5219
        %v5221 = vpop.f32.mrf.mxu0
        %v5222 = vadd.f32 %v5146, %v5221
        %5223 = vdwg.mxu0
        %v5226 = vrot.slane %v5220, 4
        %v5227 = vrot.slane %v5222, 4
        %5230 = vst [vmem:[%s830] sm:$0xf0] %v5226
        %5231 = vst [vmem:[%s830 + $0x8] sm:$0xf0] %v5227
        %p5232 = scmp.lt.s32.totalorder %s23, 0
        %s5233 = scalar_select %p5232, %s23, 0
        %p5234 = scmp.lt.s32.totalorder %s24, 1
        %s5235 = scalar_select %p5234, %s24, 1
        %s5236 = smul.addr %s5235, 2
        %s5237 = smul.addr %s5233, 4
        %s5238 = sadd.s32 %s5236, %s5237
        %s5239 = smul.addr %s5238, 8
        %s5240 = scalar_lea.vmem %s8, %s5239
        // Predicated region
        $region157: #{winfc3_forward.1} parent=147 // pred_check
          %p5241 = pneg %p237
        $region158: #{winfc3_forward.1} parent=147 // pred_check_branch
          %5243 = sbr.rel (%p5241) target = $region160
        $region159: #{winfc3_forward.1} parent=147 // pred_region
          _
        $region160: #{winfc3_forward.1} parent=147 // pred_fallthru
          _
      $region148: #{winfc3_forward.1} parent=5 // pred_fallthru
        _
      %p5244 = scmp.le.s32.totalorder 2, %s14
      // Predicated region
      $region161: #{winfc3_forward.1} parent=5 // pred_check
        %p5245 = pneg %p5244
      $region162: #{winfc3_forward.1} parent=5 // pred_check_branch
        %5247 = sbr.rel (%p5245) target = $region164
      $region163: #{winfc3_forward.1} parent=5 // pred_region
        %s5248 = ssub.s32 %s14, 2
        // Predicated region
        $region165: #{winfc3_forward.1} parent=163 // pred_check
          %p5249 = pneg %p243
        $region166: #{winfc3_forward.1} parent=163 // pred_check_branch
          %5251 = sbr.rel (%p5249) target = $region168
        $region167: #{winfc3_forward.1} parent=163 // pred_region
          %p5252 = scmp.lt.s32.totalorder %s25, 0
          %s5253 = scalar_select %p5252, %s25, 0
          %p5254 = scmp.lt.s32.totalorder %s26, 1
          %s5255 = scalar_select %p5254, %s26, 1
          %s5256 = smul.addr %s5255, 2
          %s5257 = smul.addr %s5253, 4
          %s5258 = sadd.s32 %s5256, %s5257
          %s5259 = smul.addr %s5258, 8
          %s5260 = scalar_lea.vmem %s8, %s5259
        $region168: #{winfc3_forward.1} parent=163 // pred_fallthru
          _
      $region164: #{winfc3_forward.1} parent=5 // pred_fallthru
        _
    $region6: #{winfc3_forward.1} parent=1 // loop_footer
      %s18 = sadd.s32 1, %s14
    $region7: #{winfc3_forward.1} parent=1 // loop_footer_branch
      %13 = sbr.rel target = $region3
    $region8: #{winfc3_forward.1} parent=1 // loop_exit
      _

</llo_original>
